<compile_context>
chip_gen: v6e
topology: v6e:2x2x1
jax: 0.10.0
libtpu: 0.0.40
codegen_flags: <defaults>
</compile_context>

<pallas_src>
import functools
import math

import jax
import jax.numpy as jnp
from jax.experimental import pallas as pl
from jax.experimental.pallas import tpu as pltpu

D_INPUT = 1024                     # d_input_dim (1*32*32)
H1, H2, H3 = 1024, 512, 256
TOTAL_COLS = H1 + H2 + H3          # 1792: per-row stride of the dropout counter space
DROP_P = 0.3
KEEP_SCALE = 1.0 / (1.0 - DROP_P)
NEG_SLOPE = 0.2
_DROP_THRESH_31 = int(DROP_P * float(2 ** 31))   # compare in non-negative int32 space


def _leaky_relu(x):
    return jnp.where(x >= 0.0, x, NEG_SLOPE * x)


def _hash_u32(x):
    # splitmix32-style finalizer: cheap stateless hash, pure VPU integer ops.
    x = x ^ (x >> 16)
    x = x * jnp.uint32(0x7FEB352D)
    x = x ^ (x >> 15)
    x = x * jnp.uint32(0x846CA68B)
    x = x ^ (x >> 16)
    return x


def _dropout(h, seed_u32, row0, col_offset):
    """Inverted dropout with a stateless hash keyed on (seed, global_row, feature)."""
    tb, n = h.shape
    rows = jax.lax.broadcasted_iota(jnp.int32, (tb, n), 0) + row0
    cols = jax.lax.broadcasted_iota(jnp.int32, (tb, n), 1) + col_offset
    idx = (rows * TOTAL_COLS + cols).astype(jnp.uint32)
    bits = _hash_u32(idx + seed_u32 * jnp.uint32(2654435761))
    # Use signed compare on the low 31 bits (avoids relying on unsigned vector compare).
    bits31 = (bits & jnp.uint32(0x7FFFFFFF)).astype(jnp.int32)
    keep = bits31 >= jnp.int32(_DROP_THRESH_31)
    return jnp.where(keep, h * KEEP_SCALE, 0.0)


def _disc_kernel(seed_ref,                       # scalar-prefetch (SMEM), shape (1,) int32
                 x_ref,                          # (TB, 1024) f32, batch-tiled
                 w1_ref, b1_ref,                 # (1024,1024) bf16, (1,1024) f32  (resident)
                 w2_ref, b2_ref,                 # (1024, 512) bf16, (1, 512) f32  (resident)
                 w3_ref, b3_ref,                 # ( 512, 256) bf16, (1, 256) f32  (resident)
                 w4_ref, b4_ref,                 # (1, 256) f32,     (1, 1)  f32   (resident)
                 y_ref):                         # (TB, 1) f32
    tb = x_ref.shape[0]
    row0 = pl.program_id(0) * tb                 # global batch offset of this tile
    seed_u32 = seed_ref[0].astype(jnp.uint32)

    x = x_ref[...]                                                       # (TB, 1024) f32

    # fc1 -> leaky_relu -> dropout   (bf16 MXU operands, f32 accumulation & elementwise)
    h = jnp.dot(x.astype(jnp.bfloat16), w1_ref[...],
                preferred_element_type=jnp.float32) + b1_ref[...]
    h = _dropout(_leaky_relu(h), seed_u32, row0, 0)                      # (TB, 1024)

    # fc2 -> leaky_relu -> dropout
    h = jnp.dot(h.astype(jnp.bfloat16), w2_ref[...],
                preferred_element_type=jnp.float32) + b2_ref[...]
    h = _dropout(_leaky_relu(h), seed_u32, row0, H1)                     # (TB, 512)

    # fc3 -> leaky_relu -> dropout
    h = jnp.dot(h.astype(jnp.bfloat16), w3_ref[...],
                preferred_element_type=jnp.float32) + b3_ref[...]
    h = _dropout(_leaky_relu(h), seed_u32, row0, H1 + H2)                # (TB, 256)

    # fc4 (out_features == 1): lane reduction on the VPU/XLU instead of an N=1 MXU matmul.
    y = jnp.sum(h * w4_ref[...], axis=-1, keepdims=True) + b4_ref[...]   # (TB, 1)
    y_ref[...] = y.astype(y_ref.dtype)


def _pick_batch_tile(batch):
    # 256 rows feeds the 2x256 MXU on v6e/v7x; small batches round up to a multiple of 8.
    if batch >= 256:
        return 256
    return max(8, ((batch + 7) // 8) * 8)


@jax.jit
def discriminator_mnist_forward(x, params, seed):
    """x: (B, 1, 32, 32) float32 NCHW.  Returns (B,) float32 logits (like y.view(-1))."""
    B = x.shape[0]
    x_flat = x.reshape(B, -1).astype(jnp.float32)                        # x.view(B, -1)
    w1, b1, w2, b2, w3, b3, w4_row, b4 = params

    tb = _pick_batch_tile(B)
    bp = pl.cdiv(B, tb) * tb
    if bp != B:
        x_flat = jnp.pad(x_flat, ((0, bp - B), (0, 0)))

    # MXU operands in bf16 (no-op if init_params already stored them that way).
    w1 = w1.astype(jnp.bfloat16)
    w2 = w2.astype(jnp.bfloat16)
    w3 = w3.astype(jnp.bfloat16)
    seed_arr = jnp.asarray([seed], dtype=jnp.int32)

    def resident(shape):
        nd = len(shape)
        return pl.BlockSpec(shape, lambda i, s, _nd=nd: (0,) * _nd)      # same block every step

    in_specs = [
        pl.BlockSpec((tb, D_INPUT), lambda i, s: (i, 0)),                # x: batch-tiled
        resident(w1.shape), resident(b1.shape),
        resident(w2.shape), resident(b2.shape),
        resident(w3.shape), resident(b3.shape),
        resident(w4_row.shape), resident(b4.shape),
    ]

    out = pl.pallas_call(
        _disc_kernel,
        out_shape=jax.ShapeDtypeStruct((bp, 1), jnp.float32),
        grid_spec=pltpu.PrefetchScalarGridSpec(
            num_scalar_prefetch=1,
            grid=(bp // tb,),
            in_specs=in_specs,
            out_specs=pl.BlockSpec((tb, 1), lambda i, s: (i, 0)),
        ),
        compiler_params=pltpu.CompilerParams(
            dimension_semantics=("parallel",),       # shards batch tiles across TCs on v7x
            vmem_limit_bytes=32 << 20,               # real footprint ~10 MiB; fits v7x's 64 MiB
        ),
    )(seed_arr, x_flat, w1, b1, w2, b2, w3, b3, w4_row, b4)

    return out[:B, 0]                                                    # y.view(-1)


def init_params(key):
    """Deterministic init mimicking nn.Linear default (uniform +-1/sqrt(fan_in)).
    Weights stored as (in_features, out_features); fc1..fc3 weights in bf16,
    fc4 stored as a (1, 256) f32 row (applied as a reduction in-kernel)."""
    dims = [(D_INPUT, H1), (H1, H2), (H2, H3), (H3, 1)]
    raw = []
    for fan_in, fan_out in dims:
        kw, kb, key = jax.random.split(key, 3)
        bound = 1.0 / math.sqrt(fan_in)
        w = jax.random.uniform(kw, (fan_in, fan_out), jnp.float32, -bound, bound)
        b = jax.random.uniform(kb, (1, fan_out), jnp.float32, -bound, bound)
        raw += [w, b]
    w1, b1, w2, b2, w3, b3, w4, b4 = raw
    return (w1.astype(jnp.bfloat16), b1,
            w2.astype(jnp.bfloat16), b2,
            w3.astype(jnp.bfloat16), b3,
            w4.reshape(1, H3), b4)


if __name__ == "__main__":
    key = jax.random.PRNGKey(0)
    kx, kp = jax.random.split(key)

    B = 8
    x = jax.random.normal(kx, (B, 1, 32, 32), dtype=jnp.float32)  # MNIST-like NCHW, 32*32=1024
    params = init_params(kp)

    # TODO(synk): dropout is always applied (F.dropout default training=True); add an
    # eval flag if this forward is ever used for inference.
    y = discriminator_mnist_forward(x, params, seed=1234)
    y = jax.block_until_ready(y)

    assert y.shape == (B,) and y.dtype == jnp.float32
    assert bool(jnp.all(jnp.isfinite(y)))
    print("KERNEL_OK")
</pallas_src>

<mosaic_0001>
module attributes {stable_mosaic.version = 11 : i64} {
  func.func @_disc_kernel(%arg0: i32, %arg1: memref<1xi32, #tpu.memory_space<smem>>, %arg2: memref<8x1024xf32, #tpu.memory_space<vmem>>, %arg3: memref<1024x1024xbf16, #tpu.memory_space<vmem>>, %arg4: memref<1x1024xf32, #tpu.memory_space<vmem>>, %arg5: memref<1024x512xbf16, #tpu.memory_space<vmem>>, %arg6: memref<1x512xf32, #tpu.memory_space<vmem>>, %arg7: memref<512x256xbf16, #tpu.memory_space<vmem>>, %arg8: memref<1x256xf32, #tpu.memory_space<vmem>>, %arg9: memref<1x256xf32, #tpu.memory_space<vmem>>, %arg10: memref<1x1xf32, #tpu.memory_space<vmem>>, %arg11: memref<8x1xf32, #tpu.memory_space<vmem>>) attributes {dimension_semantics = [#tpu.dimension_semantics<parallel>], iteration_bounds = array<i64: 1>, scalar_prefetch = 1 : i64, scratch_operands = 0 : i64, tpu.core_type = #tpu.core_type<tc>, window_params = [{transform_indices = @transform_0, window_bounds = array<i64: 8, 1024>}, {pipeline_mode = #tpu.pipeline_mode<synchronous>, transform_indices = @transform_1, window_bounds = array<i64: 1024, 1024>}, {pipeline_mode = #tpu.pipeline_mode<synchronous>, transform_indices = @transform_2, window_bounds = array<i64: 1, 1024>}, {pipeline_mode = #tpu.pipeline_mode<synchronous>, transform_indices = @transform_3, window_bounds = array<i64: 1024, 512>}, {pipeline_mode = #tpu.pipeline_mode<synchronous>, transform_indices = @transform_4, window_bounds = array<i64: 1, 512>}, {pipeline_mode = #tpu.pipeline_mode<synchronous>, transform_indices = @transform_5, window_bounds = array<i64: 512, 256>}, {pipeline_mode = #tpu.pipeline_mode<synchronous>, transform_indices = @transform_6, window_bounds = array<i64: 1, 256>}, {pipeline_mode = #tpu.pipeline_mode<synchronous>, transform_indices = @transform_7, window_bounds = array<i64: 1, 256>}, {pipeline_mode = #tpu.pipeline_mode<synchronous>, transform_indices = @transform_8, window_bounds = array<i64: 1, 1>}, {transform_indices = @transform_9, window_bounds = array<i64: 8, 1>}]} {
    %c8_i32 = arith.constant 8 : i32
    %0 = arith.muli %arg0, %c8_i32 : i32
    %c0 = arith.constant 0 : index
    %1 = memref.load %arg1[%c0] : memref<1xi32, #tpu.memory_space<smem>>
    %c0_0 = arith.constant 0 : index
    %c0_1 = arith.constant 0 : index
    %2 = vector.load %arg2[%c0_0, %c0_1] : memref<8x1024xf32, #tpu.memory_space<vmem>>, vector<8x1024xf32>
    %3 = arith.truncf %2 : vector<8x1024xf32> to vector<8x1024xbf16>
    %c0_2 = arith.constant 0 : index
    %c0_3 = arith.constant 0 : index
    %4 = vector.load %arg3[%c0_2, %c0_3] : memref<1024x1024xbf16, #tpu.memory_space<vmem>>, vector<1024x1024xbf16>
    %cst = arith.constant dense<0.000000e+00> : vector<8x1024xf32>
    %5 = tpu.matmul %3, %4, %cst {dimension_numbers = #tpu.dot_dimension_numbers<[1], [0], [0], [1], [0, 0, 1, 1], [], []>} : vector<8x1024xbf16>, vector<1024x1024xbf16>, vector<8x1024xf32> -> vector<8x1024xf32>
    %c0_4 = arith.constant 0 : index
    %c0_5 = arith.constant 0 : index
    %6 = vector.load %arg4[%c0_4, %c0_5] : memref<1x1024xf32, #tpu.memory_space<vmem>>, vector<1x1024xf32>
    %7 = vector.broadcast %6 : vector<1x1024xf32> to vector<8x1024xf32>
    %8 = arith.addf %5, %7 : vector<8x1024xf32>
    %cst_6 = arith.constant 0.000000e+00 : f32
    %9 = vector.broadcast %cst_6 : f32 to vector<8x1024xf32>
    %10 = arith.cmpf oge, %8, %9 : vector<8x1024xf32>
    %cst_7 = arith.constant 2.000000e-01 : f32
    %11 = vector.broadcast %cst_7 : f32 to vector<8x1024xf32>
    %12 = arith.mulf %11, %8 : vector<8x1024xf32>
    %13 = arith.select %10, %8, %12 : vector<8x1024xi1>, vector<8x1024xf32>
    %14 = tpu.iota {dimensions = array<i32: 0>} : vector<8x1024xi32>
    %15 = vector.broadcast %0 : i32 to vector<8x1024xi32>
    %16 = arith.addi %14, %15 : vector<8x1024xi32>
    %17 = tpu.iota {dimensions = array<i32: 1>} : vector<8x1024xi32>
    %c0_i32 = arith.constant 0 : i32
    %18 = vector.broadcast %c0_i32 : i32 to vector<8x1024xi32>
    %19 = arith.addi %17, %18 : vector<8x1024xi32>
    %c1792_i32 = arith.constant 1792 : i32
    %20 = vector.broadcast %c1792_i32 : i32 to vector<8x1024xi32>
    %21 = arith.muli %16, %20 : vector<8x1024xi32>
    %22 = arith.addi %21, %19 : vector<8x1024xi32>
    %c-1640531535_i32 = arith.constant -1640531535 : i32
    %23 = arith.muli %1, %c-1640531535_i32 : i32
    %24 = vector.broadcast %23 : i32 to vector<8x1024xi32>
    %25 = arith.addi %22, %24 : vector<8x1024xi32>
    %c16_i32 = arith.constant 16 : i32
    %26 = vector.broadcast %c16_i32 : i32 to vector<8x1024xi32>
    %27 = arith.shrui %25, %26 : vector<8x1024xi32>
    %28 = arith.xori %25, %27 : vector<8x1024xi32>
    %c2146121005_i32 = arith.constant 2146121005 : i32
    %29 = vector.broadcast %c2146121005_i32 : i32 to vector<8x1024xi32>
    %30 = arith.muli %28, %29 : vector<8x1024xi32>
    %c15_i32 = arith.constant 15 : i32
    %31 = vector.broadcast %c15_i32 : i32 to vector<8x1024xi32>
    %32 = arith.shrui %30, %31 : vector<8x1024xi32>
    %33 = arith.xori %30, %32 : vector<8x1024xi32>
    %c-2073254261_i32 = arith.constant -2073254261 : i32
    %34 = vector.broadcast %c-2073254261_i32 : i32 to vector<8x1024xi32>
    %35 = arith.muli %33, %34 : vector<8x1024xi32>
    %c16_i32_8 = arith.constant 16 : i32
    %36 = vector.broadcast %c16_i32_8 : i32 to vector<8x1024xi32>
    %37 = arith.shrui %35, %36 : vector<8x1024xi32>
    %38 = arith.xori %35, %37 : vector<8x1024xi32>
    %c2147483647_i32 = arith.constant 2147483647 : i32
    %39 = vector.broadcast %c2147483647_i32 : i32 to vector<8x1024xi32>
    %40 = arith.andi %38, %39 : vector<8x1024xi32>
    %c644245094_i32 = arith.constant 644245094 : i32
    %41 = vector.broadcast %c644245094_i32 : i32 to vector<8x1024xi32>
    %42 = arith.cmpi sge, %40, %41 : vector<8x1024xi32>
    %cst_9 = arith.constant 1.42857146 : f32
    %43 = vector.broadcast %cst_9 : f32 to vector<8x1024xf32>
    %44 = arith.mulf %13, %43 : vector<8x1024xf32>
    %cst_10 = arith.constant 0.000000e+00 : f32
    %45 = vector.broadcast %cst_10 : f32 to vector<8x1024xf32>
    %46 = arith.select %42, %44, %45 : vector<8x1024xi1>, vector<8x1024xf32>
    %47 = arith.truncf %46 : vector<8x1024xf32> to vector<8x1024xbf16>
    %c0_11 = arith.constant 0 : index
    %c0_12 = arith.constant 0 : index
    %48 = vector.load %arg5[%c0_11, %c0_12] : memref<1024x512xbf16, #tpu.memory_space<vmem>>, vector<1024x512xbf16>
    %cst_13 = arith.constant dense<0.000000e+00> : vector<8x512xf32>
    %49 = tpu.matmul %47, %48, %cst_13 {dimension_numbers = #tpu.dot_dimension_numbers<[1], [0], [0], [1], [0, 0, 1, 1], [], []>} : vector<8x1024xbf16>, vector<1024x512xbf16>, vector<8x512xf32> -> vector<8x512xf32>
    %c0_14 = arith.constant 0 : index
    %c0_15 = arith.constant 0 : index
    %50 = vector.load %arg6[%c0_14, %c0_15] : memref<1x512xf32, #tpu.memory_space<vmem>>, vector<1x512xf32>
    %51 = vector.broadcast %50 : vector<1x512xf32> to vector<8x512xf32>
    %52 = arith.addf %49, %51 : vector<8x512xf32>
    %cst_16 = arith.constant 0.000000e+00 : f32
    %53 = vector.broadcast %cst_16 : f32 to vector<8x512xf32>
    %54 = arith.cmpf oge, %52, %53 : vector<8x512xf32>
    %cst_17 = arith.constant 2.000000e-01 : f32
    %55 = vector.broadcast %cst_17 : f32 to vector<8x512xf32>
    %56 = arith.mulf %55, %52 : vector<8x512xf32>
    %57 = arith.select %54, %52, %56 : vector<8x512xi1>, vector<8x512xf32>
    %58 = tpu.iota {dimensions = array<i32: 0>} : vector<8x512xi32>
    %59 = vector.broadcast %0 : i32 to vector<8x512xi32>
    %60 = arith.addi %58, %59 : vector<8x512xi32>
    %61 = tpu.iota {dimensions = array<i32: 1>} : vector<8x512xi32>
    %c1024_i32 = arith.constant 1024 : i32
    %62 = vector.broadcast %c1024_i32 : i32 to vector<8x512xi32>
    %63 = arith.addi %61, %62 : vector<8x512xi32>
    %c1792_i32_18 = arith.constant 1792 : i32
    %64 = vector.broadcast %c1792_i32_18 : i32 to vector<8x512xi32>
    %65 = arith.muli %60, %64 : vector<8x512xi32>
    %66 = arith.addi %65, %63 : vector<8x512xi32>
    %c-1640531535_i32_19 = arith.constant -1640531535 : i32
    %67 = arith.muli %1, %c-1640531535_i32_19 : i32
    %68 = vector.broadcast %67 : i32 to vector<8x512xi32>
    %69 = arith.addi %66, %68 : vector<8x512xi32>
    %c16_i32_20 = arith.constant 16 : i32
    %70 = vector.broadcast %c16_i32_20 : i32 to vector<8x512xi32>
    %71 = arith.shrui %69, %70 : vector<8x512xi32>
    %72 = arith.xori %69, %71 : vector<8x512xi32>
    %c2146121005_i32_21 = arith.constant 2146121005 : i32
    %73 = vector.broadcast %c2146121005_i32_21 : i32 to vector<8x512xi32>
    %74 = arith.muli %72, %73 : vector<8x512xi32>
    %c15_i32_22 = arith.constant 15 : i32
    %75 = vector.broadcast %c15_i32_22 : i32 to vector<8x512xi32>
    %76 = arith.shrui %74, %75 : vector<8x512xi32>
    %77 = arith.xori %74, %76 : vector<8x512xi32>
    %c-2073254261_i32_23 = arith.constant -2073254261 : i32
    %78 = vector.broadcast %c-2073254261_i32_23 : i32 to vector<8x512xi32>
    %79 = arith.muli %77, %78 : vector<8x512xi32>
    %c16_i32_24 = arith.constant 16 : i32
    %80 = vector.broadcast %c16_i32_24 : i32 to vector<8x512xi32>
    %81 = arith.shrui %79, %80 : vector<8x512xi32>
    %82 = arith.xori %79, %81 : vector<8x512xi32>
    %c2147483647_i32_25 = arith.constant 2147483647 : i32
    %83 = vector.broadcast %c2147483647_i32_25 : i32 to vector<8x512xi32>
    %84 = arith.andi %82, %83 : vector<8x512xi32>
    %c644245094_i32_26 = arith.constant 644245094 : i32
    %85 = vector.broadcast %c644245094_i32_26 : i32 to vector<8x512xi32>
    %86 = arith.cmpi sge, %84, %85 : vector<8x512xi32>
    %cst_27 = arith.constant 1.42857146 : f32
    %87 = vector.broadcast %cst_27 : f32 to vector<8x512xf32>
    %88 = arith.mulf %57, %87 : vector<8x512xf32>
    %cst_28 = arith.constant 0.000000e+00 : f32
    %89 = vector.broadcast %cst_28 : f32 to vector<8x512xf32>
    %90 = arith.select %86, %88, %89 : vector<8x512xi1>, vector<8x512xf32>
    %91 = arith.truncf %90 : vector<8x512xf32> to vector<8x512xbf16>
    %c0_29 = arith.constant 0 : index
    %c0_30 = arith.constant 0 : index
    %92 = vector.load %arg7[%c0_29, %c0_30] : memref<512x256xbf16, #tpu.memory_space<vmem>>, vector<512x256xbf16>
    %cst_31 = arith.constant dense<0.000000e+00> : vector<8x256xf32>
    %93 = tpu.matmul %91, %92, %cst_31 {dimension_numbers = #tpu.dot_dimension_numbers<[1], [0], [0], [1], [0, 0, 1, 1], [], []>} : vector<8x512xbf16>, vector<512x256xbf16>, vector<8x256xf32> -> vector<8x256xf32>
    %c0_32 = arith.constant 0 : index
    %c0_33 = arith.constant 0 : index
    %94 = vector.load %arg8[%c0_32, %c0_33] : memref<1x256xf32, #tpu.memory_space<vmem>>, vector<1x256xf32>
    %95 = vector.broadcast %94 : vector<1x256xf32> to vector<8x256xf32>
    %96 = arith.addf %93, %95 : vector<8x256xf32>
    %cst_34 = arith.constant 0.000000e+00 : f32
    %97 = vector.broadcast %cst_34 : f32 to vector<8x256xf32>
    %98 = arith.cmpf oge, %96, %97 : vector<8x256xf32>
    %cst_35 = arith.constant 2.000000e-01 : f32
    %99 = vector.broadcast %cst_35 : f32 to vector<8x256xf32>
    %100 = arith.mulf %99, %96 : vector<8x256xf32>
    %101 = arith.select %98, %96, %100 : vector<8x256xi1>, vector<8x256xf32>
    %102 = tpu.iota {dimensions = array<i32: 0>} : vector<8x256xi32>
    %103 = vector.broadcast %0 : i32 to vector<8x256xi32>
    %104 = arith.addi %102, %103 : vector<8x256xi32>
    %105 = tpu.iota {dimensions = array<i32: 1>} : vector<8x256xi32>
    %c1536_i32 = arith.constant 1536 : i32
    %106 = vector.broadcast %c1536_i32 : i32 to vector<8x256xi32>
    %107 = arith.addi %105, %106 : vector<8x256xi32>
    %c1792_i32_36 = arith.constant 1792 : i32
    %108 = vector.broadcast %c1792_i32_36 : i32 to vector<8x256xi32>
    %109 = arith.muli %104, %108 : vector<8x256xi32>
    %110 = arith.addi %109, %107 : vector<8x256xi32>
    %c-1640531535_i32_37 = arith.constant -1640531535 : i32
    %111 = arith.muli %1, %c-1640531535_i32_37 : i32
    %112 = vector.broadcast %111 : i32 to vector<8x256xi32>
    %113 = arith.addi %110, %112 : vector<8x256xi32>
    %c16_i32_38 = arith.constant 16 : i32
    %114 = vector.broadcast %c16_i32_38 : i32 to vector<8x256xi32>
    %115 = arith.shrui %113, %114 : vector<8x256xi32>
    %116 = arith.xori %113, %115 : vector<8x256xi32>
    %c2146121005_i32_39 = arith.constant 2146121005 : i32
    %117 = vector.broadcast %c2146121005_i32_39 : i32 to vector<8x256xi32>
    %118 = arith.muli %116, %117 : vector<8x256xi32>
    %c15_i32_40 = arith.constant 15 : i32
    %119 = vector.broadcast %c15_i32_40 : i32 to vector<8x256xi32>
    %120 = arith.shrui %118, %119 : vector<8x256xi32>
    %121 = arith.xori %118, %120 : vector<8x256xi32>
    %c-2073254261_i32_41 = arith.constant -2073254261 : i32
    %122 = vector.broadcast %c-2073254261_i32_41 : i32 to vector<8x256xi32>
    %123 = arith.muli %121, %122 : vector<8x256xi32>
    %c16_i32_42 = arith.constant 16 : i32
    %124 = vector.broadcast %c16_i32_42 : i32 to vector<8x256xi32>
    %125 = arith.shrui %123, %124 : vector<8x256xi32>
    %126 = arith.xori %123, %125 : vector<8x256xi32>
    %c2147483647_i32_43 = arith.constant 2147483647 : i32
    %127 = vector.broadcast %c2147483647_i32_43 : i32 to vector<8x256xi32>
    %128 = arith.andi %126, %127 : vector<8x256xi32>
    %c644245094_i32_44 = arith.constant 644245094 : i32
    %129 = vector.broadcast %c644245094_i32_44 : i32 to vector<8x256xi32>
    %130 = arith.cmpi sge, %128, %129 : vector<8x256xi32>
    %cst_45 = arith.constant 1.42857146 : f32
    %131 = vector.broadcast %cst_45 : f32 to vector<8x256xf32>
    %132 = arith.mulf %101, %131 : vector<8x256xf32>
    %cst_46 = arith.constant 0.000000e+00 : f32
    %133 = vector.broadcast %cst_46 : f32 to vector<8x256xf32>
    %134 = arith.select %130, %132, %133 : vector<8x256xi1>, vector<8x256xf32>
    %c0_47 = arith.constant 0 : index
    %c0_48 = arith.constant 0 : index
    %135 = vector.load %arg9[%c0_47, %c0_48] : memref<1x256xf32, #tpu.memory_space<vmem>>, vector<1x256xf32>
    %136 = vector.broadcast %135 : vector<1x256xf32> to vector<8x256xf32>
    %137 = arith.mulf %134, %136 : vector<8x256xf32>
    %cst_49 = arith.constant dense<0.000000e+00> : vector<8xf32>
    %138 = vector.multi_reduction <add>, %137, %cst_49 [1] : vector<8x256xf32> to vector<8xf32>
    %139 = vector.shape_cast %138 : vector<8xf32> to vector<8x1xf32>
    %c0_50 = arith.constant 0 : index
    %c0_51 = arith.constant 0 : index
    %140 = vector.load %arg10[%c0_50, %c0_51] : memref<1x1xf32, #tpu.memory_space<vmem>>, vector<1x1xf32>
    %141 = vector.broadcast %140 : vector<1x1xf32> to vector<8x1xf32>
    %142 = arith.addf %139, %141 : vector<8x1xf32>
    %c0_52 = arith.constant 0 : index
    %c0_53 = arith.constant 0 : index
    %143 = vector.load %arg11[%c0_52, %c0_53] : memref<8x1xf32, #tpu.memory_space<vmem>>, vector<8x1xf32>
    tpu.vector_store %arg11[%c0_52, %c0_53], %142 {strides = array<i32>} : memref<8x1xf32, #tpu.memory_space<vmem>>, vector<8x1xf32>,
    return
  }
  func.func @transform_0(%arg0: i32, %arg1: memref<1xi32, #tpu.memory_space<smem>>) -> (i32, i32) {
    %c0_i32 = arith.constant 0 : i32
    %c0_i32_0 = arith.constant 0 : i32
    return %arg0, %c0_i32 : i32, i32
  }
  func.func @transform_1(%arg0: i32, %arg1: memref<1xi32, #tpu.memory_space<smem>>) -> (i32, i32) {
    %c0_i32 = arith.constant 0 : i32
    %c0_i32_0 = arith.constant 0 : i32
    %c0_i32_1 = arith.constant 0 : i32
    return %c0_i32, %c0_i32_0 : i32, i32
  }
  func.func @transform_2(%arg0: i32, %arg1: memref<1xi32, #tpu.memory_space<smem>>) -> (i32, i32) {
    %c0_i32 = arith.constant 0 : i32
    %c0_i32_0 = arith.constant 0 : i32
    %c0_i32_1 = arith.constant 0 : i32
    return %c0_i32, %c0_i32_0 : i32, i32
  }
  func.func @transform_3(%arg0: i32, %arg1: memref<1xi32, #tpu.memory_space<smem>>) -> (i32, i32) {
    %c0_i32 = arith.constant 0 : i32
    %c0_i32_0 = arith.constant 0 : i32
    %c0_i32_1 = arith.constant 0 : i32
    return %c0_i32, %c0_i32_0 : i32, i32
  }
  func.func @transform_4(%arg0: i32, %arg1: memref<1xi32, #tpu.memory_space<smem>>) -> (i32, i32) {
    %c0_i32 = arith.constant 0 : i32
    %c0_i32_0 = arith.constant 0 : i32
    %c0_i32_1 = arith.constant 0 : i32
    return %c0_i32, %c0_i32_0 : i32, i32
  }
  func.func @transform_5(%arg0: i32, %arg1: memref<1xi32, #tpu.memory_space<smem>>) -> (i32, i32) {
    %c0_i32 = arith.constant 0 : i32
    %c0_i32_0 = arith.constant 0 : i32
    %c0_i32_1 = arith.constant 0 : i32
    return %c0_i32, %c0_i32_0 : i32, i32
  }
  func.func @transform_6(%arg0: i32, %arg1: memref<1xi32, #tpu.memory_space<smem>>) -> (i32, i32) {
    %c0_i32 = arith.constant 0 : i32
    %c0_i32_0 = arith.constant 0 : i32
    %c0_i32_1 = arith.constant 0 : i32
    return %c0_i32, %c0_i32_0 : i32, i32
  }
  func.func @transform_7(%arg0: i32, %arg1: memref<1xi32, #tpu.memory_space<smem>>) -> (i32, i32) {
    %c0_i32 = arith.constant 0 : i32
    %c0_i32_0 = arith.constant 0 : i32
    %c0_i32_1 = arith.constant 0 : i32
    return %c0_i32, %c0_i32_0 : i32, i32
  }
  func.func @transform_8(%arg0: i32, %arg1: memref<1xi32, #tpu.memory_space<smem>>) -> (i32, i32) {
    %c0_i32 = arith.constant 0 : i32
    %c0_i32_0 = arith.constant 0 : i32
    %c0_i32_1 = arith.constant 0 : i32
    return %c0_i32, %c0_i32_0 : i32, i32
  }
  func.func @transform_9(%arg0: i32, %arg1: memref<1xi32, #tpu.memory_space<smem>>) -> (i32, i32) {
    %c0_i32 = arith.constant 0 : i32
    %c0_i32_0 = arith.constant 0 : i32
    return %arg0, %c0_i32 : i32, i32
  }
}

</mosaic_0001>

<llo_original>
// kernel: discriminator_mnist_forward.1
$region0: #{discriminator_mnist_forward.1}
  #allocation0 [shape = 'u32[]', space=smem, size = 0x4, offset = 0x4, fixed_abs, tag = 'smem constant byte address 0x4 - core index']
  #allocation1 [shape = 'u32[144,128]{1,0:T(1,128)}', space=vmem, size = 0x12000, scoped, tag = 'internal scratch']
  #allocation2 [shape = 's32[1]{0}', space=sflag, size = 0x4, scoped, tag = 'scoped memory for discriminator_mnist_forward.1']
  #allocation3 [shape = 's32[1]{0:T(128)S(6)}', space=smem, size = 0x200, scoped, tag = 'prefetched SMEM operand 0']
  #allocation4 [shape = 'f32[1,1]{1,0:T(1,128)S(1)}', space=vmem, size = 0x200, scoped, tag = 'scoped memory for discriminator_mnist_forward.1']
  %s0 = inlined_call_operand.<no memory space> [shape: s32[1], index: 0, kind: input, shape index: {}]
  %s1 = inlined_call_operand.vmem [shape: f32[8,1024], index: 1, kind: input, shape index: {}]
  %s2 = inlined_call_operand.hbm [shape: bf16[1024,1024], index: 2, kind: input, shape index: {}]
  %s3 = inlined_call_operand.hbm [shape: f32[1,1024], index: 3, kind: input, shape index: {}]
  %s4 = inlined_call_operand.hbm [shape: bf16[1024,512], index: 4, kind: input, shape index: {}]
  %s5 = inlined_call_operand.hbm [shape: f32[1,512], index: 5, kind: input, shape index: {}]
  %s6 = inlined_call_operand.hbm [shape: bf16[512,256], index: 6, kind: input, shape index: {}]
  %s7 = inlined_call_operand.hbm [shape: f32[1,256], index: 7, kind: input, shape index: {}]
  %s8 = inlined_call_operand.hbm [shape: f32[1,256], index: 8, kind: input, shape index: {}]
  %s9 = inlined_call_operand.<no memory space> [shape: f32[1,1], index: 9, kind: input, shape index: {}]
  %s10 = inlined_call_operand.vmem [shape: f32[8,1], index: 10, kind: output, shape index: {}]
  %s11 = sld [smem:[#allocation0]]
  $region74: #{discriminator_mnist_forward.1} parent=0
    _
  %s13 = ssub.s32 1, %s11
  %s14 = scalar_select 0, %s13, %s11
  %15 = sst [smem:[#allocation3]] %s0
  %v16 = vstv %s9
  %17 = vst [vmem:[#allocation4] sm:$0x1] %v16
  $region1: #{discriminator_mnist_forward.1} parent=0
    #allocation5 [shape = 'u8[2097152]{0}', space=vmem, size = 0x200000, scoped, tag = 'input window, operand 2, single buffered']
    #allocation6 [shape = 's32[1]{0}', space=sflag, size = 0x4, scoped, tag = 'scoped memory for discriminator_mnist_forward.1']
    #allocation7 [shape = 'u8[4096]{0}', space=vmem, size = 0x1000, scoped, tag = 'input window, operand 3, single buffered']
    #allocation8 [shape = 's32[1]{0}', space=sflag, size = 0x4, scoped, tag = 'scoped memory for discriminator_mnist_forward.1']
    #allocation9 [shape = 'u8[1048576]{0}', space=vmem, size = 0x100000, scoped, tag = 'input window, operand 4, single buffered']
    #allocation10 [shape = 'u8[2048]{0}', space=vmem, size = 0x800, scoped, tag = 'input window, operand 5, single buffered']
    #allocation11 [shape = 's32[1]{0}', space=sflag, size = 0x4, scoped, tag = 'scoped memory for discriminator_mnist_forward.1']
    #allocation12 [shape = 'u8[262144]{0}', space=vmem, size = 0x40000, scoped, tag = 'input window, operand 6, single buffered']
    #allocation13 [shape = 'u8[1024]{0}', space=vmem, size = 0x400, scoped, tag = 'input window, operand 7, single buffered']
    #allocation14 [shape = 's32[1]{0}', space=sflag, size = 0x4, scoped, tag = 'scoped memory for discriminator_mnist_forward.1']
    #allocation15 [shape = 'u8[1024]{0}', space=vmem, size = 0x400, scoped, tag = 'input window, operand 8, single buffered']
    %18 = vsyncpa [#allocation6], 0
    %19 = vsyncpa [#allocation8], 0
    %20 = vsyncpa [#allocation11], 0
    %21 = vsyncpa [#allocation14], 0
    // Predicated region
    $region2: #{discriminator_mnist_forward.1} parent=1 // pred_check
      _
    $region3: #{discriminator_mnist_forward.1} parent=1 // pred_check_branch
      %23 = sbr.rel (0) target = $region5
    $region4: #{discriminator_mnist_forward.1} parent=1 // pred_region
      _
    $region5: #{discriminator_mnist_forward.1} parent=1 // pred_fallthru
      _
    // Predicated region
    $region6: #{discriminator_mnist_forward.1} parent=1 // pred_check
      _
    $region7: #{discriminator_mnist_forward.1} parent=1 // pred_check_branch
      %25 = sbr.rel (0) target = $region9
    $region8: #{discriminator_mnist_forward.1} parent=1 // pred_region
      %s27 = ssub.s32 65536, 65536
      %28 = vsyncadd [#allocation6], %s27
      %s29 = sshll.u32 [#allocation5], 4
      %s30 = int_to_ptr.vmem [resolvable:$true] %s29
      %35 = dma.hbm_to_vmem [thread:$0]  %s2, 65536, %s30, [#allocation6], 512, 512, 32
    $region9: #{discriminator_mnist_forward.1} parent=1 // pred_fallthru
      _
    // Predicated region
    $region10: #{discriminator_mnist_forward.1} parent=1 // pred_check
      _
    $region11: #{discriminator_mnist_forward.1} parent=1 // pred_check_branch
      %37 = sbr.rel (0) target = $region13
    $region12: #{discriminator_mnist_forward.1} parent=1 // pred_region
      %s39 = ssub.s32 128, 128
      %40 = vsyncadd [#allocation8], %s39
      %s42 = sshll.u32 [#allocation7], 4
      %s43 = int_to_ptr.vmem [resolvable:$true] %s42
      %45 = dma.hbm_to_vmem [thread:$0]  %s3, 128, %s43, [#allocation8]
    $region13: #{discriminator_mnist_forward.1} parent=1 // pred_fallthru
      _
    // Predicated region
    $region14: #{discriminator_mnist_forward.1} parent=1 // pred_check
      _
    $region15: #{discriminator_mnist_forward.1} parent=1 // pred_check_branch
      %47 = sbr.rel (0) target = $region17
    $region16: #{discriminator_mnist_forward.1} parent=1 // pred_region
      %s49 = ssub.s32 32768, 32768
      %50 = vsyncadd [#allocation8], %s49
      %s51 = sshll.u32 [#allocation9], 4
      %s52 = int_to_ptr.vmem [resolvable:$true] %s51
      %57 = dma.hbm_to_vmem [thread:$0]  %s4, 32768, %s52, [#allocation8], 256, 256, 16
    $region17: #{discriminator_mnist_forward.1} parent=1 // pred_fallthru
      _
    // Predicated region
    $region18: #{discriminator_mnist_forward.1} parent=1 // pred_check
      _
    $region19: #{discriminator_mnist_forward.1} parent=1 // pred_check_branch
      %59 = sbr.rel (0) target = $region21
    $region20: #{discriminator_mnist_forward.1} parent=1 // pred_region
      %s61 = ssub.s32 64, 64
      %62 = vsyncadd [#allocation11], %s61
      %s64 = sshll.u32 [#allocation10], 4
      %s65 = int_to_ptr.vmem [resolvable:$true] %s64
      %67 = dma.hbm_to_vmem [thread:$0]  %s5, 64, %s65, [#allocation11]
    $region21: #{discriminator_mnist_forward.1} parent=1 // pred_fallthru
      _
    // Predicated region
    $region22: #{discriminator_mnist_forward.1} parent=1 // pred_check
      _
    $region23: #{discriminator_mnist_forward.1} parent=1 // pred_check_branch
      %69 = sbr.rel (0) target = $region25
    $region24: #{discriminator_mnist_forward.1} parent=1 // pred_region
      %s71 = ssub.s32 8192, 8192
      %72 = vsyncadd [#allocation11], %s71
      %s73 = sshll.u32 [#allocation12], 4
      %s74 = int_to_ptr.vmem [resolvable:$true] %s73
      %79 = dma.hbm_to_vmem [thread:$0]  %s6, 8192, %s74, [#allocation11], 128, 128, 8
    $region25: #{discriminator_mnist_forward.1} parent=1 // pred_fallthru
      _
    // Predicated region
    $region26: #{discriminator_mnist_forward.1} parent=1 // pred_check
      _
    $region27: #{discriminator_mnist_forward.1} parent=1 // pred_check_branch
      %81 = sbr.rel (0) target = $region29
    $region28: #{discriminator_mnist_forward.1} parent=1 // pred_region
      %s83 = ssub.s32 32, 32
      %84 = vsyncadd [#allocation14], %s83
      %s86 = sshll.u32 [#allocation13], 4
      %s87 = int_to_ptr.vmem [resolvable:$true] %s86
      %89 = dma.hbm_to_vmem [thread:$0]  %s7, 32, %s87, [#allocation14]
    $region29: #{discriminator_mnist_forward.1} parent=1 // pred_fallthru
      _
    // Predicated region
    $region30: #{discriminator_mnist_forward.1} parent=1 // pred_check
      _
    $region31: #{discriminator_mnist_forward.1} parent=1 // pred_check_branch
      %91 = sbr.rel (0) target = $region33
    $region32: #{discriminator_mnist_forward.1} parent=1 // pred_region
      %s93 = ssub.s32 32, 32
      %94 = vsyncadd [#allocation14], %s93
      %s96 = sshll.u32 [#allocation15], 4
      %s97 = int_to_ptr.vmem [resolvable:$true] %s96
      %99 = dma.hbm_to_vmem [thread:$0]  %s8, 32, %s97, [#allocation14]
    $region33: #{discriminator_mnist_forward.1} parent=1 // pred_fallthru
      _
    // Predicated region
    $region34: #{discriminator_mnist_forward.1} parent=1 // pred_check
      _
    $region35: #{discriminator_mnist_forward.1} parent=1 // pred_check_branch
      %101 = sbr.rel (0) target = $region37
    $region36: #{discriminator_mnist_forward.1} parent=1 // pred_region
      _
    $region37: #{discriminator_mnist_forward.1} parent=1 // pred_fallthru
      _
    // Predicated region
    $region38: #{discriminator_mnist_forward.1} parent=1 // pred_check
      _
    $region39: #{discriminator_mnist_forward.1} parent=1 // pred_check_branch
      %103 = sbr.rel (0) target = $region41
    $region40: #{discriminator_mnist_forward.1} parent=1 // pred_region
      %104 = dma.done [#allocation6], 65536
    $region41: #{discriminator_mnist_forward.1} parent=1 // pred_fallthru
      _
    // Predicated region
    $region42: #{discriminator_mnist_forward.1} parent=1 // pred_check
      _
    $region43: #{discriminator_mnist_forward.1} parent=1 // pred_check_branch
      %106 = sbr.rel (0) target = $region45
    $region44: #{discriminator_mnist_forward.1} parent=1 // pred_region
      %107 = dma.done [#allocation8], 128
    $region45: #{discriminator_mnist_forward.1} parent=1 // pred_fallthru
      _
    // Predicated region
    $region46: #{discriminator_mnist_forward.1} parent=1 // pred_check
      _
    $region47: #{discriminator_mnist_forward.1} parent=1 // pred_check_branch
      %109 = sbr.rel (0) target = $region49
    $region48: #{discriminator_mnist_forward.1} parent=1 // pred_region
      %110 = dma.done [#allocation8], 32768
    $region49: #{discriminator_mnist_forward.1} parent=1 // pred_fallthru
      _
    // Predicated region
    $region50: #{discriminator_mnist_forward.1} parent=1 // pred_check
      _
    $region51: #{discriminator_mnist_forward.1} parent=1 // pred_check_branch
      %112 = sbr.rel (0) target = $region53
    $region52: #{discriminator_mnist_forward.1} parent=1 // pred_region
      %113 = dma.done [#allocation11], 64
    $region53: #{discriminator_mnist_forward.1} parent=1 // pred_fallthru
      _
    // Predicated region
    $region54: #{discriminator_mnist_forward.1} parent=1 // pred_check
      _
    $region55: #{discriminator_mnist_forward.1} parent=1 // pred_check_branch
      %115 = sbr.rel (0) target = $region57
    $region56: #{discriminator_mnist_forward.1} parent=1 // pred_region
      %116 = dma.done [#allocation11], 8192
    $region57: #{discriminator_mnist_forward.1} parent=1 // pred_fallthru
      _
    // Predicated region
    $region58: #{discriminator_mnist_forward.1} parent=1 // pred_check
      _
    $region59: #{discriminator_mnist_forward.1} parent=1 // pred_check_branch
      %118 = sbr.rel (0) target = $region61
    $region60: #{discriminator_mnist_forward.1} parent=1 // pred_region
      %119 = dma.done [#allocation14], 32
    $region61: #{discriminator_mnist_forward.1} parent=1 // pred_fallthru
      _
    // Predicated region
    $region62: #{discriminator_mnist_forward.1} parent=1 // pred_check
      _
    $region63: #{discriminator_mnist_forward.1} parent=1 // pred_check_branch
      %121 = sbr.rel (0) target = $region65
    $region64: #{discriminator_mnist_forward.1} parent=1 // pred_region
      %122 = dma.done [#allocation14], 32
    $region65: #{discriminator_mnist_forward.1} parent=1 // pred_fallthru
      _
    %s123 = smul.u32 0, 8
    %s124 = sld [smem:[#allocation3]]
    %v125 = vld [vmem:[%s1] sm:$0xff]
    %v126 = vld [vmem:[%s1 + $0x8] sm:$0xff]
    %v127 = vld [vmem:[%s1 + $0x10] sm:$0xff]
    %v128 = vld [vmem:[%s1 + $0x18] sm:$0xff]
    %v129 = vld [vmem:[%s1 + $0x20] sm:$0xff]
    %v130 = vld [vmem:[%s1 + $0x28] sm:$0xff]
    %v131 = vld [vmem:[%s1 + $0x30] sm:$0xff]
    %v132 = vld [vmem:[%s1 + $0x38] sm:$0xff]
    %v133 = vpack.c.bf16 %v125, %v125
    %v134 = vpack.c.bf16 %v126, %v126
    %v135 = vpack.c.bf16 %v127, %v127
    %v136 = vpack.c.bf16 %v128, %v128
    %v137 = vpack.c.bf16 %v129, %v129
    %v138 = vpack.c.bf16 %v130, %v130
    %v139 = vpack.c.bf16 %v131, %v131
    %v140 = vpack.c.bf16 %v132, %v132
    %v141 = vld [vmem:[#allocation5] sm:$0xff]
    %v142 = vld [vmem:[#allocation5 + $0x8] sm:$0xff]
    %v143 = vld [vmem:[#allocation5 + $0x10] sm:$0xff]
    %v144 = vld [vmem:[#allocation5 + $0x18] sm:$0xff]
    %v145 = vld [vmem:[#allocation5 + $0x20] sm:$0xff]
    %v146 = vld [vmem:[#allocation5 + $0x28] sm:$0xff]
    %v147 = vld [vmem:[#allocation5 + $0x30] sm:$0xff]
    %v148 = vld [vmem:[#allocation5 + $0x38] sm:$0xff]
    %v149 = vld [vmem:[#allocation5 + $0x40] sm:$0xff]
    %v150 = vld [vmem:[#allocation5 + $0x48] sm:$0xff]
    %v151 = vld [vmem:[#allocation5 + $0x50] sm:$0xff]
    %v152 = vld [vmem:[#allocation5 + $0x58] sm:$0xff]
    %v153 = vld [vmem:[#allocation5 + $0x60] sm:$0xff]
    %v154 = vld [vmem:[#allocation5 + $0x68] sm:$0xff]
    %v155 = vld [vmem:[#allocation5 + $0x70] sm:$0xff]
    %v156 = vld [vmem:[#allocation5 + $0x78] sm:$0xff]
    %v157 = vld [vmem:[#allocation5 + $0x80] sm:$0xff]
    %v158 = vld [vmem:[#allocation5 + $0x88] sm:$0xff]
    %v159 = vld [vmem:[#allocation5 + $0x90] sm:$0xff]
    %v160 = vld [vmem:[#allocation5 + $0x98] sm:$0xff]
    %v161 = vld [vmem:[#allocation5 + $0xa0] sm:$0xff]
    %v162 = vld [vmem:[#allocation5 + $0xa8] sm:$0xff]
    %v163 = vld [vmem:[#allocation5 + $0xb0] sm:$0xff]
    %v164 = vld [vmem:[#allocation5 + $0xb8] sm:$0xff]
    %v165 = vld [vmem:[#allocation5 + $0xc0] sm:$0xff]
    %v166 = vld [vmem:[#allocation5 + $0xc8] sm:$0xff]
    %v167 = vld [vmem:[#allocation5 + $0xd0] sm:$0xff]
    %v168 = vld [vmem:[#allocation5 + $0xd8] sm:$0xff]
    %v169 = vld [vmem:[#allocation5 + $0xe0] sm:$0xff]
    %v170 = vld [vmem:[#allocation5 + $0xe8] sm:$0xff]
    %v171 = vld [vmem:[#allocation5 + $0xf0] sm:$0xff]
    %v172 = vld [vmem:[#allocation5 + $0xf8] sm:$0xff]
    %v173 = vld [vmem:[#allocation5 + $0x100] sm:$0xff]
    %v174 = vld [vmem:[#allocation5 + $0x108] sm:$0xff]
    %v175 = vld [vmem:[#allocation5 + $0x110] sm:$0xff]
    %v176 = vld [vmem:[#allocation5 + $0x118] sm:$0xff]
    %v177 = vld [vmem:[#allocation5 + $0x120] sm:$0xff]
    %v178 = vld [vmem:[#allocation5 + $0x128] sm:$0xff]
    %v179 = vld [vmem:[#allocation5 + $0x130] sm:$0xff]
    %v180 = vld [vmem:[#allocation5 + $0x138] sm:$0xff]
    %v181 = vld [vmem:[#allocation5 + $0x140] sm:$0xff]
    %v182 = vld [vmem:[#allocation5 + $0x148] sm:$0xff]
    %v183 = vld [vmem:[#allocation5 + $0x150] sm:$0xff]
    %v184 = vld [vmem:[#allocation5 + $0x158] sm:$0xff]
    %v185 = vld [vmem:[#allocation5 + $0x160] sm:$0xff]
    %v186 = vld [vmem:[#allocation5 + $0x168] sm:$0xff]
    %v187 = vld [vmem:[#allocation5 + $0x170] sm:$0xff]
    %v188 = vld [vmem:[#allocation5 + $0x178] sm:$0xff]
    %v189 = vld [vmem:[#allocation5 + $0x180] sm:$0xff]
    %v190 = vld [vmem:[#allocation5 + $0x188] sm:$0xff]
    %v191 = vld [vmem:[#allocation5 + $0x190] sm:$0xff]
    %v192 = vld [vmem:[#allocation5 + $0x198] sm:$0xff]
    %v193 = vld [vmem:[#allocation5 + $0x1a0] sm:$0xff]
    %v194 = vld [vmem:[#allocation5 + $0x1a8] sm:$0xff]
    %v195 = vld [vmem:[#allocation5 + $0x1b0] sm:$0xff]
    %v196 = vld [vmem:[#allocation5 + $0x1b8] sm:$0xff]
    %v197 = vld [vmem:[#allocation5 + $0x1c0] sm:$0xff]
    %v198 = vld [vmem:[#allocation5 + $0x1c8] sm:$0xff]
    %v199 = vld [vmem:[#allocation5 + $0x1d0] sm:$0xff]
    %v200 = vld [vmem:[#allocation5 + $0x1d8] sm:$0xff]
    %v201 = vld [vmem:[#allocation5 + $0x1e0] sm:$0xff]
    %v202 = vld [vmem:[#allocation5 + $0x1e8] sm:$0xff]
    %v203 = vld [vmem:[#allocation5 + $0x1f0] sm:$0xff]
    %v204 = vld [vmem:[#allocation5 + $0x1f8] sm:$0xff]
    %v205 = vld [vmem:[#allocation5 + $0x200] sm:$0xff]
    %v206 = vld [vmem:[#allocation5 + $0x208] sm:$0xff]
    %v207 = vld [vmem:[#allocation5 + $0x210] sm:$0xff]
    %v208 = vld [vmem:[#allocation5 + $0x218] sm:$0xff]
    %v209 = vld [vmem:[#allocation5 + $0x220] sm:$0xff]
    %v210 = vld [vmem:[#allocation5 + $0x228] sm:$0xff]
    %v211 = vld [vmem:[#allocation5 + $0x230] sm:$0xff]
    %v212 = vld [vmem:[#allocation5 + $0x238] sm:$0xff]
    %v213 = vld [vmem:[#allocation5 + $0x240] sm:$0xff]
    %v214 = vld [vmem:[#allocation5 + $0x248] sm:$0xff]
    %v215 = vld [vmem:[#allocation5 + $0x250] sm:$0xff]
    %v216 = vld [vmem:[#allocation5 + $0x258] sm:$0xff]
    %v217 = vld [vmem:[#allocation5 + $0x260] sm:$0xff]
    %v218 = vld [vmem:[#allocation5 + $0x268] sm:$0xff]
    %v219 = vld [vmem:[#allocation5 + $0x270] sm:$0xff]
    %v220 = vld [vmem:[#allocation5 + $0x278] sm:$0xff]
    %v221 = vld [vmem:[#allocation5 + $0x280] sm:$0xff]
    %v222 = vld [vmem:[#allocation5 + $0x288] sm:$0xff]
    %v223 = vld [vmem:[#allocation5 + $0x290] sm:$0xff]
    %v224 = vld [vmem:[#allocation5 + $0x298] sm:$0xff]
    %v225 = vld [vmem:[#allocation5 + $0x2a0] sm:$0xff]
    %v226 = vld [vmem:[#allocation5 + $0x2a8] sm:$0xff]
    %v227 = vld [vmem:[#allocation5 + $0x2b0] sm:$0xff]
    %v228 = vld [vmem:[#allocation5 + $0x2b8] sm:$0xff]
    %v229 = vld [vmem:[#allocation5 + $0x2c0] sm:$0xff]
    %v230 = vld [vmem:[#allocation5 + $0x2c8] sm:$0xff]
    %v231 = vld [vmem:[#allocation5 + $0x2d0] sm:$0xff]
    %v232 = vld [vmem:[#allocation5 + $0x2d8] sm:$0xff]
    %v233 = vld [vmem:[#allocation5 + $0x2e0] sm:$0xff]
    %v234 = vld [vmem:[#allocation5 + $0x2e8] sm:$0xff]
    %v235 = vld [vmem:[#allocation5 + $0x2f0] sm:$0xff]
    %v236 = vld [vmem:[#allocation5 + $0x2f8] sm:$0xff]
    %v237 = vld [vmem:[#allocation5 + $0x300] sm:$0xff]
    %v238 = vld [vmem:[#allocation5 + $0x308] sm:$0xff]
    %v239 = vld [vmem:[#allocation5 + $0x310] sm:$0xff]
    %v240 = vld [vmem:[#allocation5 + $0x318] sm:$0xff]
    %v241 = vld [vmem:[#allocation5 + $0x320] sm:$0xff]
    %v242 = vld [vmem:[#allocation5 + $0x328] sm:$0xff]
    %v243 = vld [vmem:[#allocation5 + $0x330] sm:$0xff]
    %v244 = vld [vmem:[#allocation5 + $0x338] sm:$0xff]
    %v245 = vld [vmem:[#allocation5 + $0x340] sm:$0xff]
    %v246 = vld [vmem:[#allocation5 + $0x348] sm:$0xff]
    %v247 = vld [vmem:[#allocation5 + $0x350] sm:$0xff]
    %v248 = vld [vmem:[#allocation5 + $0x358] sm:$0xff]
    %v249 = vld [vmem:[#allocation5 + $0x360] sm:$0xff]
    %v250 = vld [vmem:[#allocation5 + $0x368] sm:$0xff]
    %v251 = vld [vmem:[#allocation5 + $0x370] sm:$0xff]
    %v252 = vld [vmem:[#allocation5 + $0x378] sm:$0xff]
    %v253 = vld [vmem:[#allocation5 + $0x380] sm:$0xff]
    %v254 = vld [vmem:[#allocation5 + $0x388] sm:$0xff]
    %v255 = vld [vmem:[#allocation5 + $0x390] sm:$0xff]
    %v256 = vld [vmem:[#allocation5 + $0x398] sm:$0xff]
    %v257 = vld [vmem:[#allocation5 + $0x3a0] sm:$0xff]
    %v258 = vld [vmem:[#allocation5 + $0x3a8] sm:$0xff]
    %v259 = vld [vmem:[#allocation5 + $0x3b0] sm:$0xff]
    %v260 = vld [vmem:[#allocation5 + $0x3b8] sm:$0xff]
    %v261 = vld [vmem:[#allocation5 + $0x3c0] sm:$0xff]
    %v262 = vld [vmem:[#allocation5 + $0x3c8] sm:$0xff]
    %v263 = vld [vmem:[#allocation5 + $0x3d0] sm:$0xff]
    %v264 = vld [vmem:[#allocation5 + $0x3d8] sm:$0xff]
    %v265 = vld [vmem:[#allocation5 + $0x3e0] sm:$0xff]
    %v266 = vld [vmem:[#allocation5 + $0x3e8] sm:$0xff]
    %v267 = vld [vmem:[#allocation5 + $0x3f0] sm:$0xff]
    %v268 = vld [vmem:[#allocation5 + $0x3f8] sm:$0xff]
    %v269 = vld [vmem:[#allocation5 + $0x400] sm:$0xff]
    %v270 = vld [vmem:[#allocation5 + $0x408] sm:$0xff]
    %v271 = vld [vmem:[#allocation5 + $0x410] sm:$0xff]
    %v272 = vld [vmem:[#allocation5 + $0x418] sm:$0xff]
    %v273 = vld [vmem:[#allocation5 + $0x420] sm:$0xff]
    %v274 = vld [vmem:[#allocation5 + $0x428] sm:$0xff]
    %v275 = vld [vmem:[#allocation5 + $0x430] sm:$0xff]
    %v276 = vld [vmem:[#allocation5 + $0x438] sm:$0xff]
    %v277 = vld [vmem:[#allocation5 + $0x440] sm:$0xff]
    %v278 = vld [vmem:[#allocation5 + $0x448] sm:$0xff]
    %v279 = vld [vmem:[#allocation5 + $0x450] sm:$0xff]
    %v280 = vld [vmem:[#allocation5 + $0x458] sm:$0xff]
    %v281 = vld [vmem:[#allocation5 + $0x460] sm:$0xff]
    %v282 = vld [vmem:[#allocation5 + $0x468] sm:$0xff]
    %v283 = vld [vmem:[#allocation5 + $0x470] sm:$0xff]
    %v284 = vld [vmem:[#allocation5 + $0x478] sm:$0xff]
    %v285 = vld [vmem:[#allocation5 + $0x480] sm:$0xff]
    %v286 = vld [vmem:[#allocation5 + $0x488] sm:$0xff]
    %v287 = vld [vmem:[#allocation5 + $0x490] sm:$0xff]
    %v288 = vld [vmem:[#allocation5 + $0x498] sm:$0xff]
    %v289 = vld [vmem:[#allocation5 + $0x4a0] sm:$0xff]
    %v290 = vld [vmem:[#allocation5 + $0x4a8] sm:$0xff]
    %v291 = vld [vmem:[#allocation5 + $0x4b0] sm:$0xff]
    %v292 = vld [vmem:[#allocation5 + $0x4b8] sm:$0xff]
    %v293 = vld [vmem:[#allocation5 + $0x4c0] sm:$0xff]
    %v294 = vld [vmem:[#allocation5 + $0x4c8] sm:$0xff]
    %v295 = vld [vmem:[#allocation5 + $0x4d0] sm:$0xff]
    %v296 = vld [vmem:[#allocation5 + $0x4d8] sm:$0xff]
    %v297 = vld [vmem:[#allocation5 + $0x4e0] sm:$0xff]
    %v298 = vld [vmem:[#allocation5 + $0x4e8] sm:$0xff]
    %v299 = vld [vmem:[#allocation5 + $0x4f0] sm:$0xff]
    %v300 = vld [vmem:[#allocation5 + $0x4f8] sm:$0xff]
    %v301 = vld [vmem:[#allocation5 + $0x500] sm:$0xff]
    %v302 = vld [vmem:[#allocation5 + $0x508] sm:$0xff]
    %v303 = vld [vmem:[#allocation5 + $0x510] sm:$0xff]
    %v304 = vld [vmem:[#allocation5 + $0x518] sm:$0xff]
    %v305 = vld [vmem:[#allocation5 + $0x520] sm:$0xff]
    %v306 = vld [vmem:[#allocation5 + $0x528] sm:$0xff]
    %v307 = vld [vmem:[#allocation5 + $0x530] sm:$0xff]
    %v308 = vld [vmem:[#allocation5 + $0x538] sm:$0xff]
    %v309 = vld [vmem:[#allocation5 + $0x540] sm:$0xff]
    %v310 = vld [vmem:[#allocation5 + $0x548] sm:$0xff]
    %v311 = vld [vmem:[#allocation5 + $0x550] sm:$0xff]
    %v312 = vld [vmem:[#allocation5 + $0x558] sm:$0xff]
    %v313 = vld [vmem:[#allocation5 + $0x560] sm:$0xff]
    %v314 = vld [vmem:[#allocation5 + $0x568] sm:$0xff]
    %v315 = vld [vmem:[#allocation5 + $0x570] sm:$0xff]
    %v316 = vld [vmem:[#allocation5 + $0x578] sm:$0xff]
    %v317 = vld [vmem:[#allocation5 + $0x580] sm:$0xff]
    %v318 = vld [vmem:[#allocation5 + $0x588] sm:$0xff]
    %v319 = vld [vmem:[#allocation5 + $0x590] sm:$0xff]
    %v320 = vld [vmem:[#allocation5 + $0x598] sm:$0xff]
    %v321 = vld [vmem:[#allocation5 + $0x5a0] sm:$0xff]
    %v322 = vld [vmem:[#allocation5 + $0x5a8] sm:$0xff]
    %v323 = vld [vmem:[#allocation5 + $0x5b0] sm:$0xff]
    %v324 = vld [vmem:[#allocation5 + $0x5b8] sm:$0xff]
    %v325 = vld [vmem:[#allocation5 + $0x5c0] sm:$0xff]
    %v326 = vld [vmem:[#allocation5 + $0x5c8] sm:$0xff]
    %v327 = vld [vmem:[#allocation5 + $0x5d0] sm:$0xff]
    %v328 = vld [vmem:[#allocation5 + $0x5d8] sm:$0xff]
    %v329 = vld [vmem:[#allocation5 + $0x5e0] sm:$0xff]
    %v330 = vld [vmem:[#allocation5 + $0x5e8] sm:$0xff]
    %v331 = vld [vmem:[#allocation5 + $0x5f0] sm:$0xff]
    %v332 = vld [vmem:[#allocation5 + $0x5f8] sm:$0xff]
    %v333 = vld [vmem:[#allocation5 + $0x600] sm:$0xff]
    %v334 = vld [vmem:[#allocation5 + $0x608] sm:$0xff]
    %v335 = vld [vmem:[#allocation5 + $0x610] sm:$0xff]
    %v336 = vld [vmem:[#allocation5 + $0x618] sm:$0xff]
    %v337 = vld [vmem:[#allocation5 + $0x620] sm:$0xff]
    %v338 = vld [vmem:[#allocation5 + $0x628] sm:$0xff]
    %v339 = vld [vmem:[#allocation5 + $0x630] sm:$0xff]
    %v340 = vld [vmem:[#allocation5 + $0x638] sm:$0xff]
    %v341 = vld [vmem:[#allocation5 + $0x640] sm:$0xff]
    %v342 = vld [vmem:[#allocation5 + $0x648] sm:$0xff]
    %v343 = vld [vmem:[#allocation5 + $0x650] sm:$0xff]
    %v344 = vld [vmem:[#allocation5 + $0x658] sm:$0xff]
    %v345 = vld [vmem:[#allocation5 + $0x660] sm:$0xff]
    %v346 = vld [vmem:[#allocation5 + $0x668] sm:$0xff]
    %v347 = vld [vmem:[#allocation5 + $0x670] sm:$0xff]
    %v348 = vld [vmem:[#allocation5 + $0x678] sm:$0xff]
    %v349 = vld [vmem:[#allocation5 + $0x680] sm:$0xff]
    %v350 = vld [vmem:[#allocation5 + $0x688] sm:$0xff]
    %v351 = vld [vmem:[#allocation5 + $0x690] sm:$0xff]
    %v352 = vld [vmem:[#allocation5 + $0x698] sm:$0xff]
    %v353 = vld [vmem:[#allocation5 + $0x6a0] sm:$0xff]
    %v354 = vld [vmem:[#allocation5 + $0x6a8] sm:$0xff]
    %v355 = vld [vmem:[#allocation5 + $0x6b0] sm:$0xff]
    %v356 = vld [vmem:[#allocation5 + $0x6b8] sm:$0xff]
    %v357 = vld [vmem:[#allocation5 + $0x6c0] sm:$0xff]
    %v358 = vld [vmem:[#allocation5 + $0x6c8] sm:$0xff]
    %v359 = vld [vmem:[#allocation5 + $0x6d0] sm:$0xff]
    %v360 = vld [vmem:[#allocation5 + $0x6d8] sm:$0xff]
    %v361 = vld [vmem:[#allocation5 + $0x6e0] sm:$0xff]
    %v362 = vld [vmem:[#allocation5 + $0x6e8] sm:$0xff]
    %v363 = vld [vmem:[#allocation5 + $0x6f0] sm:$0xff]
    %v364 = vld [vmem:[#allocation5 + $0x6f8] sm:$0xff]
    %v365 = vld [vmem:[#allocation5 + $0x700] sm:$0xff]
    %v366 = vld [vmem:[#allocation5 + $0x708] sm:$0xff]
    %v367 = vld [vmem:[#allocation5 + $0x710] sm:$0xff]
    %v368 = vld [vmem:[#allocation5 + $0x718] sm:$0xff]
    %v369 = vld [vmem:[#allocation5 + $0x720] sm:$0xff]
    %v370 = vld [vmem:[#allocation5 + $0x728] sm:$0xff]
    %v371 = vld [vmem:[#allocation5 + $0x730] sm:$0xff]
    %v372 = vld [vmem:[#allocation5 + $0x738] sm:$0xff]
    %v373 = vld [vmem:[#allocation5 + $0x740] sm:$0xff]
    %v374 = vld [vmem:[#allocation5 + $0x748] sm:$0xff]
    %v375 = vld [vmem:[#allocation5 + $0x750] sm:$0xff]
    %v376 = vld [vmem:[#allocation5 + $0x758] sm:$0xff]
    %v377 = vld [vmem:[#allocation5 + $0x760] sm:$0xff]
    %v378 = vld [vmem:[#allocation5 + $0x768] sm:$0xff]
    %v379 = vld [vmem:[#allocation5 + $0x770] sm:$0xff]
    %v380 = vld [vmem:[#allocation5 + $0x778] sm:$0xff]
    %v381 = vld [vmem:[#allocation5 + $0x780] sm:$0xff]
    %v382 = vld [vmem:[#allocation5 + $0x788] sm:$0xff]
    %v383 = vld [vmem:[#allocation5 + $0x790] sm:$0xff]
    %v384 = vld [vmem:[#allocation5 + $0x798] sm:$0xff]
    %v385 = vld [vmem:[#allocation5 + $0x7a0] sm:$0xff]
    %v386 = vld [vmem:[#allocation5 + $0x7a8] sm:$0xff]
    %v387 = vld [vmem:[#allocation5 + $0x7b0] sm:$0xff]
    %v388 = vld [vmem:[#allocation5 + $0x7b8] sm:$0xff]
    %v389 = vld [vmem:[#allocation5 + $0x7c0] sm:$0xff]
    %v390 = vld [vmem:[#allocation5 + $0x7c8] sm:$0xff]
    %v391 = vld [vmem:[#allocation5 + $0x7d0] sm:$0xff]
    %v392 = vld [vmem:[#allocation5 + $0x7d8] sm:$0xff]
    %v393 = vld [vmem:[#allocation5 + $0x7e0] sm:$0xff]
    %v394 = vld [vmem:[#allocation5 + $0x7e8] sm:$0xff]
    %v395 = vld [vmem:[#allocation5 + $0x7f0] sm:$0xff]
    %v396 = vld [vmem:[#allocation5 + $0x7f8] sm:$0xff]
    %v397 = vld [vmem:[#allocation5 + $0x800] sm:$0xff]
    %v398 = vld [vmem:[#allocation5 + $0x808] sm:$0xff]
    %v399 = vld [vmem:[#allocation5 + $0x810] sm:$0xff]
    %v400 = vld [vmem:[#allocation5 + $0x818] sm:$0xff]
    %v401 = vld [vmem:[#allocation5 + $0x820] sm:$0xff]
    %v402 = vld [vmem:[#allocation5 + $0x828] sm:$0xff]
    %v403 = vld [vmem:[#allocation5 + $0x830] sm:$0xff]
    %v404 = vld [vmem:[#allocation5 + $0x838] sm:$0xff]
    %v405 = vld [vmem:[#allocation5 + $0x840] sm:$0xff]
    %v406 = vld [vmem:[#allocation5 + $0x848] sm:$0xff]
    %v407 = vld [vmem:[#allocation5 + $0x850] sm:$0xff]
    %v408 = vld [vmem:[#allocation5 + $0x858] sm:$0xff]
    %v409 = vld [vmem:[#allocation5 + $0x860] sm:$0xff]
    %v410 = vld [vmem:[#allocation5 + $0x868] sm:$0xff]
    %v411 = vld [vmem:[#allocation5 + $0x870] sm:$0xff]
    %v412 = vld [vmem:[#allocation5 + $0x878] sm:$0xff]
    %v413 = vld [vmem:[#allocation5 + $0x880] sm:$0xff]
    %v414 = vld [vmem:[#allocation5 + $0x888] sm:$0xff]
    %v415 = vld [vmem:[#allocation5 + $0x890] sm:$0xff]
    %v416 = vld [vmem:[#allocation5 + $0x898] sm:$0xff]
    %v417 = vld [vmem:[#allocation5 + $0x8a0] sm:$0xff]
    %v418 = vld [vmem:[#allocation5 + $0x8a8] sm:$0xff]
    %v419 = vld [vmem:[#allocation5 + $0x8b0] sm:$0xff]
    %v420 = vld [vmem:[#allocation5 + $0x8b8] sm:$0xff]
    %v421 = vld [vmem:[#allocation5 + $0x8c0] sm:$0xff]
    %v422 = vld [vmem:[#allocation5 + $0x8c8] sm:$0xff]
    %v423 = vld [vmem:[#allocation5 + $0x8d0] sm:$0xff]
    %v424 = vld [vmem:[#allocation5 + $0x8d8] sm:$0xff]
    %v425 = vld [vmem:[#allocation5 + $0x8e0] sm:$0xff]
    %v426 = vld [vmem:[#allocation5 + $0x8e8] sm:$0xff]
    %v427 = vld [vmem:[#allocation5 + $0x8f0] sm:$0xff]
    %v428 = vld [vmem:[#allocation5 + $0x8f8] sm:$0xff]
    %v429 = vld [vmem:[#allocation5 + $0x900] sm:$0xff]
    %v430 = vld [vmem:[#allocation5 + $0x908] sm:$0xff]
    %v431 = vld [vmem:[#allocation5 + $0x910] sm:$0xff]
    %v432 = vld [vmem:[#allocation5 + $0x918] sm:$0xff]
    %v433 = vld [vmem:[#allocation5 + $0x920] sm:$0xff]
    %v434 = vld [vmem:[#allocation5 + $0x928] sm:$0xff]
    %v435 = vld [vmem:[#allocation5 + $0x930] sm:$0xff]
    %v436 = vld [vmem:[#allocation5 + $0x938] sm:$0xff]
    %v437 = vld [vmem:[#allocation5 + $0x940] sm:$0xff]
    %v438 = vld [vmem:[#allocation5 + $0x948] sm:$0xff]
    %v439 = vld [vmem:[#allocation5 + $0x950] sm:$0xff]
    %v440 = vld [vmem:[#allocation5 + $0x958] sm:$0xff]
    %v441 = vld [vmem:[#allocation5 + $0x960] sm:$0xff]
    %v442 = vld [vmem:[#allocation5 + $0x968] sm:$0xff]
    %v443 = vld [vmem:[#allocation5 + $0x970] sm:$0xff]
    %v444 = vld [vmem:[#allocation5 + $0x978] sm:$0xff]
    %v445 = vld [vmem:[#allocation5 + $0x980] sm:$0xff]
    %v446 = vld [vmem:[#allocation5 + $0x988] sm:$0xff]
    %v447 = vld [vmem:[#allocation5 + $0x990] sm:$0xff]
    %v448 = vld [vmem:[#allocation5 + $0x998] sm:$0xff]
    %v449 = vld [vmem:[#allocation5 + $0x9a0] sm:$0xff]
    %v450 = vld [vmem:[#allocation5 + $0x9a8] sm:$0xff]
    %v451 = vld [vmem:[#allocation5 + $0x9b0] sm:$0xff]
    %v452 = vld [vmem:[#allocation5 + $0x9b8] sm:$0xff]
    %v453 = vld [vmem:[#allocation5 + $0x9c0] sm:$0xff]
    %v454 = vld [vmem:[#allocation5 + $0x9c8] sm:$0xff]
    %v455 = vld [vmem:[#allocation5 + $0x9d0] sm:$0xff]
    %v456 = vld [vmem:[#allocation5 + $0x9d8] sm:$0xff]
    %v457 = vld [vmem:[#allocation5 + $0x9e0] sm:$0xff]
    %v458 = vld [vmem:[#allocation5 + $0x9e8] sm:$0xff]
    %v459 = vld [vmem:[#allocation5 + $0x9f0] sm:$0xff]
    %v460 = vld [vmem:[#allocation5 + $0x9f8] sm:$0xff]
    %v461 = vld [vmem:[#allocation5 + $0xa00] sm:$0xff]
    %v462 = vld [vmem:[#allocation5 + $0xa08] sm:$0xff]
    %v463 = vld [vmem:[#allocation5 + $0xa10] sm:$0xff]
    %v464 = vld [vmem:[#allocation5 + $0xa18] sm:$0xff]
    %v465 = vld [vmem:[#allocation5 + $0xa20] sm:$0xff]
    %v466 = vld [vmem:[#allocation5 + $0xa28] sm:$0xff]
    %v467 = vld [vmem:[#allocation5 + $0xa30] sm:$0xff]
    %v468 = vld [vmem:[#allocation5 + $0xa38] sm:$0xff]
    %v469 = vld [vmem:[#allocation5 + $0xa40] sm:$0xff]
    %v470 = vld [vmem:[#allocation5 + $0xa48] sm:$0xff]
    %v471 = vld [vmem:[#allocation5 + $0xa50] sm:$0xff]
    %v472 = vld [vmem:[#allocation5 + $0xa58] sm:$0xff]
    %v473 = vld [vmem:[#allocation5 + $0xa60] sm:$0xff]
    %v474 = vld [vmem:[#allocation5 + $0xa68] sm:$0xff]
    %v475 = vld [vmem:[#allocation5 + $0xa70] sm:$0xff]
    %v476 = vld [vmem:[#allocation5 + $0xa78] sm:$0xff]
    %v477 = vld [vmem:[#allocation5 + $0xa80] sm:$0xff]
    %v478 = vld [vmem:[#allocation5 + $0xa88] sm:$0xff]
    %v479 = vld [vmem:[#allocation5 + $0xa90] sm:$0xff]
    %v480 = vld [vmem:[#allocation5 + $0xa98] sm:$0xff]
    %v481 = vld [vmem:[#allocation5 + $0xaa0] sm:$0xff]
    %v482 = vld [vmem:[#allocation5 + $0xaa8] sm:$0xff]
    %v483 = vld [vmem:[#allocation5 + $0xab0] sm:$0xff]
    %v484 = vld [vmem:[#allocation5 + $0xab8] sm:$0xff]
    %v485 = vld [vmem:[#allocation5 + $0xac0] sm:$0xff]
    %v486 = vld [vmem:[#allocation5 + $0xac8] sm:$0xff]
    %v487 = vld [vmem:[#allocation5 + $0xad0] sm:$0xff]
    %v488 = vld [vmem:[#allocation5 + $0xad8] sm:$0xff]
    %v489 = vld [vmem:[#allocation5 + $0xae0] sm:$0xff]
    %v490 = vld [vmem:[#allocation5 + $0xae8] sm:$0xff]
    %v491 = vld [vmem:[#allocation5 + $0xaf0] sm:$0xff]
    %v492 = vld [vmem:[#allocation5 + $0xaf8] sm:$0xff]
    %v493 = vld [vmem:[#allocation5 + $0xb00] sm:$0xff]
    %v494 = vld [vmem:[#allocation5 + $0xb08] sm:$0xff]
    %v495 = vld [vmem:[#allocation5 + $0xb10] sm:$0xff]
    %v496 = vld [vmem:[#allocation5 + $0xb18] sm:$0xff]
    %v497 = vld [vmem:[#allocation5 + $0xb20] sm:$0xff]
    %v498 = vld [vmem:[#allocation5 + $0xb28] sm:$0xff]
    %v499 = vld [vmem:[#allocation5 + $0xb30] sm:$0xff]
    %v500 = vld [vmem:[#allocation5 + $0xb38] sm:$0xff]
    %v501 = vld [vmem:[#allocation5 + $0xb40] sm:$0xff]
    %v502 = vld [vmem:[#allocation5 + $0xb48] sm:$0xff]
    %v503 = vld [vmem:[#allocation5 + $0xb50] sm:$0xff]
    %v504 = vld [vmem:[#allocation5 + $0xb58] sm:$0xff]
    %v505 = vld [vmem:[#allocation5 + $0xb60] sm:$0xff]
    %v506 = vld [vmem:[#allocation5 + $0xb68] sm:$0xff]
    %v507 = vld [vmem:[#allocation5 + $0xb70] sm:$0xff]
    %v508 = vld [vmem:[#allocation5 + $0xb78] sm:$0xff]
    %v509 = vld [vmem:[#allocation5 + $0xb80] sm:$0xff]
    %v510 = vld [vmem:[#allocation5 + $0xb88] sm:$0xff]
    %v511 = vld [vmem:[#allocation5 + $0xb90] sm:$0xff]
    %v512 = vld [vmem:[#allocation5 + $0xb98] sm:$0xff]
    %v513 = vld [vmem:[#allocation5 + $0xba0] sm:$0xff]
    %v514 = vld [vmem:[#allocation5 + $0xba8] sm:$0xff]
    %v515 = vld [vmem:[#allocation5 + $0xbb0] sm:$0xff]
    %v516 = vld [vmem:[#allocation5 + $0xbb8] sm:$0xff]
    %v517 = vld [vmem:[#allocation5 + $0xbc0] sm:$0xff]
    %v518 = vld [vmem:[#allocation5 + $0xbc8] sm:$0xff]
    %v519 = vld [vmem:[#allocation5 + $0xbd0] sm:$0xff]
    %v520 = vld [vmem:[#allocation5 + $0xbd8] sm:$0xff]
    %v521 = vld [vmem:[#allocation5 + $0xbe0] sm:$0xff]
    %v522 = vld [vmem:[#allocation5 + $0xbe8] sm:$0xff]
    %v523 = vld [vmem:[#allocation5 + $0xbf0] sm:$0xff]
    %v524 = vld [vmem:[#allocation5 + $0xbf8] sm:$0xff]
    %v525 = vld [vmem:[#allocation5 + $0xc00] sm:$0xff]
    %v526 = vld [vmem:[#allocation5 + $0xc08] sm:$0xff]
    %v527 = vld [vmem:[#allocation5 + $0xc10] sm:$0xff]
    %v528 = vld [vmem:[#allocation5 + $0xc18] sm:$0xff]
    %v529 = vld [vmem:[#allocation5 + $0xc20] sm:$0xff]
    %v530 = vld [vmem:[#allocation5 + $0xc28] sm:$0xff]
    %v531 = vld [vmem:[#allocation5 + $0xc30] sm:$0xff]
    %v532 = vld [vmem:[#allocation5 + $0xc38] sm:$0xff]
    %v533 = vld [vmem:[#allocation5 + $0xc40] sm:$0xff]
    %v534 = vld [vmem:[#allocation5 + $0xc48] sm:$0xff]
    %v535 = vld [vmem:[#allocation5 + $0xc50] sm:$0xff]
    %v536 = vld [vmem:[#allocation5 + $0xc58] sm:$0xff]
    %v537 = vld [vmem:[#allocation5 + $0xc60] sm:$0xff]
    %v538 = vld [vmem:[#allocation5 + $0xc68] sm:$0xff]
    %v539 = vld [vmem:[#allocation5 + $0xc70] sm:$0xff]
    %v540 = vld [vmem:[#allocation5 + $0xc78] sm:$0xff]
    %v541 = vld [vmem:[#allocation5 + $0xc80] sm:$0xff]
    %v542 = vld [vmem:[#allocation5 + $0xc88] sm:$0xff]
    %v543 = vld [vmem:[#allocation5 + $0xc90] sm:$0xff]
    %v544 = vld [vmem:[#allocation5 + $0xc98] sm:$0xff]
    %v545 = vld [vmem:[#allocation5 + $0xca0] sm:$0xff]
    %v546 = vld [vmem:[#allocation5 + $0xca8] sm:$0xff]
    %v547 = vld [vmem:[#allocation5 + $0xcb0] sm:$0xff]
    %v548 = vld [vmem:[#allocation5 + $0xcb8] sm:$0xff]
    %v549 = vld [vmem:[#allocation5 + $0xcc0] sm:$0xff]
    %v550 = vld [vmem:[#allocation5 + $0xcc8] sm:$0xff]
    %v551 = vld [vmem:[#allocation5 + $0xcd0] sm:$0xff]
    %v552 = vld [vmem:[#allocation5 + $0xcd8] sm:$0xff]
    %v553 = vld [vmem:[#allocation5 + $0xce0] sm:$0xff]
    %v554 = vld [vmem:[#allocation5 + $0xce8] sm:$0xff]
    %v555 = vld [vmem:[#allocation5 + $0xcf0] sm:$0xff]
    %v556 = vld [vmem:[#allocation5 + $0xcf8] sm:$0xff]
    %v557 = vld [vmem:[#allocation5 + $0xd00] sm:$0xff]
    %v558 = vld [vmem:[#allocation5 + $0xd08] sm:$0xff]
    %v559 = vld [vmem:[#allocation5 + $0xd10] sm:$0xff]
    %v560 = vld [vmem:[#allocation5 + $0xd18] sm:$0xff]
    %v561 = vld [vmem:[#allocation5 + $0xd20] sm:$0xff]
    %v562 = vld [vmem:[#allocation5 + $0xd28] sm:$0xff]
    %v563 = vld [vmem:[#allocation5 + $0xd30] sm:$0xff]
    %v564 = vld [vmem:[#allocation5 + $0xd38] sm:$0xff]
    %v565 = vld [vmem:[#allocation5 + $0xd40] sm:$0xff]
    %v566 = vld [vmem:[#allocation5 + $0xd48] sm:$0xff]
    %v567 = vld [vmem:[#allocation5 + $0xd50] sm:$0xff]
    %v568 = vld [vmem:[#allocation5 + $0xd58] sm:$0xff]
    %v569 = vld [vmem:[#allocation5 + $0xd60] sm:$0xff]
    %v570 = vld [vmem:[#allocation5 + $0xd68] sm:$0xff]
    %v571 = vld [vmem:[#allocation5 + $0xd70] sm:$0xff]
    %v572 = vld [vmem:[#allocation5 + $0xd78] sm:$0xff]
    %v573 = vld [vmem:[#allocation5 + $0xd80] sm:$0xff]
    %v574 = vld [vmem:[#allocation5 + $0xd88] sm:$0xff]
    %v575 = vld [vmem:[#allocation5 + $0xd90] sm:$0xff]
    %v576 = vld [vmem:[#allocation5 + $0xd98] sm:$0xff]
    %v577 = vld [vmem:[#allocation5 + $0xda0] sm:$0xff]
    %v578 = vld [vmem:[#allocation5 + $0xda8] sm:$0xff]
    %v579 = vld [vmem:[#allocation5 + $0xdb0] sm:$0xff]
    %v580 = vld [vmem:[#allocation5 + $0xdb8] sm:$0xff]
    %v581 = vld [vmem:[#allocation5 + $0xdc0] sm:$0xff]
    %v582 = vld [vmem:[#allocation5 + $0xdc8] sm:$0xff]
    %v583 = vld [vmem:[#allocation5 + $0xdd0] sm:$0xff]
    %v584 = vld [vmem:[#allocation5 + $0xdd8] sm:$0xff]
    %v585 = vld [vmem:[#allocation5 + $0xde0] sm:$0xff]
    %v586 = vld [vmem:[#allocation5 + $0xde8] sm:$0xff]
    %v587 = vld [vmem:[#allocation5 + $0xdf0] sm:$0xff]
    %v588 = vld [vmem:[#allocation5 + $0xdf8] sm:$0xff]
    %v589 = vld [vmem:[#allocation5 + $0xe00] sm:$0xff]
    %v590 = vld [vmem:[#allocation5 + $0xe08] sm:$0xff]
    %v591 = vld [vmem:[#allocation5 + $0xe10] sm:$0xff]
    %v592 = vld [vmem:[#allocation5 + $0xe18] sm:$0xff]
    %v593 = vld [vmem:[#allocation5 + $0xe20] sm:$0xff]
    %v594 = vld [vmem:[#allocation5 + $0xe28] sm:$0xff]
    %v595 = vld [vmem:[#allocation5 + $0xe30] sm:$0xff]
    %v596 = vld [vmem:[#allocation5 + $0xe38] sm:$0xff]
    %v597 = vld [vmem:[#allocation5 + $0xe40] sm:$0xff]
    %v598 = vld [vmem:[#allocation5 + $0xe48] sm:$0xff]
    %v599 = vld [vmem:[#allocation5 + $0xe50] sm:$0xff]
    %v600 = vld [vmem:[#allocation5 + $0xe58] sm:$0xff]
    %v601 = vld [vmem:[#allocation5 + $0xe60] sm:$0xff]
    %v602 = vld [vmem:[#allocation5 + $0xe68] sm:$0xff]
    %v603 = vld [vmem:[#allocation5 + $0xe70] sm:$0xff]
    %v604 = vld [vmem:[#allocation5 + $0xe78] sm:$0xff]
    %v605 = vld [vmem:[#allocation5 + $0xe80] sm:$0xff]
    %v606 = vld [vmem:[#allocation5 + $0xe88] sm:$0xff]
    %v607 = vld [vmem:[#allocation5 + $0xe90] sm:$0xff]
    %v608 = vld [vmem:[#allocation5 + $0xe98] sm:$0xff]
    %v609 = vld [vmem:[#allocation5 + $0xea0] sm:$0xff]
    %v610 = vld [vmem:[#allocation5 + $0xea8] sm:$0xff]
    %v611 = vld [vmem:[#allocation5 + $0xeb0] sm:$0xff]
    %v612 = vld [vmem:[#allocation5 + $0xeb8] sm:$0xff]
    %v613 = vld [vmem:[#allocation5 + $0xec0] sm:$0xff]
    %v614 = vld [vmem:[#allocation5 + $0xec8] sm:$0xff]
    %v615 = vld [vmem:[#allocation5 + $0xed0] sm:$0xff]
    %v616 = vld [vmem:[#allocation5 + $0xed8] sm:$0xff]
    %v617 = vld [vmem:[#allocation5 + $0xee0] sm:$0xff]
    %v618 = vld [vmem:[#allocation5 + $0xee8] sm:$0xff]
    %v619 = vld [vmem:[#allocation5 + $0xef0] sm:$0xff]
    %v620 = vld [vmem:[#allocation5 + $0xef8] sm:$0xff]
    %v621 = vld [vmem:[#allocation5 + $0xf00] sm:$0xff]
    %v622 = vld [vmem:[#allocation5 + $0xf08] sm:$0xff]
    %v623 = vld [vmem:[#allocation5 + $0xf10] sm:$0xff]
    %v624 = vld [vmem:[#allocation5 + $0xf18] sm:$0xff]
    %v625 = vld [vmem:[#allocation5 + $0xf20] sm:$0xff]
    %v626 = vld [vmem:[#allocation5 + $0xf28] sm:$0xff]
    %v627 = vld [vmem:[#allocation5 + $0xf30] sm:$0xff]
    %v628 = vld [vmem:[#allocation5 + $0xf38] sm:$0xff]
    %v629 = vld [vmem:[#allocation5 + $0xf40] sm:$0xff]
    %v630 = vld [vmem:[#allocation5 + $0xf48] sm:$0xff]
    %v631 = vld [vmem:[#allocation5 + $0xf50] sm:$0xff]
    %v632 = vld [vmem:[#allocation5 + $0xf58] sm:$0xff]
    %v633 = vld [vmem:[#allocation5 + $0xf60] sm:$0xff]
    %v634 = vld [vmem:[#allocation5 + $0xf68] sm:$0xff]
    %v635 = vld [vmem:[#allocation5 + $0xf70] sm:$0xff]
    %v636 = vld [vmem:[#allocation5 + $0xf78] sm:$0xff]
    %v637 = vld [vmem:[#allocation5 + $0xf80] sm:$0xff]
    %v638 = vld [vmem:[#allocation5 + $0xf88] sm:$0xff]
    %v639 = vld [vmem:[#allocation5 + $0xf90] sm:$0xff]
    %v640 = vld [vmem:[#allocation5 + $0xf98] sm:$0xff]
    %v641 = vld [vmem:[#allocation5 + $0xfa0] sm:$0xff]
    %v642 = vld [vmem:[#allocation5 + $0xfa8] sm:$0xff]
    %v643 = vld [vmem:[#allocation5 + $0xfb0] sm:$0xff]
    %v644 = vld [vmem:[#allocation5 + $0xfb8] sm:$0xff]
    %v645 = vld [vmem:[#allocation5 + $0xfc0] sm:$0xff]
    %v646 = vld [vmem:[#allocation5 + $0xfc8] sm:$0xff]
    %v647 = vld [vmem:[#allocation5 + $0xfd0] sm:$0xff]
    %v648 = vld [vmem:[#allocation5 + $0xfd8] sm:$0xff]
    %v649 = vld [vmem:[#allocation5 + $0xfe0] sm:$0xff]
    %v650 = vld [vmem:[#allocation5 + $0xfe8] sm:$0xff]
    %v651 = vld [vmem:[#allocation5 + $0xff0] sm:$0xff]
    %v652 = vld [vmem:[#allocation5 + $0xff8] sm:$0xff]
    %v653 = vld [vmem:[#allocation7] sm:$0xff]
    %v655 = vlaneseq
    %v656 = vshrl.u32 %v655, 7
    %v657 = vsub.s32 0, %v656
    %v658 = vrot.slane %v653, %v657
    %v659 = vlaneseq
    %v660 = vshrl.u32 %v659, 7
    %v661 = vsub.s32 1, %v660
    %v662 = vrot.slane %v653, %v661
    %v663 = vlaneseq
    %v664 = vshrl.u32 %v663, 7
    %v665 = vsub.s32 2, %v664
    %v666 = vrot.slane %v653, %v665
    %v667 = vlaneseq
    %v668 = vshrl.u32 %v667, 7
    %v669 = vsub.s32 3, %v668
    %v670 = vrot.slane %v653, %v669
    %v671 = vlaneseq
    %v672 = vshrl.u32 %v671, 7
    %v673 = vsub.s32 4, %v672
    %v674 = vrot.slane %v653, %v673
    %v675 = vlaneseq
    %v676 = vshrl.u32 %v675, 7
    %v677 = vsub.s32 5, %v676
    %v678 = vrot.slane %v653, %v677
    %v679 = vlaneseq
    %v680 = vshrl.u32 %v679, 7
    %v681 = vsub.s32 6, %v680
    %v682 = vrot.slane %v653, %v681
    %v683 = vlaneseq
    %v684 = vshrl.u32 %v683, 7
    %v685 = vsub.s32 7, %v684
    %v686 = vrot.slane %v653, %v685
    %v1207 = vunpack.c.l.b16 %v141
    %v1208 = vunpack.c.h.b16 %v141
    %v1209 = vunpack.c.l.b16 %v142
    %v1210 = vunpack.c.h.b16 %v142
    %v1211 = vunpack.c.l.b16 %v143
    %v1212 = vunpack.c.h.b16 %v143
    %v1213 = vunpack.c.l.b16 %v144
    %v1214 = vunpack.c.h.b16 %v144
    %v1215 = vunpack.c.l.b16 %v145
    %v1216 = vunpack.c.h.b16 %v145
    %v1217 = vunpack.c.l.b16 %v146
    %v1218 = vunpack.c.h.b16 %v146
    %v1219 = vunpack.c.l.b16 %v147
    %v1220 = vunpack.c.h.b16 %v147
    %v1221 = vunpack.c.l.b16 %v148
    %v1222 = vunpack.c.h.b16 %v148
    %v1223 = vunpack.c.l.b16 %v149
    %v1224 = vunpack.c.h.b16 %v149
    %v1225 = vunpack.c.l.b16 %v150
    %v1226 = vunpack.c.h.b16 %v150
    %v1227 = vunpack.c.l.b16 %v151
    %v1228 = vunpack.c.h.b16 %v151
    %v1229 = vunpack.c.l.b16 %v152
    %v1230 = vunpack.c.h.b16 %v152
    %v1231 = vunpack.c.l.b16 %v153
    %v1232 = vunpack.c.h.b16 %v153
    %v1233 = vunpack.c.l.b16 %v154
    %v1234 = vunpack.c.h.b16 %v154
    %v1235 = vunpack.c.l.b16 %v155
    %v1236 = vunpack.c.h.b16 %v155
    %v1237 = vunpack.c.l.b16 %v156
    %v1238 = vunpack.c.h.b16 %v156
    %v1239 = vunpack.c.l.b16 %v157
    %v1240 = vunpack.c.h.b16 %v157
    %v1241 = vunpack.c.l.b16 %v158
    %v1242 = vunpack.c.h.b16 %v158
    %v1243 = vunpack.c.l.b16 %v159
    %v1244 = vunpack.c.h.b16 %v159
    %v1245 = vunpack.c.l.b16 %v160
    %v1246 = vunpack.c.h.b16 %v160
    %v1247 = vunpack.c.l.b16 %v161
    %v1248 = vunpack.c.h.b16 %v161
    %v1249 = vunpack.c.l.b16 %v162
    %v1250 = vunpack.c.h.b16 %v162
    %v1251 = vunpack.c.l.b16 %v163
    %v1252 = vunpack.c.h.b16 %v163
    %v1253 = vunpack.c.l.b16 %v164
    %v1254 = vunpack.c.h.b16 %v164
    %v1255 = vunpack.c.l.b16 %v165
    %v1256 = vunpack.c.h.b16 %v165
    %v1257 = vunpack.c.l.b16 %v166
    %v1258 = vunpack.c.h.b16 %v166
    %v1259 = vunpack.c.l.b16 %v167
    %v1260 = vunpack.c.h.b16 %v167
    %v1261 = vunpack.c.l.b16 %v168
    %v1262 = vunpack.c.h.b16 %v168
    %v1263 = vunpack.c.l.b16 %v169
    %v1264 = vunpack.c.h.b16 %v169
    %v1265 = vunpack.c.l.b16 %v170
    %v1266 = vunpack.c.h.b16 %v170
    %v1267 = vunpack.c.l.b16 %v171
    %v1268 = vunpack.c.h.b16 %v171
    %v1269 = vunpack.c.l.b16 %v172
    %v1270 = vunpack.c.h.b16 %v172
    %v1271 = vunpack.c.l.b16 %v173
    %v1272 = vunpack.c.h.b16 %v173
    %v1273 = vunpack.c.l.b16 %v174
    %v1274 = vunpack.c.h.b16 %v174
    %v1275 = vunpack.c.l.b16 %v175
    %v1276 = vunpack.c.h.b16 %v175
    %v1277 = vunpack.c.l.b16 %v176
    %v1278 = vunpack.c.h.b16 %v176
    %v1279 = vunpack.c.l.b16 %v177
    %v1280 = vunpack.c.h.b16 %v177
    %v1281 = vunpack.c.l.b16 %v178
    %v1282 = vunpack.c.h.b16 %v178
    %v1283 = vunpack.c.l.b16 %v179
    %v1284 = vunpack.c.h.b16 %v179
    %v1285 = vunpack.c.l.b16 %v180
    %v1286 = vunpack.c.h.b16 %v180
    %v1287 = vunpack.c.l.b16 %v181
    %v1288 = vunpack.c.h.b16 %v181
    %v1289 = vunpack.c.l.b16 %v182
    %v1290 = vunpack.c.h.b16 %v182
    %v1291 = vunpack.c.l.b16 %v183
    %v1292 = vunpack.c.h.b16 %v183
    %v1293 = vunpack.c.l.b16 %v184
    %v1294 = vunpack.c.h.b16 %v184
    %v1295 = vunpack.c.l.b16 %v185
    %v1296 = vunpack.c.h.b16 %v185
    %v1297 = vunpack.c.l.b16 %v186
    %v1298 = vunpack.c.h.b16 %v186
    %v1299 = vunpack.c.l.b16 %v187
    %v1300 = vunpack.c.h.b16 %v187
    %v1301 = vunpack.c.l.b16 %v188
    %v1302 = vunpack.c.h.b16 %v188
    %v1303 = vunpack.c.l.b16 %v189
    %v1304 = vunpack.c.h.b16 %v189
    %v1305 = vunpack.c.l.b16 %v190
    %v1306 = vunpack.c.h.b16 %v190
    %v1307 = vunpack.c.l.b16 %v191
    %v1308 = vunpack.c.h.b16 %v191
    %v1309 = vunpack.c.l.b16 %v192
    %v1310 = vunpack.c.h.b16 %v192
    %v1311 = vunpack.c.l.b16 %v193
    %v1312 = vunpack.c.h.b16 %v193
    %v1313 = vunpack.c.l.b16 %v194
    %v1314 = vunpack.c.h.b16 %v194
    %v1315 = vunpack.c.l.b16 %v195
    %v1316 = vunpack.c.h.b16 %v195
    %v1317 = vunpack.c.l.b16 %v196
    %v1318 = vunpack.c.h.b16 %v196
    %v1319 = vunpack.c.l.b16 %v197
    %v1320 = vunpack.c.h.b16 %v197
    %v1321 = vunpack.c.l.b16 %v198
    %v1322 = vunpack.c.h.b16 %v198
    %v1323 = vunpack.c.l.b16 %v199
    %v1324 = vunpack.c.h.b16 %v199
    %v1325 = vunpack.c.l.b16 %v200
    %v1326 = vunpack.c.h.b16 %v200
    %v1327 = vunpack.c.l.b16 %v201
    %v1328 = vunpack.c.h.b16 %v201
    %v1329 = vunpack.c.l.b16 %v202
    %v1330 = vunpack.c.h.b16 %v202
    %v1331 = vunpack.c.l.b16 %v203
    %v1332 = vunpack.c.h.b16 %v203
    %v1333 = vunpack.c.l.b16 %v204
    %v1334 = vunpack.c.h.b16 %v204
    %v1335 = vunpack.c.l.b16 %v205
    %v1336 = vunpack.c.h.b16 %v205
    %v1337 = vunpack.c.l.b16 %v206
    %v1338 = vunpack.c.h.b16 %v206
    %v1339 = vunpack.c.l.b16 %v207
    %v1340 = vunpack.c.h.b16 %v207
    %v1341 = vunpack.c.l.b16 %v208
    %v1342 = vunpack.c.h.b16 %v208
    %v1343 = vunpack.c.l.b16 %v209
    %v1344 = vunpack.c.h.b16 %v209
    %v1345 = vunpack.c.l.b16 %v210
    %v1346 = vunpack.c.h.b16 %v210
    %v1347 = vunpack.c.l.b16 %v211
    %v1348 = vunpack.c.h.b16 %v211
    %v1349 = vunpack.c.l.b16 %v212
    %v1350 = vunpack.c.h.b16 %v212
    %v1351 = vunpack.c.l.b16 %v213
    %v1352 = vunpack.c.h.b16 %v213
    %v1353 = vunpack.c.l.b16 %v214
    %v1354 = vunpack.c.h.b16 %v214
    %v1355 = vunpack.c.l.b16 %v215
    %v1356 = vunpack.c.h.b16 %v215
    %v1357 = vunpack.c.l.b16 %v216
    %v1358 = vunpack.c.h.b16 %v216
    %v1359 = vunpack.c.l.b16 %v217
    %v1360 = vunpack.c.h.b16 %v217
    %v1361 = vunpack.c.l.b16 %v218
    %v1362 = vunpack.c.h.b16 %v218
    %v1363 = vunpack.c.l.b16 %v219
    %v1364 = vunpack.c.h.b16 %v219
    %v1365 = vunpack.c.l.b16 %v220
    %v1366 = vunpack.c.h.b16 %v220
    %v1367 = vunpack.c.l.b16 %v221
    %v1368 = vunpack.c.h.b16 %v221
    %v1369 = vunpack.c.l.b16 %v222
    %v1370 = vunpack.c.h.b16 %v222
    %v1371 = vunpack.c.l.b16 %v223
    %v1372 = vunpack.c.h.b16 %v223
    %v1373 = vunpack.c.l.b16 %v224
    %v1374 = vunpack.c.h.b16 %v224
    %v1375 = vunpack.c.l.b16 %v225
    %v1376 = vunpack.c.h.b16 %v225
    %v1377 = vunpack.c.l.b16 %v226
    %v1378 = vunpack.c.h.b16 %v226
    %v1379 = vunpack.c.l.b16 %v227
    %v1380 = vunpack.c.h.b16 %v227
    %v1381 = vunpack.c.l.b16 %v228
    %v1382 = vunpack.c.h.b16 %v228
    %v1383 = vunpack.c.l.b16 %v229
    %v1384 = vunpack.c.h.b16 %v229
    %v1385 = vunpack.c.l.b16 %v230
    %v1386 = vunpack.c.h.b16 %v230
    %v1387 = vunpack.c.l.b16 %v231
    %v1388 = vunpack.c.h.b16 %v231
    %v1389 = vunpack.c.l.b16 %v232
    %v1390 = vunpack.c.h.b16 %v232
    %v1391 = vunpack.c.l.b16 %v233
    %v1392 = vunpack.c.h.b16 %v233
    %v1393 = vunpack.c.l.b16 %v234
    %v1394 = vunpack.c.h.b16 %v234
    %v1395 = vunpack.c.l.b16 %v235
    %v1396 = vunpack.c.h.b16 %v235
    %v1397 = vunpack.c.l.b16 %v236
    %v1398 = vunpack.c.h.b16 %v236
    %v1399 = vunpack.c.l.b16 %v237
    %v1400 = vunpack.c.h.b16 %v237
    %v1401 = vunpack.c.l.b16 %v238
    %v1402 = vunpack.c.h.b16 %v238
    %v1403 = vunpack.c.l.b16 %v239
    %v1404 = vunpack.c.h.b16 %v239
    %v1405 = vunpack.c.l.b16 %v240
    %v1406 = vunpack.c.h.b16 %v240
    %v1407 = vunpack.c.l.b16 %v241
    %v1408 = vunpack.c.h.b16 %v241
    %v1409 = vunpack.c.l.b16 %v242
    %v1410 = vunpack.c.h.b16 %v242
    %v1411 = vunpack.c.l.b16 %v243
    %v1412 = vunpack.c.h.b16 %v243
    %v1413 = vunpack.c.l.b16 %v244
    %v1414 = vunpack.c.h.b16 %v244
    %v1415 = vunpack.c.l.b16 %v245
    %v1416 = vunpack.c.h.b16 %v245
    %v1417 = vunpack.c.l.b16 %v246
    %v1418 = vunpack.c.h.b16 %v246
    %v1419 = vunpack.c.l.b16 %v247
    %v1420 = vunpack.c.h.b16 %v247
    %v1421 = vunpack.c.l.b16 %v248
    %v1422 = vunpack.c.h.b16 %v248
    %v1423 = vunpack.c.l.b16 %v249
    %v1424 = vunpack.c.h.b16 %v249
    %v1425 = vunpack.c.l.b16 %v250
    %v1426 = vunpack.c.h.b16 %v250
    %v1427 = vunpack.c.l.b16 %v251
    %v1428 = vunpack.c.h.b16 %v251
    %v1429 = vunpack.c.l.b16 %v252
    %v1430 = vunpack.c.h.b16 %v252
    %v1431 = vunpack.c.l.b16 %v253
    %v1432 = vunpack.c.h.b16 %v253
    %v1433 = vunpack.c.l.b16 %v254
    %v1434 = vunpack.c.h.b16 %v254
    %v1435 = vunpack.c.l.b16 %v255
    %v1436 = vunpack.c.h.b16 %v255
    %v1437 = vunpack.c.l.b16 %v256
    %v1438 = vunpack.c.h.b16 %v256
    %v1439 = vunpack.c.l.b16 %v257
    %v1440 = vunpack.c.h.b16 %v257
    %v1441 = vunpack.c.l.b16 %v258
    %v1442 = vunpack.c.h.b16 %v258
    %v1443 = vunpack.c.l.b16 %v259
    %v1444 = vunpack.c.h.b16 %v259
    %v1445 = vunpack.c.l.b16 %v260
    %v1446 = vunpack.c.h.b16 %v260
    %v1447 = vunpack.c.l.b16 %v261
    %v1448 = vunpack.c.h.b16 %v261
    %v1449 = vunpack.c.l.b16 %v262
    %v1450 = vunpack.c.h.b16 %v262
    %v1451 = vunpack.c.l.b16 %v263
    %v1452 = vunpack.c.h.b16 %v263
    %v1453 = vunpack.c.l.b16 %v264
    %v1454 = vunpack.c.h.b16 %v264
    %v1455 = vunpack.c.l.b16 %v265
    %v1456 = vunpack.c.h.b16 %v265
    %v1457 = vunpack.c.l.b16 %v266
    %v1458 = vunpack.c.h.b16 %v266
    %v1459 = vunpack.c.l.b16 %v267
    %v1460 = vunpack.c.h.b16 %v267
    %v1461 = vunpack.c.l.b16 %v268
    %v1462 = vunpack.c.h.b16 %v268
    %v1463 = vunpack.c.l.b16 %v269
    %v1464 = vunpack.c.h.b16 %v269
    %v1465 = vunpack.c.l.b16 %v270
    %v1466 = vunpack.c.h.b16 %v270
    %v1467 = vunpack.c.l.b16 %v271
    %v1468 = vunpack.c.h.b16 %v271
    %v1469 = vunpack.c.l.b16 %v272
    %v1470 = vunpack.c.h.b16 %v272
    %v1471 = vunpack.c.l.b16 %v273
    %v1472 = vunpack.c.h.b16 %v273
    %v1473 = vunpack.c.l.b16 %v274
    %v1474 = vunpack.c.h.b16 %v274
    %v1475 = vunpack.c.l.b16 %v275
    %v1476 = vunpack.c.h.b16 %v275
    %v1477 = vunpack.c.l.b16 %v276
    %v1478 = vunpack.c.h.b16 %v276
    %v1479 = vunpack.c.l.b16 %v277
    %v1480 = vunpack.c.h.b16 %v277
    %v1481 = vunpack.c.l.b16 %v278
    %v1482 = vunpack.c.h.b16 %v278
    %v1483 = vunpack.c.l.b16 %v279
    %v1484 = vunpack.c.h.b16 %v279
    %v1485 = vunpack.c.l.b16 %v280
    %v1486 = vunpack.c.h.b16 %v280
    %v1487 = vunpack.c.l.b16 %v281
    %v1488 = vunpack.c.h.b16 %v281
    %v1489 = vunpack.c.l.b16 %v282
    %v1490 = vunpack.c.h.b16 %v282
    %v1491 = vunpack.c.l.b16 %v283
    %v1492 = vunpack.c.h.b16 %v283
    %v1493 = vunpack.c.l.b16 %v284
    %v1494 = vunpack.c.h.b16 %v284
    %v1495 = vunpack.c.l.b16 %v285
    %v1496 = vunpack.c.h.b16 %v285
    %v1497 = vunpack.c.l.b16 %v286
    %v1498 = vunpack.c.h.b16 %v286
    %v1499 = vunpack.c.l.b16 %v287
    %v1500 = vunpack.c.h.b16 %v287
    %v1501 = vunpack.c.l.b16 %v288
    %v1502 = vunpack.c.h.b16 %v288
    %v1503 = vunpack.c.l.b16 %v289
    %v1504 = vunpack.c.h.b16 %v289
    %v1505 = vunpack.c.l.b16 %v290
    %v1506 = vunpack.c.h.b16 %v290
    %v1507 = vunpack.c.l.b16 %v291
    %v1508 = vunpack.c.h.b16 %v291
    %v1509 = vunpack.c.l.b16 %v292
    %v1510 = vunpack.c.h.b16 %v292
    %v1511 = vunpack.c.l.b16 %v293
    %v1512 = vunpack.c.h.b16 %v293
    %v1513 = vunpack.c.l.b16 %v294
    %v1514 = vunpack.c.h.b16 %v294
    %v1515 = vunpack.c.l.b16 %v295
    %v1516 = vunpack.c.h.b16 %v295
    %v1517 = vunpack.c.l.b16 %v296
    %v1518 = vunpack.c.h.b16 %v296
    %v1519 = vunpack.c.l.b16 %v297
    %v1520 = vunpack.c.h.b16 %v297
    %v1521 = vunpack.c.l.b16 %v298
    %v1522 = vunpack.c.h.b16 %v298
    %v1523 = vunpack.c.l.b16 %v299
    %v1524 = vunpack.c.h.b16 %v299
    %v1525 = vunpack.c.l.b16 %v300
    %v1526 = vunpack.c.h.b16 %v300
    %v1527 = vunpack.c.l.b16 %v301
    %v1528 = vunpack.c.h.b16 %v301
    %v1529 = vunpack.c.l.b16 %v302
    %v1530 = vunpack.c.h.b16 %v302
    %v1531 = vunpack.c.l.b16 %v303
    %v1532 = vunpack.c.h.b16 %v303
    %v1533 = vunpack.c.l.b16 %v304
    %v1534 = vunpack.c.h.b16 %v304
    %v1535 = vunpack.c.l.b16 %v305
    %v1536 = vunpack.c.h.b16 %v305
    %v1537 = vunpack.c.l.b16 %v306
    %v1538 = vunpack.c.h.b16 %v306
    %v1539 = vunpack.c.l.b16 %v307
    %v1540 = vunpack.c.h.b16 %v307
    %v1541 = vunpack.c.l.b16 %v308
    %v1542 = vunpack.c.h.b16 %v308
    %v1543 = vunpack.c.l.b16 %v309
    %v1544 = vunpack.c.h.b16 %v309
    %v1545 = vunpack.c.l.b16 %v310
    %v1546 = vunpack.c.h.b16 %v310
    %v1547 = vunpack.c.l.b16 %v311
    %v1548 = vunpack.c.h.b16 %v311
    %v1549 = vunpack.c.l.b16 %v312
    %v1550 = vunpack.c.h.b16 %v312
    %v1551 = vunpack.c.l.b16 %v313
    %v1552 = vunpack.c.h.b16 %v313
    %v1553 = vunpack.c.l.b16 %v314
    %v1554 = vunpack.c.h.b16 %v314
    %v1555 = vunpack.c.l.b16 %v315
    %v1556 = vunpack.c.h.b16 %v315
    %v1557 = vunpack.c.l.b16 %v316
    %v1558 = vunpack.c.h.b16 %v316
    %v1559 = vunpack.c.l.b16 %v317
    %v1560 = vunpack.c.h.b16 %v317
    %v1561 = vunpack.c.l.b16 %v318
    %v1562 = vunpack.c.h.b16 %v318
    %v1563 = vunpack.c.l.b16 %v319
    %v1564 = vunpack.c.h.b16 %v319
    %v1565 = vunpack.c.l.b16 %v320
    %v1566 = vunpack.c.h.b16 %v320
    %v1567 = vunpack.c.l.b16 %v321
    %v1568 = vunpack.c.h.b16 %v321
    %v1569 = vunpack.c.l.b16 %v322
    %v1570 = vunpack.c.h.b16 %v322
    %v1571 = vunpack.c.l.b16 %v323
    %v1572 = vunpack.c.h.b16 %v323
    %v1573 = vunpack.c.l.b16 %v324
    %v1574 = vunpack.c.h.b16 %v324
    %v1575 = vunpack.c.l.b16 %v325
    %v1576 = vunpack.c.h.b16 %v325
    %v1577 = vunpack.c.l.b16 %v326
    %v1578 = vunpack.c.h.b16 %v326
    %v1579 = vunpack.c.l.b16 %v327
    %v1580 = vunpack.c.h.b16 %v327
    %v1581 = vunpack.c.l.b16 %v328
    %v1582 = vunpack.c.h.b16 %v328
    %v1583 = vunpack.c.l.b16 %v329
    %v1584 = vunpack.c.h.b16 %v329
    %v1585 = vunpack.c.l.b16 %v330
    %v1586 = vunpack.c.h.b16 %v330
    %v1587 = vunpack.c.l.b16 %v331
    %v1588 = vunpack.c.h.b16 %v331
    %v1589 = vunpack.c.l.b16 %v332
    %v1590 = vunpack.c.h.b16 %v332
    %v1591 = vunpack.c.l.b16 %v333
    %v1592 = vunpack.c.h.b16 %v333
    %v1593 = vunpack.c.l.b16 %v334
    %v1594 = vunpack.c.h.b16 %v334
    %v1595 = vunpack.c.l.b16 %v335
    %v1596 = vunpack.c.h.b16 %v335
    %v1597 = vunpack.c.l.b16 %v336
    %v1598 = vunpack.c.h.b16 %v336
    %v1599 = vunpack.c.l.b16 %v337
    %v1600 = vunpack.c.h.b16 %v337
    %v1601 = vunpack.c.l.b16 %v338
    %v1602 = vunpack.c.h.b16 %v338
    %v1603 = vunpack.c.l.b16 %v339
    %v1604 = vunpack.c.h.b16 %v339
    %v1605 = vunpack.c.l.b16 %v340
    %v1606 = vunpack.c.h.b16 %v340
    %v1607 = vunpack.c.l.b16 %v341
    %v1608 = vunpack.c.h.b16 %v341
    %v1609 = vunpack.c.l.b16 %v342
    %v1610 = vunpack.c.h.b16 %v342
    %v1611 = vunpack.c.l.b16 %v343
    %v1612 = vunpack.c.h.b16 %v343
    %v1613 = vunpack.c.l.b16 %v344
    %v1614 = vunpack.c.h.b16 %v344
    %v1615 = vunpack.c.l.b16 %v345
    %v1616 = vunpack.c.h.b16 %v345
    %v1617 = vunpack.c.l.b16 %v346
    %v1618 = vunpack.c.h.b16 %v346
    %v1619 = vunpack.c.l.b16 %v347
    %v1620 = vunpack.c.h.b16 %v347
    %v1621 = vunpack.c.l.b16 %v348
    %v1622 = vunpack.c.h.b16 %v348
    %v1623 = vunpack.c.l.b16 %v349
    %v1624 = vunpack.c.h.b16 %v349
    %v1625 = vunpack.c.l.b16 %v350
    %v1626 = vunpack.c.h.b16 %v350
    %v1627 = vunpack.c.l.b16 %v351
    %v1628 = vunpack.c.h.b16 %v351
    %v1629 = vunpack.c.l.b16 %v352
    %v1630 = vunpack.c.h.b16 %v352
    %v1631 = vunpack.c.l.b16 %v353
    %v1632 = vunpack.c.h.b16 %v353
    %v1633 = vunpack.c.l.b16 %v354
    %v1634 = vunpack.c.h.b16 %v354
    %v1635 = vunpack.c.l.b16 %v355
    %v1636 = vunpack.c.h.b16 %v355
    %v1637 = vunpack.c.l.b16 %v356
    %v1638 = vunpack.c.h.b16 %v356
    %v1639 = vunpack.c.l.b16 %v357
    %v1640 = vunpack.c.h.b16 %v357
    %v1641 = vunpack.c.l.b16 %v358
    %v1642 = vunpack.c.h.b16 %v358
    %v1643 = vunpack.c.l.b16 %v359
    %v1644 = vunpack.c.h.b16 %v359
    %v1645 = vunpack.c.l.b16 %v360
    %v1646 = vunpack.c.h.b16 %v360
    %v1647 = vunpack.c.l.b16 %v361
    %v1648 = vunpack.c.h.b16 %v361
    %v1649 = vunpack.c.l.b16 %v362
    %v1650 = vunpack.c.h.b16 %v362
    %v1651 = vunpack.c.l.b16 %v363
    %v1652 = vunpack.c.h.b16 %v363
    %v1653 = vunpack.c.l.b16 %v364
    %v1654 = vunpack.c.h.b16 %v364
    %v1655 = vunpack.c.l.b16 %v365
    %v1656 = vunpack.c.h.b16 %v365
    %v1657 = vunpack.c.l.b16 %v366
    %v1658 = vunpack.c.h.b16 %v366
    %v1659 = vunpack.c.l.b16 %v367
    %v1660 = vunpack.c.h.b16 %v367
    %v1661 = vunpack.c.l.b16 %v368
    %v1662 = vunpack.c.h.b16 %v368
    %v1663 = vunpack.c.l.b16 %v369
    %v1664 = vunpack.c.h.b16 %v369
    %v1665 = vunpack.c.l.b16 %v370
    %v1666 = vunpack.c.h.b16 %v370
    %v1667 = vunpack.c.l.b16 %v371
    %v1668 = vunpack.c.h.b16 %v371
    %v1669 = vunpack.c.l.b16 %v372
    %v1670 = vunpack.c.h.b16 %v372
    %v1671 = vunpack.c.l.b16 %v373
    %v1672 = vunpack.c.h.b16 %v373
    %v1673 = vunpack.c.l.b16 %v374
    %v1674 = vunpack.c.h.b16 %v374
    %v1675 = vunpack.c.l.b16 %v375
    %v1676 = vunpack.c.h.b16 %v375
    %v1677 = vunpack.c.l.b16 %v376
    %v1678 = vunpack.c.h.b16 %v376
    %v1679 = vunpack.c.l.b16 %v377
    %v1680 = vunpack.c.h.b16 %v377
    %v1681 = vunpack.c.l.b16 %v378
    %v1682 = vunpack.c.h.b16 %v378
    %v1683 = vunpack.c.l.b16 %v379
    %v1684 = vunpack.c.h.b16 %v379
    %v1685 = vunpack.c.l.b16 %v380
    %v1686 = vunpack.c.h.b16 %v380
    %v1687 = vunpack.c.l.b16 %v381
    %v1688 = vunpack.c.h.b16 %v381
    %v1689 = vunpack.c.l.b16 %v382
    %v1690 = vunpack.c.h.b16 %v382
    %v1691 = vunpack.c.l.b16 %v383
    %v1692 = vunpack.c.h.b16 %v383
    %v1693 = vunpack.c.l.b16 %v384
    %v1694 = vunpack.c.h.b16 %v384
    %v1695 = vunpack.c.l.b16 %v385
    %v1696 = vunpack.c.h.b16 %v385
    %v1697 = vunpack.c.l.b16 %v386
    %v1698 = vunpack.c.h.b16 %v386
    %v1699 = vunpack.c.l.b16 %v387
    %v1700 = vunpack.c.h.b16 %v387
    %v1701 = vunpack.c.l.b16 %v388
    %v1702 = vunpack.c.h.b16 %v388
    %v1703 = vunpack.c.l.b16 %v389
    %v1704 = vunpack.c.h.b16 %v389
    %v1705 = vunpack.c.l.b16 %v390
    %v1706 = vunpack.c.h.b16 %v390
    %v1707 = vunpack.c.l.b16 %v391
    %v1708 = vunpack.c.h.b16 %v391
    %v1709 = vunpack.c.l.b16 %v392
    %v1710 = vunpack.c.h.b16 %v392
    %v1711 = vunpack.c.l.b16 %v393
    %v1712 = vunpack.c.h.b16 %v393
    %v1713 = vunpack.c.l.b16 %v394
    %v1714 = vunpack.c.h.b16 %v394
    %v1715 = vunpack.c.l.b16 %v395
    %v1716 = vunpack.c.h.b16 %v395
    %v1717 = vunpack.c.l.b16 %v396
    %v1718 = vunpack.c.h.b16 %v396
    %v1719 = vunpack.c.l.b16 %v397
    %v1720 = vunpack.c.h.b16 %v397
    %v1721 = vunpack.c.l.b16 %v398
    %v1722 = vunpack.c.h.b16 %v398
    %v1723 = vunpack.c.l.b16 %v399
    %v1724 = vunpack.c.h.b16 %v399
    %v1725 = vunpack.c.l.b16 %v400
    %v1726 = vunpack.c.h.b16 %v400
    %v1727 = vunpack.c.l.b16 %v401
    %v1728 = vunpack.c.h.b16 %v401
    %v1729 = vunpack.c.l.b16 %v402
    %v1730 = vunpack.c.h.b16 %v402
    %v1731 = vunpack.c.l.b16 %v403
    %v1732 = vunpack.c.h.b16 %v403
    %v1733 = vunpack.c.l.b16 %v404
    %v1734 = vunpack.c.h.b16 %v404
    %v1735 = vunpack.c.l.b16 %v405
    %v1736 = vunpack.c.h.b16 %v405
    %v1737 = vunpack.c.l.b16 %v406
    %v1738 = vunpack.c.h.b16 %v406
    %v1739 = vunpack.c.l.b16 %v407
    %v1740 = vunpack.c.h.b16 %v407
    %v1741 = vunpack.c.l.b16 %v408
    %v1742 = vunpack.c.h.b16 %v408
    %v1743 = vunpack.c.l.b16 %v409
    %v1744 = vunpack.c.h.b16 %v409
    %v1745 = vunpack.c.l.b16 %v410
    %v1746 = vunpack.c.h.b16 %v410
    %v1747 = vunpack.c.l.b16 %v411
    %v1748 = vunpack.c.h.b16 %v411
    %v1749 = vunpack.c.l.b16 %v412
    %v1750 = vunpack.c.h.b16 %v412
    %v1751 = vunpack.c.l.b16 %v413
    %v1752 = vunpack.c.h.b16 %v413
    %v1753 = vunpack.c.l.b16 %v414
    %v1754 = vunpack.c.h.b16 %v414
    %v1755 = vunpack.c.l.b16 %v415
    %v1756 = vunpack.c.h.b16 %v415
    %v1757 = vunpack.c.l.b16 %v416
    %v1758 = vunpack.c.h.b16 %v416
    %v1759 = vunpack.c.l.b16 %v417
    %v1760 = vunpack.c.h.b16 %v417
    %v1761 = vunpack.c.l.b16 %v418
    %v1762 = vunpack.c.h.b16 %v418
    %v1763 = vunpack.c.l.b16 %v419
    %v1764 = vunpack.c.h.b16 %v419
    %v1765 = vunpack.c.l.b16 %v420
    %v1766 = vunpack.c.h.b16 %v420
    %v1767 = vunpack.c.l.b16 %v421
    %v1768 = vunpack.c.h.b16 %v421
    %v1769 = vunpack.c.l.b16 %v422
    %v1770 = vunpack.c.h.b16 %v422
    %v1771 = vunpack.c.l.b16 %v423
    %v1772 = vunpack.c.h.b16 %v423
    %v1773 = vunpack.c.l.b16 %v424
    %v1774 = vunpack.c.h.b16 %v424
    %v1775 = vunpack.c.l.b16 %v425
    %v1776 = vunpack.c.h.b16 %v425
    %v1777 = vunpack.c.l.b16 %v426
    %v1778 = vunpack.c.h.b16 %v426
    %v1779 = vunpack.c.l.b16 %v427
    %v1780 = vunpack.c.h.b16 %v427
    %v1781 = vunpack.c.l.b16 %v428
    %v1782 = vunpack.c.h.b16 %v428
    %v1783 = vunpack.c.l.b16 %v429
    %v1784 = vunpack.c.h.b16 %v429
    %v1785 = vunpack.c.l.b16 %v430
    %v1786 = vunpack.c.h.b16 %v430
    %v1787 = vunpack.c.l.b16 %v431
    %v1788 = vunpack.c.h.b16 %v431
    %v1789 = vunpack.c.l.b16 %v432
    %v1790 = vunpack.c.h.b16 %v432
    %v1791 = vunpack.c.l.b16 %v433
    %v1792 = vunpack.c.h.b16 %v433
    %v1793 = vunpack.c.l.b16 %v434
    %v1794 = vunpack.c.h.b16 %v434
    %v1795 = vunpack.c.l.b16 %v435
    %v1796 = vunpack.c.h.b16 %v435
    %v1797 = vunpack.c.l.b16 %v436
    %v1798 = vunpack.c.h.b16 %v436
    %v1799 = vunpack.c.l.b16 %v437
    %v1800 = vunpack.c.h.b16 %v437
    %v1801 = vunpack.c.l.b16 %v438
    %v1802 = vunpack.c.h.b16 %v438
    %v1803 = vunpack.c.l.b16 %v439
    %v1804 = vunpack.c.h.b16 %v439
    %v1805 = vunpack.c.l.b16 %v440
    %v1806 = vunpack.c.h.b16 %v440
    %v1807 = vunpack.c.l.b16 %v441
    %v1808 = vunpack.c.h.b16 %v441
    %v1809 = vunpack.c.l.b16 %v442
    %v1810 = vunpack.c.h.b16 %v442
    %v1811 = vunpack.c.l.b16 %v443
    %v1812 = vunpack.c.h.b16 %v443
    %v1813 = vunpack.c.l.b16 %v444
    %v1814 = vunpack.c.h.b16 %v444
    %v1815 = vunpack.c.l.b16 %v445
    %v1816 = vunpack.c.h.b16 %v445
    %v1817 = vunpack.c.l.b16 %v446
    %v1818 = vunpack.c.h.b16 %v446
    %v1819 = vunpack.c.l.b16 %v447
    %v1820 = vunpack.c.h.b16 %v447
    %v1821 = vunpack.c.l.b16 %v448
    %v1822 = vunpack.c.h.b16 %v448
    %v1823 = vunpack.c.l.b16 %v449
    %v1824 = vunpack.c.h.b16 %v449
    %v1825 = vunpack.c.l.b16 %v450
    %v1826 = vunpack.c.h.b16 %v450
    %v1827 = vunpack.c.l.b16 %v451
    %v1828 = vunpack.c.h.b16 %v451
    %v1829 = vunpack.c.l.b16 %v452
    %v1830 = vunpack.c.h.b16 %v452
    %v1831 = vunpack.c.l.b16 %v453
    %v1832 = vunpack.c.h.b16 %v453
    %v1833 = vunpack.c.l.b16 %v454
    %v1834 = vunpack.c.h.b16 %v454
    %v1835 = vunpack.c.l.b16 %v455
    %v1836 = vunpack.c.h.b16 %v455
    %v1837 = vunpack.c.l.b16 %v456
    %v1838 = vunpack.c.h.b16 %v456
    %v1839 = vunpack.c.l.b16 %v457
    %v1840 = vunpack.c.h.b16 %v457
    %v1841 = vunpack.c.l.b16 %v458
    %v1842 = vunpack.c.h.b16 %v458
    %v1843 = vunpack.c.l.b16 %v459
    %v1844 = vunpack.c.h.b16 %v459
    %v1845 = vunpack.c.l.b16 %v460
    %v1846 = vunpack.c.h.b16 %v460
    %v1847 = vunpack.c.l.b16 %v461
    %v1848 = vunpack.c.h.b16 %v461
    %v1849 = vunpack.c.l.b16 %v462
    %v1850 = vunpack.c.h.b16 %v462
    %v1851 = vunpack.c.l.b16 %v463
    %v1852 = vunpack.c.h.b16 %v463
    %v1853 = vunpack.c.l.b16 %v464
    %v1854 = vunpack.c.h.b16 %v464
    %v1855 = vunpack.c.l.b16 %v465
    %v1856 = vunpack.c.h.b16 %v465
    %v1857 = vunpack.c.l.b16 %v466
    %v1858 = vunpack.c.h.b16 %v466
    %v1859 = vunpack.c.l.b16 %v467
    %v1860 = vunpack.c.h.b16 %v467
    %v1861 = vunpack.c.l.b16 %v468
    %v1862 = vunpack.c.h.b16 %v468
    %v1863 = vunpack.c.l.b16 %v469
    %v1864 = vunpack.c.h.b16 %v469
    %v1865 = vunpack.c.l.b16 %v470
    %v1866 = vunpack.c.h.b16 %v470
    %v1867 = vunpack.c.l.b16 %v471
    %v1868 = vunpack.c.h.b16 %v471
    %v1869 = vunpack.c.l.b16 %v472
    %v1870 = vunpack.c.h.b16 %v472
    %v1871 = vunpack.c.l.b16 %v473
    %v1872 = vunpack.c.h.b16 %v473
    %v1873 = vunpack.c.l.b16 %v474
    %v1874 = vunpack.c.h.b16 %v474
    %v1875 = vunpack.c.l.b16 %v475
    %v1876 = vunpack.c.h.b16 %v475
    %v1877 = vunpack.c.l.b16 %v476
    %v1878 = vunpack.c.h.b16 %v476
    %v1879 = vunpack.c.l.b16 %v477
    %v1880 = vunpack.c.h.b16 %v477
    %v1881 = vunpack.c.l.b16 %v478
    %v1882 = vunpack.c.h.b16 %v478
    %v1883 = vunpack.c.l.b16 %v479
    %v1884 = vunpack.c.h.b16 %v479
    %v1885 = vunpack.c.l.b16 %v480
    %v1886 = vunpack.c.h.b16 %v480
    %v1887 = vunpack.c.l.b16 %v481
    %v1888 = vunpack.c.h.b16 %v481
    %v1889 = vunpack.c.l.b16 %v482
    %v1890 = vunpack.c.h.b16 %v482
    %v1891 = vunpack.c.l.b16 %v483
    %v1892 = vunpack.c.h.b16 %v483
    %v1893 = vunpack.c.l.b16 %v484
    %v1894 = vunpack.c.h.b16 %v484
    %v1895 = vunpack.c.l.b16 %v485
    %v1896 = vunpack.c.h.b16 %v485
    %v1897 = vunpack.c.l.b16 %v486
    %v1898 = vunpack.c.h.b16 %v486
    %v1899 = vunpack.c.l.b16 %v487
    %v1900 = vunpack.c.h.b16 %v487
    %v1901 = vunpack.c.l.b16 %v488
    %v1902 = vunpack.c.h.b16 %v488
    %v1903 = vunpack.c.l.b16 %v489
    %v1904 = vunpack.c.h.b16 %v489
    %v1905 = vunpack.c.l.b16 %v490
    %v1906 = vunpack.c.h.b16 %v490
    %v1907 = vunpack.c.l.b16 %v491
    %v1908 = vunpack.c.h.b16 %v491
    %v1909 = vunpack.c.l.b16 %v492
    %v1910 = vunpack.c.h.b16 %v492
    %v1911 = vunpack.c.l.b16 %v493
    %v1912 = vunpack.c.h.b16 %v493
    %v1913 = vunpack.c.l.b16 %v494
    %v1914 = vunpack.c.h.b16 %v494
    %v1915 = vunpack.c.l.b16 %v495
    %v1916 = vunpack.c.h.b16 %v495
    %v1917 = vunpack.c.l.b16 %v496
    %v1918 = vunpack.c.h.b16 %v496
    %v1919 = vunpack.c.l.b16 %v497
    %v1920 = vunpack.c.h.b16 %v497
    %v1921 = vunpack.c.l.b16 %v498
    %v1922 = vunpack.c.h.b16 %v498
    %v1923 = vunpack.c.l.b16 %v499
    %v1924 = vunpack.c.h.b16 %v499
    %v1925 = vunpack.c.l.b16 %v500
    %v1926 = vunpack.c.h.b16 %v500
    %v1927 = vunpack.c.l.b16 %v501
    %v1928 = vunpack.c.h.b16 %v501
    %v1929 = vunpack.c.l.b16 %v502
    %v1930 = vunpack.c.h.b16 %v502
    %v1931 = vunpack.c.l.b16 %v503
    %v1932 = vunpack.c.h.b16 %v503
    %v1933 = vunpack.c.l.b16 %v504
    %v1934 = vunpack.c.h.b16 %v504
    %v1935 = vunpack.c.l.b16 %v505
    %v1936 = vunpack.c.h.b16 %v505
    %v1937 = vunpack.c.l.b16 %v506
    %v1938 = vunpack.c.h.b16 %v506
    %v1939 = vunpack.c.l.b16 %v507
    %v1940 = vunpack.c.h.b16 %v507
    %v1941 = vunpack.c.l.b16 %v508
    %v1942 = vunpack.c.h.b16 %v508
    %v1943 = vunpack.c.l.b16 %v509
    %v1944 = vunpack.c.h.b16 %v509
    %v1945 = vunpack.c.l.b16 %v510
    %v1946 = vunpack.c.h.b16 %v510
    %v1947 = vunpack.c.l.b16 %v511
    %v1948 = vunpack.c.h.b16 %v511
    %v1949 = vunpack.c.l.b16 %v512
    %v1950 = vunpack.c.h.b16 %v512
    %v1951 = vunpack.c.l.b16 %v513
    %v1952 = vunpack.c.h.b16 %v513
    %v1953 = vunpack.c.l.b16 %v514
    %v1954 = vunpack.c.h.b16 %v514
    %v1955 = vunpack.c.l.b16 %v515
    %v1956 = vunpack.c.h.b16 %v515
    %v1957 = vunpack.c.l.b16 %v516
    %v1958 = vunpack.c.h.b16 %v516
    %v1959 = vunpack.c.l.b16 %v517
    %v1960 = vunpack.c.h.b16 %v517
    %v1961 = vunpack.c.l.b16 %v518
    %v1962 = vunpack.c.h.b16 %v518
    %v1963 = vunpack.c.l.b16 %v519
    %v1964 = vunpack.c.h.b16 %v519
    %v1965 = vunpack.c.l.b16 %v520
    %v1966 = vunpack.c.h.b16 %v520
    %v1967 = vunpack.c.l.b16 %v521
    %v1968 = vunpack.c.h.b16 %v521
    %v1969 = vunpack.c.l.b16 %v522
    %v1970 = vunpack.c.h.b16 %v522
    %v1971 = vunpack.c.l.b16 %v523
    %v1972 = vunpack.c.h.b16 %v523
    %v1973 = vunpack.c.l.b16 %v524
    %v1974 = vunpack.c.h.b16 %v524
    %v1975 = vunpack.c.l.b16 %v525
    %v1976 = vunpack.c.h.b16 %v525
    %v1977 = vunpack.c.l.b16 %v526
    %v1978 = vunpack.c.h.b16 %v526
    %v1979 = vunpack.c.l.b16 %v527
    %v1980 = vunpack.c.h.b16 %v527
    %v1981 = vunpack.c.l.b16 %v528
    %v1982 = vunpack.c.h.b16 %v528
    %v1983 = vunpack.c.l.b16 %v529
    %v1984 = vunpack.c.h.b16 %v529
    %v1985 = vunpack.c.l.b16 %v530
    %v1986 = vunpack.c.h.b16 %v530
    %v1987 = vunpack.c.l.b16 %v531
    %v1988 = vunpack.c.h.b16 %v531
    %v1989 = vunpack.c.l.b16 %v532
    %v1990 = vunpack.c.h.b16 %v532
    %v1991 = vunpack.c.l.b16 %v533
    %v1992 = vunpack.c.h.b16 %v533
    %v1993 = vunpack.c.l.b16 %v534
    %v1994 = vunpack.c.h.b16 %v534
    %v1995 = vunpack.c.l.b16 %v535
    %v1996 = vunpack.c.h.b16 %v535
    %v1997 = vunpack.c.l.b16 %v536
    %v1998 = vunpack.c.h.b16 %v536
    %v1999 = vunpack.c.l.b16 %v537
    %v2000 = vunpack.c.h.b16 %v537
    %v2001 = vunpack.c.l.b16 %v538
    %v2002 = vunpack.c.h.b16 %v538
    %v2003 = vunpack.c.l.b16 %v539
    %v2004 = vunpack.c.h.b16 %v539
    %v2005 = vunpack.c.l.b16 %v540
    %v2006 = vunpack.c.h.b16 %v540
    %v2007 = vunpack.c.l.b16 %v541
    %v2008 = vunpack.c.h.b16 %v541
    %v2009 = vunpack.c.l.b16 %v542
    %v2010 = vunpack.c.h.b16 %v542
    %v2011 = vunpack.c.l.b16 %v543
    %v2012 = vunpack.c.h.b16 %v543
    %v2013 = vunpack.c.l.b16 %v544
    %v2014 = vunpack.c.h.b16 %v544
    %v2015 = vunpack.c.l.b16 %v545
    %v2016 = vunpack.c.h.b16 %v545
    %v2017 = vunpack.c.l.b16 %v546
    %v2018 = vunpack.c.h.b16 %v546
    %v2019 = vunpack.c.l.b16 %v547
    %v2020 = vunpack.c.h.b16 %v547
    %v2021 = vunpack.c.l.b16 %v548
    %v2022 = vunpack.c.h.b16 %v548
    %v2023 = vunpack.c.l.b16 %v549
    %v2024 = vunpack.c.h.b16 %v549
    %v2025 = vunpack.c.l.b16 %v550
    %v2026 = vunpack.c.h.b16 %v550
    %v2027 = vunpack.c.l.b16 %v551
    %v2028 = vunpack.c.h.b16 %v551
    %v2029 = vunpack.c.l.b16 %v552
    %v2030 = vunpack.c.h.b16 %v552
    %v2031 = vunpack.c.l.b16 %v553
    %v2032 = vunpack.c.h.b16 %v553
    %v2033 = vunpack.c.l.b16 %v554
    %v2034 = vunpack.c.h.b16 %v554
    %v2035 = vunpack.c.l.b16 %v555
    %v2036 = vunpack.c.h.b16 %v555
    %v2037 = vunpack.c.l.b16 %v556
    %v2038 = vunpack.c.h.b16 %v556
    %v2039 = vunpack.c.l.b16 %v557
    %v2040 = vunpack.c.h.b16 %v557
    %v2041 = vunpack.c.l.b16 %v558
    %v2042 = vunpack.c.h.b16 %v558
    %v2043 = vunpack.c.l.b16 %v559
    %v2044 = vunpack.c.h.b16 %v559
    %v2045 = vunpack.c.l.b16 %v560
    %v2046 = vunpack.c.h.b16 %v560
    %v2047 = vunpack.c.l.b16 %v561
    %v2048 = vunpack.c.h.b16 %v561
    %v2049 = vunpack.c.l.b16 %v562
    %v2050 = vunpack.c.h.b16 %v562
    %v2051 = vunpack.c.l.b16 %v563
    %v2052 = vunpack.c.h.b16 %v563
    %v2053 = vunpack.c.l.b16 %v564
    %v2054 = vunpack.c.h.b16 %v564
    %v2055 = vunpack.c.l.b16 %v565
    %v2056 = vunpack.c.h.b16 %v565
    %v2057 = vunpack.c.l.b16 %v566
    %v2058 = vunpack.c.h.b16 %v566
    %v2059 = vunpack.c.l.b16 %v567
    %v2060 = vunpack.c.h.b16 %v567
    %v2061 = vunpack.c.l.b16 %v568
    %v2062 = vunpack.c.h.b16 %v568
    %v2063 = vunpack.c.l.b16 %v569
    %v2064 = vunpack.c.h.b16 %v569
    %v2065 = vunpack.c.l.b16 %v570
    %v2066 = vunpack.c.h.b16 %v570
    %v2067 = vunpack.c.l.b16 %v571
    %v2068 = vunpack.c.h.b16 %v571
    %v2069 = vunpack.c.l.b16 %v572
    %v2070 = vunpack.c.h.b16 %v572
    %v2071 = vunpack.c.l.b16 %v573
    %v2072 = vunpack.c.h.b16 %v573
    %v2073 = vunpack.c.l.b16 %v574
    %v2074 = vunpack.c.h.b16 %v574
    %v2075 = vunpack.c.l.b16 %v575
    %v2076 = vunpack.c.h.b16 %v575
    %v2077 = vunpack.c.l.b16 %v576
    %v2078 = vunpack.c.h.b16 %v576
    %v2079 = vunpack.c.l.b16 %v577
    %v2080 = vunpack.c.h.b16 %v577
    %v2081 = vunpack.c.l.b16 %v578
    %v2082 = vunpack.c.h.b16 %v578
    %v2083 = vunpack.c.l.b16 %v579
    %v2084 = vunpack.c.h.b16 %v579
    %v2085 = vunpack.c.l.b16 %v580
    %v2086 = vunpack.c.h.b16 %v580
    %v2087 = vunpack.c.l.b16 %v581
    %v2088 = vunpack.c.h.b16 %v581
    %v2089 = vunpack.c.l.b16 %v582
    %v2090 = vunpack.c.h.b16 %v582
    %v2091 = vunpack.c.l.b16 %v583
    %v2092 = vunpack.c.h.b16 %v583
    %v2093 = vunpack.c.l.b16 %v584
    %v2094 = vunpack.c.h.b16 %v584
    %v2095 = vunpack.c.l.b16 %v585
    %v2096 = vunpack.c.h.b16 %v585
    %v2097 = vunpack.c.l.b16 %v586
    %v2098 = vunpack.c.h.b16 %v586
    %v2099 = vunpack.c.l.b16 %v587
    %v2100 = vunpack.c.h.b16 %v587
    %v2101 = vunpack.c.l.b16 %v588
    %v2102 = vunpack.c.h.b16 %v588
    %v2103 = vunpack.c.l.b16 %v589
    %v2104 = vunpack.c.h.b16 %v589
    %v2105 = vunpack.c.l.b16 %v590
    %v2106 = vunpack.c.h.b16 %v590
    %v2107 = vunpack.c.l.b16 %v591
    %v2108 = vunpack.c.h.b16 %v591
    %v2109 = vunpack.c.l.b16 %v592
    %v2110 = vunpack.c.h.b16 %v592
    %v2111 = vunpack.c.l.b16 %v593
    %v2112 = vunpack.c.h.b16 %v593
    %v2113 = vunpack.c.l.b16 %v594
    %v2114 = vunpack.c.h.b16 %v594
    %v2115 = vunpack.c.l.b16 %v595
    %v2116 = vunpack.c.h.b16 %v595
    %v2117 = vunpack.c.l.b16 %v596
    %v2118 = vunpack.c.h.b16 %v596
    %v2119 = vunpack.c.l.b16 %v597
    %v2120 = vunpack.c.h.b16 %v597
    %v2121 = vunpack.c.l.b16 %v598
    %v2122 = vunpack.c.h.b16 %v598
    %v2123 = vunpack.c.l.b16 %v599
    %v2124 = vunpack.c.h.b16 %v599
    %v2125 = vunpack.c.l.b16 %v600
    %v2126 = vunpack.c.h.b16 %v600
    %v2127 = vunpack.c.l.b16 %v601
    %v2128 = vunpack.c.h.b16 %v601
    %v2129 = vunpack.c.l.b16 %v602
    %v2130 = vunpack.c.h.b16 %v602
    %v2131 = vunpack.c.l.b16 %v603
    %v2132 = vunpack.c.h.b16 %v603
    %v2133 = vunpack.c.l.b16 %v604
    %v2134 = vunpack.c.h.b16 %v604
    %v2135 = vunpack.c.l.b16 %v605
    %v2136 = vunpack.c.h.b16 %v605
    %v2137 = vunpack.c.l.b16 %v606
    %v2138 = vunpack.c.h.b16 %v606
    %v2139 = vunpack.c.l.b16 %v607
    %v2140 = vunpack.c.h.b16 %v607
    %v2141 = vunpack.c.l.b16 %v608
    %v2142 = vunpack.c.h.b16 %v608
    %v2143 = vunpack.c.l.b16 %v609
    %v2144 = vunpack.c.h.b16 %v609
    %v2145 = vunpack.c.l.b16 %v610
    %v2146 = vunpack.c.h.b16 %v610
    %v2147 = vunpack.c.l.b16 %v611
    %v2148 = vunpack.c.h.b16 %v611
    %v2149 = vunpack.c.l.b16 %v612
    %v2150 = vunpack.c.h.b16 %v612
    %v2151 = vunpack.c.l.b16 %v613
    %v2152 = vunpack.c.h.b16 %v613
    %v2153 = vunpack.c.l.b16 %v614
    %v2154 = vunpack.c.h.b16 %v614
    %v2155 = vunpack.c.l.b16 %v615
    %v2156 = vunpack.c.h.b16 %v615
    %v2157 = vunpack.c.l.b16 %v616
    %v2158 = vunpack.c.h.b16 %v616
    %v2159 = vunpack.c.l.b16 %v617
    %v2160 = vunpack.c.h.b16 %v617
    %v2161 = vunpack.c.l.b16 %v618
    %v2162 = vunpack.c.h.b16 %v618
    %v2163 = vunpack.c.l.b16 %v619
    %v2164 = vunpack.c.h.b16 %v619
    %v2165 = vunpack.c.l.b16 %v620
    %v2166 = vunpack.c.h.b16 %v620
    %v2167 = vunpack.c.l.b16 %v621
    %v2168 = vunpack.c.h.b16 %v621
    %v2169 = vunpack.c.l.b16 %v622
    %v2170 = vunpack.c.h.b16 %v622
    %v2171 = vunpack.c.l.b16 %v623
    %v2172 = vunpack.c.h.b16 %v623
    %v2173 = vunpack.c.l.b16 %v624
    %v2174 = vunpack.c.h.b16 %v624
    %v2175 = vunpack.c.l.b16 %v625
    %v2176 = vunpack.c.h.b16 %v625
    %v2177 = vunpack.c.l.b16 %v626
    %v2178 = vunpack.c.h.b16 %v626
    %v2179 = vunpack.c.l.b16 %v627
    %v2180 = vunpack.c.h.b16 %v627
    %v2181 = vunpack.c.l.b16 %v628
    %v2182 = vunpack.c.h.b16 %v628
    %v2183 = vunpack.c.l.b16 %v629
    %v2184 = vunpack.c.h.b16 %v629
    %v2185 = vunpack.c.l.b16 %v630
    %v2186 = vunpack.c.h.b16 %v630
    %v2187 = vunpack.c.l.b16 %v631
    %v2188 = vunpack.c.h.b16 %v631
    %v2189 = vunpack.c.l.b16 %v632
    %v2190 = vunpack.c.h.b16 %v632
    %v2191 = vunpack.c.l.b16 %v633
    %v2192 = vunpack.c.h.b16 %v633
    %v2193 = vunpack.c.l.b16 %v634
    %v2194 = vunpack.c.h.b16 %v634
    %v2195 = vunpack.c.l.b16 %v635
    %v2196 = vunpack.c.h.b16 %v635
    %v2197 = vunpack.c.l.b16 %v636
    %v2198 = vunpack.c.h.b16 %v636
    %v2199 = vunpack.c.l.b16 %v637
    %v2200 = vunpack.c.h.b16 %v637
    %v2201 = vunpack.c.l.b16 %v638
    %v2202 = vunpack.c.h.b16 %v638
    %v2203 = vunpack.c.l.b16 %v639
    %v2204 = vunpack.c.h.b16 %v639
    %v2205 = vunpack.c.l.b16 %v640
    %v2206 = vunpack.c.h.b16 %v640
    %v2207 = vunpack.c.l.b16 %v641
    %v2208 = vunpack.c.h.b16 %v641
    %v2209 = vunpack.c.l.b16 %v642
    %v2210 = vunpack.c.h.b16 %v642
    %v2211 = vunpack.c.l.b16 %v643
    %v2212 = vunpack.c.h.b16 %v643
    %v2213 = vunpack.c.l.b16 %v644
    %v2214 = vunpack.c.h.b16 %v644
    %v2215 = vunpack.c.l.b16 %v645
    %v2216 = vunpack.c.h.b16 %v645
    %v2217 = vunpack.c.l.b16 %v646
    %v2218 = vunpack.c.h.b16 %v646
    %v2219 = vunpack.c.l.b16 %v647
    %v2220 = vunpack.c.h.b16 %v647
    %v2221 = vunpack.c.l.b16 %v648
    %v2222 = vunpack.c.h.b16 %v648
    %v2223 = vunpack.c.l.b16 %v649
    %v2224 = vunpack.c.h.b16 %v649
    %v2225 = vunpack.c.l.b16 %v650
    %v2226 = vunpack.c.h.b16 %v650
    %v2227 = vunpack.c.l.b16 %v651
    %v2228 = vunpack.c.h.b16 %v651
    %v2229 = vunpack.c.l.b16 %v652
    %v2230 = vunpack.c.h.b16 %v652
    %v2231 = vpack.c.b16 %v1215, %v1207
    %v2232 = vpack.c.b16 %v1216, %v1208
    %v2233 = vpack.c.b16 %v1217, %v1209
    %v2234 = vpack.c.b16 %v1218, %v1210
    %v2235 = vpack.c.b16 %v1219, %v1211
    %v2236 = vpack.c.b16 %v1220, %v1212
    %v2237 = vpack.c.b16 %v1221, %v1213
    %v2238 = vpack.c.b16 %v1222, %v1214
    %v2239 = vpack.c.b16 %v1231, %v1223
    %v2240 = vpack.c.b16 %v1232, %v1224
    %v2241 = vpack.c.b16 %v1233, %v1225
    %v2242 = vpack.c.b16 %v1234, %v1226
    %v2243 = vpack.c.b16 %v1235, %v1227
    %v2244 = vpack.c.b16 %v1236, %v1228
    %v2245 = vpack.c.b16 %v1237, %v1229
    %v2246 = vpack.c.b16 %v1238, %v1230
    %v2247 = vpack.c.b16 %v1247, %v1239
    %v2248 = vpack.c.b16 %v1248, %v1240
    %v2249 = vpack.c.b16 %v1249, %v1241
    %v2250 = vpack.c.b16 %v1250, %v1242
    %v2251 = vpack.c.b16 %v1251, %v1243
    %v2252 = vpack.c.b16 %v1252, %v1244
    %v2253 = vpack.c.b16 %v1253, %v1245
    %v2254 = vpack.c.b16 %v1254, %v1246
    %v2255 = vpack.c.b16 %v1263, %v1255
    %v2256 = vpack.c.b16 %v1264, %v1256
    %v2257 = vpack.c.b16 %v1265, %v1257
    %v2258 = vpack.c.b16 %v1266, %v1258
    %v2259 = vpack.c.b16 %v1267, %v1259
    %v2260 = vpack.c.b16 %v1268, %v1260
    %v2261 = vpack.c.b16 %v1269, %v1261
    %v2262 = vpack.c.b16 %v1270, %v1262
    %v2263 = vpack.c.b16 %v1279, %v1271
    %v2264 = vpack.c.b16 %v1280, %v1272
    %v2265 = vpack.c.b16 %v1281, %v1273
    %v2266 = vpack.c.b16 %v1282, %v1274
    %v2267 = vpack.c.b16 %v1283, %v1275
    %v2268 = vpack.c.b16 %v1284, %v1276
    %v2269 = vpack.c.b16 %v1285, %v1277
    %v2270 = vpack.c.b16 %v1286, %v1278
    %v2271 = vpack.c.b16 %v1295, %v1287
    %v2272 = vpack.c.b16 %v1296, %v1288
    %v2273 = vpack.c.b16 %v1297, %v1289
    %v2274 = vpack.c.b16 %v1298, %v1290
    %v2275 = vpack.c.b16 %v1299, %v1291
    %v2276 = vpack.c.b16 %v1300, %v1292
    %v2277 = vpack.c.b16 %v1301, %v1293
    %v2278 = vpack.c.b16 %v1302, %v1294
    %v2279 = vpack.c.b16 %v1311, %v1303
    %v2280 = vpack.c.b16 %v1312, %v1304
    %v2281 = vpack.c.b16 %v1313, %v1305
    %v2282 = vpack.c.b16 %v1314, %v1306
    %v2283 = vpack.c.b16 %v1315, %v1307
    %v2284 = vpack.c.b16 %v1316, %v1308
    %v2285 = vpack.c.b16 %v1317, %v1309
    %v2286 = vpack.c.b16 %v1318, %v1310
    %v2287 = vpack.c.b16 %v1327, %v1319
    %v2288 = vpack.c.b16 %v1328, %v1320
    %v2289 = vpack.c.b16 %v1329, %v1321
    %v2290 = vpack.c.b16 %v1330, %v1322
    %v2291 = vpack.c.b16 %v1331, %v1323
    %v2292 = vpack.c.b16 %v1332, %v1324
    %v2293 = vpack.c.b16 %v1333, %v1325
    %v2294 = vpack.c.b16 %v1334, %v1326
    %v2295 = vpack.c.b16 %v1343, %v1335
    %v2296 = vpack.c.b16 %v1344, %v1336
    %v2297 = vpack.c.b16 %v1345, %v1337
    %v2298 = vpack.c.b16 %v1346, %v1338
    %v2299 = vpack.c.b16 %v1347, %v1339
    %v2300 = vpack.c.b16 %v1348, %v1340
    %v2301 = vpack.c.b16 %v1349, %v1341
    %v2302 = vpack.c.b16 %v1350, %v1342
    %v2303 = vpack.c.b16 %v1359, %v1351
    %v2304 = vpack.c.b16 %v1360, %v1352
    %v2305 = vpack.c.b16 %v1361, %v1353
    %v2306 = vpack.c.b16 %v1362, %v1354
    %v2307 = vpack.c.b16 %v1363, %v1355
    %v2308 = vpack.c.b16 %v1364, %v1356
    %v2309 = vpack.c.b16 %v1365, %v1357
    %v2310 = vpack.c.b16 %v1366, %v1358
    %v2311 = vpack.c.b16 %v1375, %v1367
    %v2312 = vpack.c.b16 %v1376, %v1368
    %v2313 = vpack.c.b16 %v1377, %v1369
    %v2314 = vpack.c.b16 %v1378, %v1370
    %v2315 = vpack.c.b16 %v1379, %v1371
    %v2316 = vpack.c.b16 %v1380, %v1372
    %v2317 = vpack.c.b16 %v1381, %v1373
    %v2318 = vpack.c.b16 %v1382, %v1374
    %v2319 = vpack.c.b16 %v1391, %v1383
    %v2320 = vpack.c.b16 %v1392, %v1384
    %v2321 = vpack.c.b16 %v1393, %v1385
    %v2322 = vpack.c.b16 %v1394, %v1386
    %v2323 = vpack.c.b16 %v1395, %v1387
    %v2324 = vpack.c.b16 %v1396, %v1388
    %v2325 = vpack.c.b16 %v1397, %v1389
    %v2326 = vpack.c.b16 %v1398, %v1390
    %v2327 = vpack.c.b16 %v1407, %v1399
    %v2328 = vpack.c.b16 %v1408, %v1400
    %v2329 = vpack.c.b16 %v1409, %v1401
    %v2330 = vpack.c.b16 %v1410, %v1402
    %v2331 = vpack.c.b16 %v1411, %v1403
    %v2332 = vpack.c.b16 %v1412, %v1404
    %v2333 = vpack.c.b16 %v1413, %v1405
    %v2334 = vpack.c.b16 %v1414, %v1406
    %v2335 = vpack.c.b16 %v1423, %v1415
    %v2336 = vpack.c.b16 %v1424, %v1416
    %v2337 = vpack.c.b16 %v1425, %v1417
    %v2338 = vpack.c.b16 %v1426, %v1418
    %v2339 = vpack.c.b16 %v1427, %v1419
    %v2340 = vpack.c.b16 %v1428, %v1420
    %v2341 = vpack.c.b16 %v1429, %v1421
    %v2342 = vpack.c.b16 %v1430, %v1422
    %v2343 = vpack.c.b16 %v1439, %v1431
    %v2344 = vpack.c.b16 %v1440, %v1432
    %v2345 = vpack.c.b16 %v1441, %v1433
    %v2346 = vpack.c.b16 %v1442, %v1434
    %v2347 = vpack.c.b16 %v1443, %v1435
    %v2348 = vpack.c.b16 %v1444, %v1436
    %v2349 = vpack.c.b16 %v1445, %v1437
    %v2350 = vpack.c.b16 %v1446, %v1438
    %v2351 = vpack.c.b16 %v1455, %v1447
    %v2352 = vpack.c.b16 %v1456, %v1448
    %v2353 = vpack.c.b16 %v1457, %v1449
    %v2354 = vpack.c.b16 %v1458, %v1450
    %v2355 = vpack.c.b16 %v1459, %v1451
    %v2356 = vpack.c.b16 %v1460, %v1452
    %v2357 = vpack.c.b16 %v1461, %v1453
    %v2358 = vpack.c.b16 %v1462, %v1454
    %v2359 = vpack.c.b16 %v1471, %v1463
    %v2360 = vpack.c.b16 %v1472, %v1464
    %v2361 = vpack.c.b16 %v1473, %v1465
    %v2362 = vpack.c.b16 %v1474, %v1466
    %v2363 = vpack.c.b16 %v1475, %v1467
    %v2364 = vpack.c.b16 %v1476, %v1468
    %v2365 = vpack.c.b16 %v1477, %v1469
    %v2366 = vpack.c.b16 %v1478, %v1470
    %v2367 = vpack.c.b16 %v1487, %v1479
    %v2368 = vpack.c.b16 %v1488, %v1480
    %v2369 = vpack.c.b16 %v1489, %v1481
    %v2370 = vpack.c.b16 %v1490, %v1482
    %v2371 = vpack.c.b16 %v1491, %v1483
    %v2372 = vpack.c.b16 %v1492, %v1484
    %v2373 = vpack.c.b16 %v1493, %v1485
    %v2374 = vpack.c.b16 %v1494, %v1486
    %v2375 = vpack.c.b16 %v1503, %v1495
    %v2376 = vpack.c.b16 %v1504, %v1496
    %v2377 = vpack.c.b16 %v1505, %v1497
    %v2378 = vpack.c.b16 %v1506, %v1498
    %v2379 = vpack.c.b16 %v1507, %v1499
    %v2380 = vpack.c.b16 %v1508, %v1500
    %v2381 = vpack.c.b16 %v1509, %v1501
    %v2382 = vpack.c.b16 %v1510, %v1502
    %v2383 = vpack.c.b16 %v1519, %v1511
    %v2384 = vpack.c.b16 %v1520, %v1512
    %v2385 = vpack.c.b16 %v1521, %v1513
    %v2386 = vpack.c.b16 %v1522, %v1514
    %v2387 = vpack.c.b16 %v1523, %v1515
    %v2388 = vpack.c.b16 %v1524, %v1516
    %v2389 = vpack.c.b16 %v1525, %v1517
    %v2390 = vpack.c.b16 %v1526, %v1518
    %v2391 = vpack.c.b16 %v1535, %v1527
    %v2392 = vpack.c.b16 %v1536, %v1528
    %v2393 = vpack.c.b16 %v1537, %v1529
    %v2394 = vpack.c.b16 %v1538, %v1530
    %v2395 = vpack.c.b16 %v1539, %v1531
    %v2396 = vpack.c.b16 %v1540, %v1532
    %v2397 = vpack.c.b16 %v1541, %v1533
    %v2398 = vpack.c.b16 %v1542, %v1534
    %v2399 = vpack.c.b16 %v1551, %v1543
    %v2400 = vpack.c.b16 %v1552, %v1544
    %v2401 = vpack.c.b16 %v1553, %v1545
    %v2402 = vpack.c.b16 %v1554, %v1546
    %v2403 = vpack.c.b16 %v1555, %v1547
    %v2404 = vpack.c.b16 %v1556, %v1548
    %v2405 = vpack.c.b16 %v1557, %v1549
    %v2406 = vpack.c.b16 %v1558, %v1550
    %v2407 = vpack.c.b16 %v1567, %v1559
    %v2408 = vpack.c.b16 %v1568, %v1560
    %v2409 = vpack.c.b16 %v1569, %v1561
    %v2410 = vpack.c.b16 %v1570, %v1562
    %v2411 = vpack.c.b16 %v1571, %v1563
    %v2412 = vpack.c.b16 %v1572, %v1564
    %v2413 = vpack.c.b16 %v1573, %v1565
    %v2414 = vpack.c.b16 %v1574, %v1566
    %v2415 = vpack.c.b16 %v1583, %v1575
    %v2416 = vpack.c.b16 %v1584, %v1576
    %v2417 = vpack.c.b16 %v1585, %v1577
    %v2418 = vpack.c.b16 %v1586, %v1578
    %v2419 = vpack.c.b16 %v1587, %v1579
    %v2420 = vpack.c.b16 %v1588, %v1580
    %v2421 = vpack.c.b16 %v1589, %v1581
    %v2422 = vpack.c.b16 %v1590, %v1582
    %v2423 = vpack.c.b16 %v1599, %v1591
    %v2424 = vpack.c.b16 %v1600, %v1592
    %v2425 = vpack.c.b16 %v1601, %v1593
    %v2426 = vpack.c.b16 %v1602, %v1594
    %v2427 = vpack.c.b16 %v1603, %v1595
    %v2428 = vpack.c.b16 %v1604, %v1596
    %v2429 = vpack.c.b16 %v1605, %v1597
    %v2430 = vpack.c.b16 %v1606, %v1598
    %v2431 = vpack.c.b16 %v1615, %v1607
    %v2432 = vpack.c.b16 %v1616, %v1608
    %v2433 = vpack.c.b16 %v1617, %v1609
    %v2434 = vpack.c.b16 %v1618, %v1610
    %v2435 = vpack.c.b16 %v1619, %v1611
    %v2436 = vpack.c.b16 %v1620, %v1612
    %v2437 = vpack.c.b16 %v1621, %v1613
    %v2438 = vpack.c.b16 %v1622, %v1614
    %v2439 = vpack.c.b16 %v1631, %v1623
    %v2440 = vpack.c.b16 %v1632, %v1624
    %v2441 = vpack.c.b16 %v1633, %v1625
    %v2442 = vpack.c.b16 %v1634, %v1626
    %v2443 = vpack.c.b16 %v1635, %v1627
    %v2444 = vpack.c.b16 %v1636, %v1628
    %v2445 = vpack.c.b16 %v1637, %v1629
    %v2446 = vpack.c.b16 %v1638, %v1630
    %v2447 = vpack.c.b16 %v1647, %v1639
    %v2448 = vpack.c.b16 %v1648, %v1640
    %v2449 = vpack.c.b16 %v1649, %v1641
    %v2450 = vpack.c.b16 %v1650, %v1642
    %v2451 = vpack.c.b16 %v1651, %v1643
    %v2452 = vpack.c.b16 %v1652, %v1644
    %v2453 = vpack.c.b16 %v1653, %v1645
    %v2454 = vpack.c.b16 %v1654, %v1646
    %v2455 = vpack.c.b16 %v1663, %v1655
    %v2456 = vpack.c.b16 %v1664, %v1656
    %v2457 = vpack.c.b16 %v1665, %v1657
    %v2458 = vpack.c.b16 %v1666, %v1658
    %v2459 = vpack.c.b16 %v1667, %v1659
    %v2460 = vpack.c.b16 %v1668, %v1660
    %v2461 = vpack.c.b16 %v1669, %v1661
    %v2462 = vpack.c.b16 %v1670, %v1662
    %v2463 = vpack.c.b16 %v1679, %v1671
    %v2464 = vpack.c.b16 %v1680, %v1672
    %v2465 = vpack.c.b16 %v1681, %v1673
    %v2466 = vpack.c.b16 %v1682, %v1674
    %v2467 = vpack.c.b16 %v1683, %v1675
    %v2468 = vpack.c.b16 %v1684, %v1676
    %v2469 = vpack.c.b16 %v1685, %v1677
    %v2470 = vpack.c.b16 %v1686, %v1678
    %v2471 = vpack.c.b16 %v1695, %v1687
    %v2472 = vpack.c.b16 %v1696, %v1688
    %v2473 = vpack.c.b16 %v1697, %v1689
    %v2474 = vpack.c.b16 %v1698, %v1690
    %v2475 = vpack.c.b16 %v1699, %v1691
    %v2476 = vpack.c.b16 %v1700, %v1692
    %v2477 = vpack.c.b16 %v1701, %v1693
    %v2478 = vpack.c.b16 %v1702, %v1694
    %v2479 = vpack.c.b16 %v1711, %v1703
    %v2480 = vpack.c.b16 %v1712, %v1704
    %v2481 = vpack.c.b16 %v1713, %v1705
    %v2482 = vpack.c.b16 %v1714, %v1706
    %v2483 = vpack.c.b16 %v1715, %v1707
    %v2484 = vpack.c.b16 %v1716, %v1708
    %v2485 = vpack.c.b16 %v1717, %v1709
    %v2486 = vpack.c.b16 %v1718, %v1710
    %v2487 = vpack.c.b16 %v1727, %v1719
    %v2488 = vpack.c.b16 %v1728, %v1720
    %v2489 = vpack.c.b16 %v1729, %v1721
    %v2490 = vpack.c.b16 %v1730, %v1722
    %v2491 = vpack.c.b16 %v1731, %v1723
    %v2492 = vpack.c.b16 %v1732, %v1724
    %v2493 = vpack.c.b16 %v1733, %v1725
    %v2494 = vpack.c.b16 %v1734, %v1726
    %v2495 = vpack.c.b16 %v1743, %v1735
    %v2496 = vpack.c.b16 %v1744, %v1736
    %v2497 = vpack.c.b16 %v1745, %v1737
    %v2498 = vpack.c.b16 %v1746, %v1738
    %v2499 = vpack.c.b16 %v1747, %v1739
    %v2500 = vpack.c.b16 %v1748, %v1740
    %v2501 = vpack.c.b16 %v1749, %v1741
    %v2502 = vpack.c.b16 %v1750, %v1742
    %v2503 = vpack.c.b16 %v1759, %v1751
    %v2504 = vpack.c.b16 %v1760, %v1752
    %v2505 = vpack.c.b16 %v1761, %v1753
    %v2506 = vpack.c.b16 %v1762, %v1754
    %v2507 = vpack.c.b16 %v1763, %v1755
    %v2508 = vpack.c.b16 %v1764, %v1756
    %v2509 = vpack.c.b16 %v1765, %v1757
    %v2510 = vpack.c.b16 %v1766, %v1758
    %v2511 = vpack.c.b16 %v1775, %v1767
    %v2512 = vpack.c.b16 %v1776, %v1768
    %v2513 = vpack.c.b16 %v1777, %v1769
    %v2514 = vpack.c.b16 %v1778, %v1770
    %v2515 = vpack.c.b16 %v1779, %v1771
    %v2516 = vpack.c.b16 %v1780, %v1772
    %v2517 = vpack.c.b16 %v1781, %v1773
    %v2518 = vpack.c.b16 %v1782, %v1774
    %v2519 = vpack.c.b16 %v1791, %v1783
    %v2520 = vpack.c.b16 %v1792, %v1784
    %v2521 = vpack.c.b16 %v1793, %v1785
    %v2522 = vpack.c.b16 %v1794, %v1786
    %v2523 = vpack.c.b16 %v1795, %v1787
    %v2524 = vpack.c.b16 %v1796, %v1788
    %v2525 = vpack.c.b16 %v1797, %v1789
    %v2526 = vpack.c.b16 %v1798, %v1790
    %v2527 = vpack.c.b16 %v1807, %v1799
    %v2528 = vpack.c.b16 %v1808, %v1800
    %v2529 = vpack.c.b16 %v1809, %v1801
    %v2530 = vpack.c.b16 %v1810, %v1802
    %v2531 = vpack.c.b16 %v1811, %v1803
    %v2532 = vpack.c.b16 %v1812, %v1804
    %v2533 = vpack.c.b16 %v1813, %v1805
    %v2534 = vpack.c.b16 %v1814, %v1806
    %v2535 = vpack.c.b16 %v1823, %v1815
    %v2536 = vpack.c.b16 %v1824, %v1816
    %v2537 = vpack.c.b16 %v1825, %v1817
    %v2538 = vpack.c.b16 %v1826, %v1818
    %v2539 = vpack.c.b16 %v1827, %v1819
    %v2540 = vpack.c.b16 %v1828, %v1820
    %v2541 = vpack.c.b16 %v1829, %v1821
    %v2542 = vpack.c.b16 %v1830, %v1822
    %v2543 = vpack.c.b16 %v1839, %v1831
    %v2544 = vpack.c.b16 %v1840, %v1832
    %v2545 = vpack.c.b16 %v1841, %v1833
    %v2546 = vpack.c.b16 %v1842, %v1834
    %v2547 = vpack.c.b16 %v1843, %v1835
    %v2548 = vpack.c.b16 %v1844, %v1836
    %v2549 = vpack.c.b16 %v1845, %v1837
    %v2550 = vpack.c.b16 %v1846, %v1838
    %v2551 = vpack.c.b16 %v1855, %v1847
    %v2552 = vpack.c.b16 %v1856, %v1848
    %v2553 = vpack.c.b16 %v1857, %v1849
    %v2554 = vpack.c.b16 %v1858, %v1850
    %v2555 = vpack.c.b16 %v1859, %v1851
    %v2556 = vpack.c.b16 %v1860, %v1852
    %v2557 = vpack.c.b16 %v1861, %v1853
    %v2558 = vpack.c.b16 %v1862, %v1854
    %v2559 = vpack.c.b16 %v1871, %v1863
    %v2560 = vpack.c.b16 %v1872, %v1864
    %v2561 = vpack.c.b16 %v1873, %v1865
    %v2562 = vpack.c.b16 %v1874, %v1866
    %v2563 = vpack.c.b16 %v1875, %v1867
    %v2564 = vpack.c.b16 %v1876, %v1868
    %v2565 = vpack.c.b16 %v1877, %v1869
    %v2566 = vpack.c.b16 %v1878, %v1870
    %v2567 = vpack.c.b16 %v1887, %v1879
    %v2568 = vpack.c.b16 %v1888, %v1880
    %v2569 = vpack.c.b16 %v1889, %v1881
    %v2570 = vpack.c.b16 %v1890, %v1882
    %v2571 = vpack.c.b16 %v1891, %v1883
    %v2572 = vpack.c.b16 %v1892, %v1884
    %v2573 = vpack.c.b16 %v1893, %v1885
    %v2574 = vpack.c.b16 %v1894, %v1886
    %v2575 = vpack.c.b16 %v1903, %v1895
    %v2576 = vpack.c.b16 %v1904, %v1896
    %v2577 = vpack.c.b16 %v1905, %v1897
    %v2578 = vpack.c.b16 %v1906, %v1898
    %v2579 = vpack.c.b16 %v1907, %v1899
    %v2580 = vpack.c.b16 %v1908, %v1900
    %v2581 = vpack.c.b16 %v1909, %v1901
    %v2582 = vpack.c.b16 %v1910, %v1902
    %v2583 = vpack.c.b16 %v1919, %v1911
    %v2584 = vpack.c.b16 %v1920, %v1912
    %v2585 = vpack.c.b16 %v1921, %v1913
    %v2586 = vpack.c.b16 %v1922, %v1914
    %v2587 = vpack.c.b16 %v1923, %v1915
    %v2588 = vpack.c.b16 %v1924, %v1916
    %v2589 = vpack.c.b16 %v1925, %v1917
    %v2590 = vpack.c.b16 %v1926, %v1918
    %v2591 = vpack.c.b16 %v1935, %v1927
    %v2592 = vpack.c.b16 %v1936, %v1928
    %v2593 = vpack.c.b16 %v1937, %v1929
    %v2594 = vpack.c.b16 %v1938, %v1930
    %v2595 = vpack.c.b16 %v1939, %v1931
    %v2596 = vpack.c.b16 %v1940, %v1932
    %v2597 = vpack.c.b16 %v1941, %v1933
    %v2598 = vpack.c.b16 %v1942, %v1934
    %v2599 = vpack.c.b16 %v1951, %v1943
    %v2600 = vpack.c.b16 %v1952, %v1944
    %v2601 = vpack.c.b16 %v1953, %v1945
    %v2602 = vpack.c.b16 %v1954, %v1946
    %v2603 = vpack.c.b16 %v1955, %v1947
    %v2604 = vpack.c.b16 %v1956, %v1948
    %v2605 = vpack.c.b16 %v1957, %v1949
    %v2606 = vpack.c.b16 %v1958, %v1950
    %v2607 = vpack.c.b16 %v1967, %v1959
    %v2608 = vpack.c.b16 %v1968, %v1960
    %v2609 = vpack.c.b16 %v1969, %v1961
    %v2610 = vpack.c.b16 %v1970, %v1962
    %v2611 = vpack.c.b16 %v1971, %v1963
    %v2612 = vpack.c.b16 %v1972, %v1964
    %v2613 = vpack.c.b16 %v1973, %v1965
    %v2614 = vpack.c.b16 %v1974, %v1966
    %v2615 = vpack.c.b16 %v1983, %v1975
    %v2616 = vpack.c.b16 %v1984, %v1976
    %v2617 = vpack.c.b16 %v1985, %v1977
    %v2618 = vpack.c.b16 %v1986, %v1978
    %v2619 = vpack.c.b16 %v1987, %v1979
    %v2620 = vpack.c.b16 %v1988, %v1980
    %v2621 = vpack.c.b16 %v1989, %v1981
    %v2622 = vpack.c.b16 %v1990, %v1982
    %v2623 = vpack.c.b16 %v1999, %v1991
    %v2624 = vpack.c.b16 %v2000, %v1992
    %v2625 = vpack.c.b16 %v2001, %v1993
    %v2626 = vpack.c.b16 %v2002, %v1994
    %v2627 = vpack.c.b16 %v2003, %v1995
    %v2628 = vpack.c.b16 %v2004, %v1996
    %v2629 = vpack.c.b16 %v2005, %v1997
    %v2630 = vpack.c.b16 %v2006, %v1998
    %v2631 = vpack.c.b16 %v2015, %v2007
    %v2632 = vpack.c.b16 %v2016, %v2008
    %v2633 = vpack.c.b16 %v2017, %v2009
    %v2634 = vpack.c.b16 %v2018, %v2010
    %v2635 = vpack.c.b16 %v2019, %v2011
    %v2636 = vpack.c.b16 %v2020, %v2012
    %v2637 = vpack.c.b16 %v2021, %v2013
    %v2638 = vpack.c.b16 %v2022, %v2014
    %v2639 = vpack.c.b16 %v2031, %v2023
    %v2640 = vpack.c.b16 %v2032, %v2024
    %v2641 = vpack.c.b16 %v2033, %v2025
    %v2642 = vpack.c.b16 %v2034, %v2026
    %v2643 = vpack.c.b16 %v2035, %v2027
    %v2644 = vpack.c.b16 %v2036, %v2028
    %v2645 = vpack.c.b16 %v2037, %v2029
    %v2646 = vpack.c.b16 %v2038, %v2030
    %v2647 = vpack.c.b16 %v2047, %v2039
    %v2648 = vpack.c.b16 %v2048, %v2040
    %v2649 = vpack.c.b16 %v2049, %v2041
    %v2650 = vpack.c.b16 %v2050, %v2042
    %v2651 = vpack.c.b16 %v2051, %v2043
    %v2652 = vpack.c.b16 %v2052, %v2044
    %v2653 = vpack.c.b16 %v2053, %v2045
    %v2654 = vpack.c.b16 %v2054, %v2046
    %v2655 = vpack.c.b16 %v2063, %v2055
    %v2656 = vpack.c.b16 %v2064, %v2056
    %v2657 = vpack.c.b16 %v2065, %v2057
    %v2658 = vpack.c.b16 %v2066, %v2058
    %v2659 = vpack.c.b16 %v2067, %v2059
    %v2660 = vpack.c.b16 %v2068, %v2060
    %v2661 = vpack.c.b16 %v2069, %v2061
    %v2662 = vpack.c.b16 %v2070, %v2062
    %v2663 = vpack.c.b16 %v2079, %v2071
    %v2664 = vpack.c.b16 %v2080, %v2072
    %v2665 = vpack.c.b16 %v2081, %v2073
    %v2666 = vpack.c.b16 %v2082, %v2074
    %v2667 = vpack.c.b16 %v2083, %v2075
    %v2668 = vpack.c.b16 %v2084, %v2076
    %v2669 = vpack.c.b16 %v2085, %v2077
    %v2670 = vpack.c.b16 %v2086, %v2078
    %v2671 = vpack.c.b16 %v2095, %v2087
    %v2672 = vpack.c.b16 %v2096, %v2088
    %v2673 = vpack.c.b16 %v2097, %v2089
    %v2674 = vpack.c.b16 %v2098, %v2090
    %v2675 = vpack.c.b16 %v2099, %v2091
    %v2676 = vpack.c.b16 %v2100, %v2092
    %v2677 = vpack.c.b16 %v2101, %v2093
    %v2678 = vpack.c.b16 %v2102, %v2094
    %v2679 = vpack.c.b16 %v2111, %v2103
    %v2680 = vpack.c.b16 %v2112, %v2104
    %v2681 = vpack.c.b16 %v2113, %v2105
    %v2682 = vpack.c.b16 %v2114, %v2106
    %v2683 = vpack.c.b16 %v2115, %v2107
    %v2684 = vpack.c.b16 %v2116, %v2108
    %v2685 = vpack.c.b16 %v2117, %v2109
    %v2686 = vpack.c.b16 %v2118, %v2110
    %v2687 = vpack.c.b16 %v2127, %v2119
    %v2688 = vpack.c.b16 %v2128, %v2120
    %v2689 = vpack.c.b16 %v2129, %v2121
    %v2690 = vpack.c.b16 %v2130, %v2122
    %v2691 = vpack.c.b16 %v2131, %v2123
    %v2692 = vpack.c.b16 %v2132, %v2124
    %v2693 = vpack.c.b16 %v2133, %v2125
    %v2694 = vpack.c.b16 %v2134, %v2126
    %v2695 = vpack.c.b16 %v2143, %v2135
    %v2696 = vpack.c.b16 %v2144, %v2136
    %v2697 = vpack.c.b16 %v2145, %v2137
    %v2698 = vpack.c.b16 %v2146, %v2138
    %v2699 = vpack.c.b16 %v2147, %v2139
    %v2700 = vpack.c.b16 %v2148, %v2140
    %v2701 = vpack.c.b16 %v2149, %v2141
    %v2702 = vpack.c.b16 %v2150, %v2142
    %v2703 = vpack.c.b16 %v2159, %v2151
    %v2704 = vpack.c.b16 %v2160, %v2152
    %v2705 = vpack.c.b16 %v2161, %v2153
    %v2706 = vpack.c.b16 %v2162, %v2154
    %v2707 = vpack.c.b16 %v2163, %v2155
    %v2708 = vpack.c.b16 %v2164, %v2156
    %v2709 = vpack.c.b16 %v2165, %v2157
    %v2710 = vpack.c.b16 %v2166, %v2158
    %v2711 = vpack.c.b16 %v2175, %v2167
    %v2712 = vpack.c.b16 %v2176, %v2168
    %v2713 = vpack.c.b16 %v2177, %v2169
    %v2714 = vpack.c.b16 %v2178, %v2170
    %v2715 = vpack.c.b16 %v2179, %v2171
    %v2716 = vpack.c.b16 %v2180, %v2172
    %v2717 = vpack.c.b16 %v2181, %v2173
    %v2718 = vpack.c.b16 %v2182, %v2174
    %v2719 = vpack.c.b16 %v2191, %v2183
    %v2720 = vpack.c.b16 %v2192, %v2184
    %v2721 = vpack.c.b16 %v2193, %v2185
    %v2722 = vpack.c.b16 %v2194, %v2186
    %v2723 = vpack.c.b16 %v2195, %v2187
    %v2724 = vpack.c.b16 %v2196, %v2188
    %v2725 = vpack.c.b16 %v2197, %v2189
    %v2726 = vpack.c.b16 %v2198, %v2190
    %v2727 = vpack.c.b16 %v2207, %v2199
    %v2728 = vpack.c.b16 %v2208, %v2200
    %v2729 = vpack.c.b16 %v2209, %v2201
    %v2730 = vpack.c.b16 %v2210, %v2202
    %v2731 = vpack.c.b16 %v2211, %v2203
    %v2732 = vpack.c.b16 %v2212, %v2204
    %v2733 = vpack.c.b16 %v2213, %v2205
    %v2734 = vpack.c.b16 %v2214, %v2206
    %v2735 = vpack.c.b16 %v2223, %v2215
    %v2736 = vpack.c.b16 %v2224, %v2216
    %v2737 = vpack.c.b16 %v2225, %v2217
    %v2738 = vpack.c.b16 %v2226, %v2218
    %v2739 = vpack.c.b16 %v2227, %v2219
    %v2740 = vpack.c.b16 %v2228, %v2220
    %v2741 = vpack.c.b16 %v2229, %v2221
    %v2742 = vpack.c.b16 %v2230, %v2222
    %3255 = vmatprep.subr.bf16.mxu0 %v2288
    %3256 = vmatpush1.bf16.msra.mxu0 %v2287
    %3257 = vmatprep.subr.bf16.mxu0 %v2280
    %3258 = vmatpush1.bf16.msra.mxu0 %v2279
    %3259 = vmatprep.subr.bf16.mxu0 %v2272
    %3260 = vmatpush1.bf16.msra.mxu0 %v2271
    %3261 = vmatprep.subr.bf16.mxu0 %v2264
    %3262 = vmatpush1.bf16.msra.mxu0 %v2263
    %3263 = vmatprep.subr.bf16.mxu0 %v2256
    %3264 = vmatpush1.bf16.msra.mxu0 %v2255
    %3265 = vmatprep.subr.bf16.mxu0 %v2248
    %3266 = vmatpush1.bf16.msra.mxu0 %v2247
    %3267 = vmatprep.subr.bf16.mxu0 %v2240
    %3268 = vmatpush1.bf16.msra.mxu0 %v2239
    %3269 = vmatprep.subr.bf16.mxu0 %v2232
    %3270 = vmatpush1.bf16.msra.mxu0 %v2231
    %3271 = vmatprep.subr.bf16.mxu0 %v2352
    %3272 = vmatpush2.bf16.msra.mxu0 %v2351
    %3273 = vmatprep.subr.bf16.mxu0 %v2344
    %3274 = vmatpush2.bf16.msra.mxu0 %v2343
    %3275 = vmatprep.subr.bf16.mxu0 %v2336
    %3276 = vmatpush2.bf16.msra.mxu0 %v2335
    %3277 = vmatprep.subr.bf16.mxu0 %v2328
    %3278 = vmatpush2.bf16.msra.mxu0 %v2327
    %3279 = vmatprep.subr.bf16.mxu0 %v2320
    %3280 = vmatpush2.bf16.msra.mxu0 %v2319
    %3281 = vmatprep.subr.bf16.mxu0 %v2312
    %3282 = vmatpush2.bf16.msra.mxu0 %v2311
    %3283 = vmatprep.subr.bf16.mxu0 %v2304
    %3284 = vmatpush2.bf16.msra.mxu0 %v2303
    %3285 = vmatprep.subr.bf16.mxu0 %v2296
    %3286 = vmatpush2.bf16.msra.mxu0 %v2295
    %3287 = vmatprep.mubr.bf16.mxu0 %v134
    %3288 = vmatmul.mubr.bf16.gmra.mxu0 %v133
    %v3289 = vpop.f32.mrf.mxu0
    %v3290 = vadd.f32 %v658, %v3289
    %v3291 = vpop.f32.mrf.mxu0
    %v3292 = vadd.f32 %v662, %v3291
    %v3293 = vpop.f32.mrf.mxu0
    %v3294 = vpop.f32.mrf.mxu0
    %3295 = vdwg.mxu0
    %3296 = vmatprep.subr.bf16.mxu0 %v2416
    %3297 = vmatpush1.bf16.msra.mxu0 %v2415
    %3298 = vmatprep.subr.bf16.mxu0 %v2408
    %3299 = vmatpush1.bf16.msra.mxu0 %v2407
    %3300 = vmatprep.subr.bf16.mxu0 %v2400
    %3301 = vmatpush1.bf16.msra.mxu0 %v2399
    %3302 = vmatprep.subr.bf16.mxu0 %v2392
    %3303 = vmatpush1.bf16.msra.mxu0 %v2391
    %3304 = vmatprep.subr.bf16.mxu0 %v2384
    %3305 = vmatpush1.bf16.msra.mxu0 %v2383
    %3306 = vmatprep.subr.bf16.mxu0 %v2376
    %3307 = vmatpush1.bf16.msra.mxu0 %v2375
    %3308 = vmatprep.subr.bf16.mxu0 %v2368
    %3309 = vmatpush1.bf16.msra.mxu0 %v2367
    %3310 = vmatprep.subr.bf16.mxu0 %v2360
    %3311 = vmatpush1.bf16.msra.mxu0 %v2359
    %3312 = vmatprep.subr.bf16.mxu0 %v2480
    %3313 = vmatpush2.bf16.msra.mxu0 %v2479
    %3314 = vmatprep.subr.bf16.mxu0 %v2472
    %3315 = vmatpush2.bf16.msra.mxu0 %v2471
    %3316 = vmatprep.subr.bf16.mxu0 %v2464
    %3317 = vmatpush2.bf16.msra.mxu0 %v2463
    %3318 = vmatprep.subr.bf16.mxu0 %v2456
    %3319 = vmatpush2.bf16.msra.mxu0 %v2455
    %3320 = vmatprep.subr.bf16.mxu0 %v2448
    %3321 = vmatpush2.bf16.msra.mxu0 %v2447
    %3322 = vmatprep.subr.bf16.mxu0 %v2440
    %3323 = vmatpush2.bf16.msra.mxu0 %v2439
    %3324 = vmatprep.subr.bf16.mxu0 %v2432
    %3325 = vmatpush2.bf16.msra.mxu0 %v2431
    %3326 = vmatprep.subr.bf16.mxu0 %v2424
    %3327 = vmatpush2.bf16.msra.mxu0 %v2423
    %3328 = vmatprep.mubr.bf16.mxu0 %v136
    %3329 = vmatmul.mubr.bf16.gmra.mxu0 %v135
    %v3330 = vpop.f32.mrf.mxu0
    %v3331 = vadd.f32 %v3290, %v3330
    %v3332 = vpop.f32.mrf.mxu0
    %v3333 = vadd.f32 %v3292, %v3332
    %v3334 = vpop.f32.mrf.mxu0
    %v3335 = vpop.f32.mrf.mxu0
    %3336 = vdwg.mxu0
    %3337 = vmatprep.subr.bf16.mxu0 %v2544
    %3338 = vmatpush1.bf16.msra.mxu0 %v2543
    %3339 = vmatprep.subr.bf16.mxu0 %v2536
    %3340 = vmatpush1.bf16.msra.mxu0 %v2535
    %3341 = vmatprep.subr.bf16.mxu0 %v2528
    %3342 = vmatpush1.bf16.msra.mxu0 %v2527
    %3343 = vmatprep.subr.bf16.mxu0 %v2520
    %3344 = vmatpush1.bf16.msra.mxu0 %v2519
    %3345 = vmatprep.subr.bf16.mxu0 %v2512
    %3346 = vmatpush1.bf16.msra.mxu0 %v2511
    %3347 = vmatprep.subr.bf16.mxu0 %v2504
    %3348 = vmatpush1.bf16.msra.mxu0 %v2503
    %3349 = vmatprep.subr.bf16.mxu0 %v2496
    %3350 = vmatpush1.bf16.msra.mxu0 %v2495
    %3351 = vmatprep.subr.bf16.mxu0 %v2488
    %3352 = vmatpush1.bf16.msra.mxu0 %v2487
    %3353 = vmatprep.subr.bf16.mxu0 %v2608
    %3354 = vmatpush2.bf16.msra.mxu0 %v2607
    %3355 = vmatprep.subr.bf16.mxu0 %v2600
    %3356 = vmatpush2.bf16.msra.mxu0 %v2599
    %3357 = vmatprep.subr.bf16.mxu0 %v2592
    %3358 = vmatpush2.bf16.msra.mxu0 %v2591
    %3359 = vmatprep.subr.bf16.mxu0 %v2584
    %3360 = vmatpush2.bf16.msra.mxu0 %v2583
    %3361 = vmatprep.subr.bf16.mxu0 %v2576
    %3362 = vmatpush2.bf16.msra.mxu0 %v2575
    %3363 = vmatprep.subr.bf16.mxu0 %v2568
    %3364 = vmatpush2.bf16.msra.mxu0 %v2567
    %3365 = vmatprep.subr.bf16.mxu0 %v2560
    %3366 = vmatpush2.bf16.msra.mxu0 %v2559
    %3367 = vmatprep.subr.bf16.mxu0 %v2552
    %3368 = vmatpush2.bf16.msra.mxu0 %v2551
    %3369 = vmatprep.mubr.bf16.mxu0 %v138
    %3370 = vmatmul.mubr.bf16.gmra.mxu0 %v137
    %v3371 = vpop.f32.mrf.mxu0
    %v3372 = vadd.f32 %v3331, %v3371
    %v3373 = vpop.f32.mrf.mxu0
    %v3374 = vadd.f32 %v3333, %v3373
    %v3375 = vpop.f32.mrf.mxu0
    %v3376 = vpop.f32.mrf.mxu0
    %3377 = vdwg.mxu0
    %3378 = vmatprep.subr.bf16.mxu0 %v2672
    %3379 = vmatpush1.bf16.msra.mxu0 %v2671
    %3380 = vmatprep.subr.bf16.mxu0 %v2664
    %3381 = vmatpush1.bf16.msra.mxu0 %v2663
    %3382 = vmatprep.subr.bf16.mxu0 %v2656
    %3383 = vmatpush1.bf16.msra.mxu0 %v2655
    %3384 = vmatprep.subr.bf16.mxu0 %v2648
    %3385 = vmatpush1.bf16.msra.mxu0 %v2647
    %3386 = vmatprep.subr.bf16.mxu0 %v2640
    %3387 = vmatpush1.bf16.msra.mxu0 %v2639
    %3388 = vmatprep.subr.bf16.mxu0 %v2632
    %3389 = vmatpush1.bf16.msra.mxu0 %v2631
    %3390 = vmatprep.subr.bf16.mxu0 %v2624
    %3391 = vmatpush1.bf16.msra.mxu0 %v2623
    %3392 = vmatprep.subr.bf16.mxu0 %v2616
    %3393 = vmatpush1.bf16.msra.mxu0 %v2615
    %3394 = vmatprep.subr.bf16.mxu0 %v2736
    %3395 = vmatpush2.bf16.msra.mxu0 %v2735
    %3396 = vmatprep.subr.bf16.mxu0 %v2728
    %3397 = vmatpush2.bf16.msra.mxu0 %v2727
    %3398 = vmatprep.subr.bf16.mxu0 %v2720
    %3399 = vmatpush2.bf16.msra.mxu0 %v2719
    %3400 = vmatprep.subr.bf16.mxu0 %v2712
    %3401 = vmatpush2.bf16.msra.mxu0 %v2711
    %3402 = vmatprep.subr.bf16.mxu0 %v2704
    %3403 = vmatpush2.bf16.msra.mxu0 %v2703
    %3404 = vmatprep.subr.bf16.mxu0 %v2696
    %3405 = vmatpush2.bf16.msra.mxu0 %v2695
    %3406 = vmatprep.subr.bf16.mxu0 %v2688
    %3407 = vmatpush2.bf16.msra.mxu0 %v2687
    %3408 = vmatprep.subr.bf16.mxu0 %v2680
    %3409 = vmatpush2.bf16.msra.mxu0 %v2679
    %3410 = vmatprep.mubr.bf16.mxu0 %v140
    %3411 = vmatmul.mubr.bf16.gmra.mxu0 %v139
    %v3412 = vpop.f32.mrf.mxu0
    %v3413 = vadd.f32 %v3372, %v3412
    %v3414 = vpop.f32.mrf.mxu0
    %v3415 = vadd.f32 %v3374, %v3414
    %v3416 = vpop.f32.mrf.mxu0
    %v3417 = vpop.f32.mrf.mxu0
    %3418 = vdwg.mxu0
    %3419 = vmatprep.subr.bf16.mxu0 %v2290
    %3420 = vmatpush1.bf16.msra.mxu0 %v2289
    %3421 = vmatprep.subr.bf16.mxu0 %v2282
    %3422 = vmatpush1.bf16.msra.mxu0 %v2281
    %3423 = vmatprep.subr.bf16.mxu0 %v2274
    %3424 = vmatpush1.bf16.msra.mxu0 %v2273
    %3425 = vmatprep.subr.bf16.mxu0 %v2266
    %3426 = vmatpush1.bf16.msra.mxu0 %v2265
    %3427 = vmatprep.subr.bf16.mxu0 %v2258
    %3428 = vmatpush1.bf16.msra.mxu0 %v2257
    %3429 = vmatprep.subr.bf16.mxu0 %v2250
    %3430 = vmatpush1.bf16.msra.mxu0 %v2249
    %3431 = vmatprep.subr.bf16.mxu0 %v2242
    %3432 = vmatpush1.bf16.msra.mxu0 %v2241
    %3433 = vmatprep.subr.bf16.mxu0 %v2234
    %3434 = vmatpush1.bf16.msra.mxu0 %v2233
    %3435 = vmatprep.subr.bf16.mxu0 %v2354
    %3436 = vmatpush2.bf16.msra.mxu0 %v2353
    %3437 = vmatprep.subr.bf16.mxu0 %v2346
    %3438 = vmatpush2.bf16.msra.mxu0 %v2345
    %3439 = vmatprep.subr.bf16.mxu0 %v2338
    %3440 = vmatpush2.bf16.msra.mxu0 %v2337
    %3441 = vmatprep.subr.bf16.mxu0 %v2330
    %3442 = vmatpush2.bf16.msra.mxu0 %v2329
    %3443 = vmatprep.subr.bf16.mxu0 %v2322
    %3444 = vmatpush2.bf16.msra.mxu0 %v2321
    %3445 = vmatprep.subr.bf16.mxu0 %v2314
    %3446 = vmatpush2.bf16.msra.mxu0 %v2313
    %3447 = vmatprep.subr.bf16.mxu0 %v2306
    %3448 = vmatpush2.bf16.msra.mxu0 %v2305
    %3449 = vmatprep.subr.bf16.mxu0 %v2298
    %3450 = vmatpush2.bf16.msra.mxu0 %v2297
    %3451 = vmatprep.mubr.bf16.mxu0 %v134
    %3452 = vmatmul.mubr.bf16.gmra.mxu0 %v133
    %v3453 = vpop.f32.mrf.mxu0
    %v3454 = vadd.f32 %v666, %v3453
    %v3455 = vpop.f32.mrf.mxu0
    %v3456 = vadd.f32 %v670, %v3455
    %v3457 = vpop.f32.mrf.mxu0
    %v3458 = vpop.f32.mrf.mxu0
    %3459 = vdwg.mxu0
    %3460 = vmatprep.subr.bf16.mxu0 %v2418
    %3461 = vmatpush1.bf16.msra.mxu0 %v2417
    %3462 = vmatprep.subr.bf16.mxu0 %v2410
    %3463 = vmatpush1.bf16.msra.mxu0 %v2409
    %3464 = vmatprep.subr.bf16.mxu0 %v2402
    %3465 = vmatpush1.bf16.msra.mxu0 %v2401
    %3466 = vmatprep.subr.bf16.mxu0 %v2394
    %3467 = vmatpush1.bf16.msra.mxu0 %v2393
    %3468 = vmatprep.subr.bf16.mxu0 %v2386
    %3469 = vmatpush1.bf16.msra.mxu0 %v2385
    %3470 = vmatprep.subr.bf16.mxu0 %v2378
    %3471 = vmatpush1.bf16.msra.mxu0 %v2377
    %3472 = vmatprep.subr.bf16.mxu0 %v2370
    %3473 = vmatpush1.bf16.msra.mxu0 %v2369
    %3474 = vmatprep.subr.bf16.mxu0 %v2362
    %3475 = vmatpush1.bf16.msra.mxu0 %v2361
    %3476 = vmatprep.subr.bf16.mxu0 %v2482
    %3477 = vmatpush2.bf16.msra.mxu0 %v2481
    %3478 = vmatprep.subr.bf16.mxu0 %v2474
    %3479 = vmatpush2.bf16.msra.mxu0 %v2473
    %3480 = vmatprep.subr.bf16.mxu0 %v2466
    %3481 = vmatpush2.bf16.msra.mxu0 %v2465
    %3482 = vmatprep.subr.bf16.mxu0 %v2458
    %3483 = vmatpush2.bf16.msra.mxu0 %v2457
    %3484 = vmatprep.subr.bf16.mxu0 %v2450
    %3485 = vmatpush2.bf16.msra.mxu0 %v2449
    %3486 = vmatprep.subr.bf16.mxu0 %v2442
    %3487 = vmatpush2.bf16.msra.mxu0 %v2441
    %3488 = vmatprep.subr.bf16.mxu0 %v2434
    %3489 = vmatpush2.bf16.msra.mxu0 %v2433
    %3490 = vmatprep.subr.bf16.mxu0 %v2426
    %3491 = vmatpush2.bf16.msra.mxu0 %v2425
    %3492 = vmatprep.mubr.bf16.mxu0 %v136
    %3493 = vmatmul.mubr.bf16.gmra.mxu0 %v135
    %v3494 = vpop.f32.mrf.mxu0
    %v3495 = vadd.f32 %v3454, %v3494
    %v3496 = vpop.f32.mrf.mxu0
    %v3497 = vadd.f32 %v3456, %v3496
    %v3498 = vpop.f32.mrf.mxu0
    %v3499 = vpop.f32.mrf.mxu0
    %3500 = vdwg.mxu0
    %3501 = vmatprep.subr.bf16.mxu0 %v2546
    %3502 = vmatpush1.bf16.msra.mxu0 %v2545
    %3503 = vmatprep.subr.bf16.mxu0 %v2538
    %3504 = vmatpush1.bf16.msra.mxu0 %v2537
    %3505 = vmatprep.subr.bf16.mxu0 %v2530
    %3506 = vmatpush1.bf16.msra.mxu0 %v2529
    %3507 = vmatprep.subr.bf16.mxu0 %v2522
    %3508 = vmatpush1.bf16.msra.mxu0 %v2521
    %3509 = vmatprep.subr.bf16.mxu0 %v2514
    %3510 = vmatpush1.bf16.msra.mxu0 %v2513
    %3511 = vmatprep.subr.bf16.mxu0 %v2506
    %3512 = vmatpush1.bf16.msra.mxu0 %v2505
    %3513 = vmatprep.subr.bf16.mxu0 %v2498
    %3514 = vmatpush1.bf16.msra.mxu0 %v2497
    %3515 = vmatprep.subr.bf16.mxu0 %v2490
    %3516 = vmatpush1.bf16.msra.mxu0 %v2489
    %3517 = vmatprep.subr.bf16.mxu0 %v2610
    %3518 = vmatpush2.bf16.msra.mxu0 %v2609
    %3519 = vmatprep.subr.bf16.mxu0 %v2602
    %3520 = vmatpush2.bf16.msra.mxu0 %v2601
    %3521 = vmatprep.subr.bf16.mxu0 %v2594
    %3522 = vmatpush2.bf16.msra.mxu0 %v2593
    %3523 = vmatprep.subr.bf16.mxu0 %v2586
    %3524 = vmatpush2.bf16.msra.mxu0 %v2585
    %3525 = vmatprep.subr.bf16.mxu0 %v2578
    %3526 = vmatpush2.bf16.msra.mxu0 %v2577
    %3527 = vmatprep.subr.bf16.mxu0 %v2570
    %3528 = vmatpush2.bf16.msra.mxu0 %v2569
    %3529 = vmatprep.subr.bf16.mxu0 %v2562
    %3530 = vmatpush2.bf16.msra.mxu0 %v2561
    %3531 = vmatprep.subr.bf16.mxu0 %v2554
    %3532 = vmatpush2.bf16.msra.mxu0 %v2553
    %3533 = vmatprep.mubr.bf16.mxu0 %v138
    %3534 = vmatmul.mubr.bf16.gmra.mxu0 %v137
    %v3535 = vpop.f32.mrf.mxu0
    %v3536 = vadd.f32 %v3495, %v3535
    %v3537 = vpop.f32.mrf.mxu0
    %v3538 = vadd.f32 %v3497, %v3537
    %v3539 = vpop.f32.mrf.mxu0
    %v3540 = vpop.f32.mrf.mxu0
    %3541 = vdwg.mxu0
    %3542 = vmatprep.subr.bf16.mxu0 %v2674
    %3543 = vmatpush1.bf16.msra.mxu0 %v2673
    %3544 = vmatprep.subr.bf16.mxu0 %v2666
    %3545 = vmatpush1.bf16.msra.mxu0 %v2665
    %3546 = vmatprep.subr.bf16.mxu0 %v2658
    %3547 = vmatpush1.bf16.msra.mxu0 %v2657
    %3548 = vmatprep.subr.bf16.mxu0 %v2650
    %3549 = vmatpush1.bf16.msra.mxu0 %v2649
    %3550 = vmatprep.subr.bf16.mxu0 %v2642
    %3551 = vmatpush1.bf16.msra.mxu0 %v2641
    %3552 = vmatprep.subr.bf16.mxu0 %v2634
    %3553 = vmatpush1.bf16.msra.mxu0 %v2633
    %3554 = vmatprep.subr.bf16.mxu0 %v2626
    %3555 = vmatpush1.bf16.msra.mxu0 %v2625
    %3556 = vmatprep.subr.bf16.mxu0 %v2618
    %3557 = vmatpush1.bf16.msra.mxu0 %v2617
    %3558 = vmatprep.subr.bf16.mxu0 %v2738
    %3559 = vmatpush2.bf16.msra.mxu0 %v2737
    %3560 = vmatprep.subr.bf16.mxu0 %v2730
    %3561 = vmatpush2.bf16.msra.mxu0 %v2729
    %3562 = vmatprep.subr.bf16.mxu0 %v2722
    %3563 = vmatpush2.bf16.msra.mxu0 %v2721
    %3564 = vmatprep.subr.bf16.mxu0 %v2714
    %3565 = vmatpush2.bf16.msra.mxu0 %v2713
    %3566 = vmatprep.subr.bf16.mxu0 %v2706
    %3567 = vmatpush2.bf16.msra.mxu0 %v2705
    %3568 = vmatprep.subr.bf16.mxu0 %v2698
    %3569 = vmatpush2.bf16.msra.mxu0 %v2697
    %3570 = vmatprep.subr.bf16.mxu0 %v2690
    %3571 = vmatpush2.bf16.msra.mxu0 %v2689
    %3572 = vmatprep.subr.bf16.mxu0 %v2682
    %3573 = vmatpush2.bf16.msra.mxu0 %v2681
    %3574 = vmatprep.mubr.bf16.mxu0 %v140
    %3575 = vmatmul.mubr.bf16.gmra.mxu0 %v139
    %v3576 = vpop.f32.mrf.mxu0
    %v3577 = vadd.f32 %v3536, %v3576
    %v3578 = vpop.f32.mrf.mxu0
    %v3579 = vadd.f32 %v3538, %v3578
    %v3580 = vpop.f32.mrf.mxu0
    %v3581 = vpop.f32.mrf.mxu0
    %3582 = vdwg.mxu0
    %3583 = vmatprep.subr.bf16.mxu0 %v2292
    %3584 = vmatpush1.bf16.msra.mxu0 %v2291
    %3585 = vmatprep.subr.bf16.mxu0 %v2284
    %3586 = vmatpush1.bf16.msra.mxu0 %v2283
    %3587 = vmatprep.subr.bf16.mxu0 %v2276
    %3588 = vmatpush1.bf16.msra.mxu0 %v2275
    %3589 = vmatprep.subr.bf16.mxu0 %v2268
    %3590 = vmatpush1.bf16.msra.mxu0 %v2267
    %3591 = vmatprep.subr.bf16.mxu0 %v2260
    %3592 = vmatpush1.bf16.msra.mxu0 %v2259
    %3593 = vmatprep.subr.bf16.mxu0 %v2252
    %3594 = vmatpush1.bf16.msra.mxu0 %v2251
    %3595 = vmatprep.subr.bf16.mxu0 %v2244
    %3596 = vmatpush1.bf16.msra.mxu0 %v2243
    %3597 = vmatprep.subr.bf16.mxu0 %v2236
    %3598 = vmatpush1.bf16.msra.mxu0 %v2235
    %3599 = vmatprep.subr.bf16.mxu0 %v2356
    %3600 = vmatpush2.bf16.msra.mxu0 %v2355
    %3601 = vmatprep.subr.bf16.mxu0 %v2348
    %3602 = vmatpush2.bf16.msra.mxu0 %v2347
    %3603 = vmatprep.subr.bf16.mxu0 %v2340
    %3604 = vmatpush2.bf16.msra.mxu0 %v2339
    %3605 = vmatprep.subr.bf16.mxu0 %v2332
    %3606 = vmatpush2.bf16.msra.mxu0 %v2331
    %3607 = vmatprep.subr.bf16.mxu0 %v2324
    %3608 = vmatpush2.bf16.msra.mxu0 %v2323
    %3609 = vmatprep.subr.bf16.mxu0 %v2316
    %3610 = vmatpush2.bf16.msra.mxu0 %v2315
    %3611 = vmatprep.subr.bf16.mxu0 %v2308
    %3612 = vmatpush2.bf16.msra.mxu0 %v2307
    %3613 = vmatprep.subr.bf16.mxu0 %v2300
    %3614 = vmatpush2.bf16.msra.mxu0 %v2299
    %3615 = vmatprep.mubr.bf16.mxu0 %v134
    %3616 = vmatmul.mubr.bf16.gmra.mxu0 %v133
    %v3617 = vpop.f32.mrf.mxu0
    %v3618 = vadd.f32 %v674, %v3617
    %v3619 = vpop.f32.mrf.mxu0
    %v3620 = vadd.f32 %v678, %v3619
    %v3621 = vpop.f32.mrf.mxu0
    %v3622 = vpop.f32.mrf.mxu0
    %3623 = vdwg.mxu0
    %3624 = vmatprep.subr.bf16.mxu0 %v2420
    %3625 = vmatpush1.bf16.msra.mxu0 %v2419
    %3626 = vmatprep.subr.bf16.mxu0 %v2412
    %3627 = vmatpush1.bf16.msra.mxu0 %v2411
    %3628 = vmatprep.subr.bf16.mxu0 %v2404
    %3629 = vmatpush1.bf16.msra.mxu0 %v2403
    %3630 = vmatprep.subr.bf16.mxu0 %v2396
    %3631 = vmatpush1.bf16.msra.mxu0 %v2395
    %3632 = vmatprep.subr.bf16.mxu0 %v2388
    %3633 = vmatpush1.bf16.msra.mxu0 %v2387
    %3634 = vmatprep.subr.bf16.mxu0 %v2380
    %3635 = vmatpush1.bf16.msra.mxu0 %v2379
    %3636 = vmatprep.subr.bf16.mxu0 %v2372
    %3637 = vmatpush1.bf16.msra.mxu0 %v2371
    %3638 = vmatprep.subr.bf16.mxu0 %v2364
    %3639 = vmatpush1.bf16.msra.mxu0 %v2363
    %3640 = vmatprep.subr.bf16.mxu0 %v2484
    %3641 = vmatpush2.bf16.msra.mxu0 %v2483
    %3642 = vmatprep.subr.bf16.mxu0 %v2476
    %3643 = vmatpush2.bf16.msra.mxu0 %v2475
    %3644 = vmatprep.subr.bf16.mxu0 %v2468
    %3645 = vmatpush2.bf16.msra.mxu0 %v2467
    %3646 = vmatprep.subr.bf16.mxu0 %v2460
    %3647 = vmatpush2.bf16.msra.mxu0 %v2459
    %3648 = vmatprep.subr.bf16.mxu0 %v2452
    %3649 = vmatpush2.bf16.msra.mxu0 %v2451
    %3650 = vmatprep.subr.bf16.mxu0 %v2444
    %3651 = vmatpush2.bf16.msra.mxu0 %v2443
    %3652 = vmatprep.subr.bf16.mxu0 %v2436
    %3653 = vmatpush2.bf16.msra.mxu0 %v2435
    %3654 = vmatprep.subr.bf16.mxu0 %v2428
    %3655 = vmatpush2.bf16.msra.mxu0 %v2427
    %3656 = vmatprep.mubr.bf16.mxu0 %v136
    %3657 = vmatmul.mubr.bf16.gmra.mxu0 %v135
    %v3658 = vpop.f32.mrf.mxu0
    %v3659 = vadd.f32 %v3618, %v3658
    %v3660 = vpop.f32.mrf.mxu0
    %v3661 = vadd.f32 %v3620, %v3660
    %v3662 = vpop.f32.mrf.mxu0
    %v3663 = vpop.f32.mrf.mxu0
    %3664 = vdwg.mxu0
    %3665 = vmatprep.subr.bf16.mxu0 %v2548
    %3666 = vmatpush1.bf16.msra.mxu0 %v2547
    %3667 = vmatprep.subr.bf16.mxu0 %v2540
    %3668 = vmatpush1.bf16.msra.mxu0 %v2539
    %3669 = vmatprep.subr.bf16.mxu0 %v2532
    %3670 = vmatpush1.bf16.msra.mxu0 %v2531
    %3671 = vmatprep.subr.bf16.mxu0 %v2524
    %3672 = vmatpush1.bf16.msra.mxu0 %v2523
    %3673 = vmatprep.subr.bf16.mxu0 %v2516
    %3674 = vmatpush1.bf16.msra.mxu0 %v2515
    %3675 = vmatprep.subr.bf16.mxu0 %v2508
    %3676 = vmatpush1.bf16.msra.mxu0 %v2507
    %3677 = vmatprep.subr.bf16.mxu0 %v2500
    %3678 = vmatpush1.bf16.msra.mxu0 %v2499
    %3679 = vmatprep.subr.bf16.mxu0 %v2492
    %3680 = vmatpush1.bf16.msra.mxu0 %v2491
    %3681 = vmatprep.subr.bf16.mxu0 %v2612
    %3682 = vmatpush2.bf16.msra.mxu0 %v2611
    %3683 = vmatprep.subr.bf16.mxu0 %v2604
    %3684 = vmatpush2.bf16.msra.mxu0 %v2603
    %3685 = vmatprep.subr.bf16.mxu0 %v2596
    %3686 = vmatpush2.bf16.msra.mxu0 %v2595
    %3687 = vmatprep.subr.bf16.mxu0 %v2588
    %3688 = vmatpush2.bf16.msra.mxu0 %v2587
    %3689 = vmatprep.subr.bf16.mxu0 %v2580
    %3690 = vmatpush2.bf16.msra.mxu0 %v2579
    %3691 = vmatprep.subr.bf16.mxu0 %v2572
    %3692 = vmatpush2.bf16.msra.mxu0 %v2571
    %3693 = vmatprep.subr.bf16.mxu0 %v2564
    %3694 = vmatpush2.bf16.msra.mxu0 %v2563
    %3695 = vmatprep.subr.bf16.mxu0 %v2556
    %3696 = vmatpush2.bf16.msra.mxu0 %v2555
    %3697 = vmatprep.mubr.bf16.mxu0 %v138
    %3698 = vmatmul.mubr.bf16.gmra.mxu0 %v137
    %v3699 = vpop.f32.mrf.mxu0
    %v3700 = vadd.f32 %v3659, %v3699
    %v3701 = vpop.f32.mrf.mxu0
    %v3702 = vadd.f32 %v3661, %v3701
    %v3703 = vpop.f32.mrf.mxu0
    %v3704 = vpop.f32.mrf.mxu0
    %3705 = vdwg.mxu0
    %3706 = vmatprep.subr.bf16.mxu0 %v2676
    %3707 = vmatpush1.bf16.msra.mxu0 %v2675
    %3708 = vmatprep.subr.bf16.mxu0 %v2668
    %3709 = vmatpush1.bf16.msra.mxu0 %v2667
    %3710 = vmatprep.subr.bf16.mxu0 %v2660
    %3711 = vmatpush1.bf16.msra.mxu0 %v2659
    %3712 = vmatprep.subr.bf16.mxu0 %v2652
    %3713 = vmatpush1.bf16.msra.mxu0 %v2651
    %3714 = vmatprep.subr.bf16.mxu0 %v2644
    %3715 = vmatpush1.bf16.msra.mxu0 %v2643
    %3716 = vmatprep.subr.bf16.mxu0 %v2636
    %3717 = vmatpush1.bf16.msra.mxu0 %v2635
    %3718 = vmatprep.subr.bf16.mxu0 %v2628
    %3719 = vmatpush1.bf16.msra.mxu0 %v2627
    %3720 = vmatprep.subr.bf16.mxu0 %v2620
    %3721 = vmatpush1.bf16.msra.mxu0 %v2619
    %3722 = vmatprep.subr.bf16.mxu0 %v2740
    %3723 = vmatpush2.bf16.msra.mxu0 %v2739
    %3724 = vmatprep.subr.bf16.mxu0 %v2732
    %3725 = vmatpush2.bf16.msra.mxu0 %v2731
    %3726 = vmatprep.subr.bf16.mxu0 %v2724
    %3727 = vmatpush2.bf16.msra.mxu0 %v2723
    %3728 = vmatprep.subr.bf16.mxu0 %v2716
    %3729 = vmatpush2.bf16.msra.mxu0 %v2715
    %3730 = vmatprep.subr.bf16.mxu0 %v2708
    %3731 = vmatpush2.bf16.msra.mxu0 %v2707
    %3732 = vmatprep.subr.bf16.mxu0 %v2700
    %3733 = vmatpush2.bf16.msra.mxu0 %v2699
    %3734 = vmatprep.subr.bf16.mxu0 %v2692
    %3735 = vmatpush2.bf16.msra.mxu0 %v2691
    %3736 = vmatprep.subr.bf16.mxu0 %v2684
    %3737 = vmatpush2.bf16.msra.mxu0 %v2683
    %3738 = vmatprep.mubr.bf16.mxu0 %v140
    %3739 = vmatmul.mubr.bf16.gmra.mxu0 %v139
    %v3740 = vpop.f32.mrf.mxu0
    %v3741 = vadd.f32 %v3700, %v3740
    %v3742 = vpop.f32.mrf.mxu0
    %v3743 = vadd.f32 %v3702, %v3742
    %v3744 = vpop.f32.mrf.mxu0
    %v3745 = vpop.f32.mrf.mxu0
    %3746 = vdwg.mxu0
    %3747 = vmatprep.subr.bf16.mxu0 %v2294
    %3748 = vmatpush1.bf16.msra.mxu0 %v2293
    %3749 = vmatprep.subr.bf16.mxu0 %v2286
    %3750 = vmatpush1.bf16.msra.mxu0 %v2285
    %3751 = vmatprep.subr.bf16.mxu0 %v2278
    %3752 = vmatpush1.bf16.msra.mxu0 %v2277
    %3753 = vmatprep.subr.bf16.mxu0 %v2270
    %3754 = vmatpush1.bf16.msra.mxu0 %v2269
    %3755 = vmatprep.subr.bf16.mxu0 %v2262
    %3756 = vmatpush1.bf16.msra.mxu0 %v2261
    %3757 = vmatprep.subr.bf16.mxu0 %v2254
    %3758 = vmatpush1.bf16.msra.mxu0 %v2253
    %3759 = vmatprep.subr.bf16.mxu0 %v2246
    %3760 = vmatpush1.bf16.msra.mxu0 %v2245
    %3761 = vmatprep.subr.bf16.mxu0 %v2238
    %3762 = vmatpush1.bf16.msra.mxu0 %v2237
    %3763 = vmatprep.subr.bf16.mxu0 %v2358
    %3764 = vmatpush2.bf16.msra.mxu0 %v2357
    %3765 = vmatprep.subr.bf16.mxu0 %v2350
    %3766 = vmatpush2.bf16.msra.mxu0 %v2349
    %3767 = vmatprep.subr.bf16.mxu0 %v2342
    %3768 = vmatpush2.bf16.msra.mxu0 %v2341
    %3769 = vmatprep.subr.bf16.mxu0 %v2334
    %3770 = vmatpush2.bf16.msra.mxu0 %v2333
    %3771 = vmatprep.subr.bf16.mxu0 %v2326
    %3772 = vmatpush2.bf16.msra.mxu0 %v2325
    %3773 = vmatprep.subr.bf16.mxu0 %v2318
    %3774 = vmatpush2.bf16.msra.mxu0 %v2317
    %3775 = vmatprep.subr.bf16.mxu0 %v2310
    %3776 = vmatpush2.bf16.msra.mxu0 %v2309
    %3777 = vmatprep.subr.bf16.mxu0 %v2302
    %3778 = vmatpush2.bf16.msra.mxu0 %v2301
    %3779 = vmatprep.mubr.bf16.mxu0 %v134
    %3780 = vmatmul.mubr.bf16.gmra.mxu0 %v133
    %v3781 = vpop.f32.mrf.mxu0
    %v3782 = vadd.f32 %v682, %v3781
    %v3783 = vpop.f32.mrf.mxu0
    %v3784 = vadd.f32 %v686, %v3783
    %v3785 = vpop.f32.mrf.mxu0
    %v3786 = vpop.f32.mrf.mxu0
    %3787 = vdwg.mxu0
    %3788 = vmatprep.subr.bf16.mxu0 %v2422
    %3789 = vmatpush1.bf16.msra.mxu0 %v2421
    %3790 = vmatprep.subr.bf16.mxu0 %v2414
    %3791 = vmatpush1.bf16.msra.mxu0 %v2413
    %3792 = vmatprep.subr.bf16.mxu0 %v2406
    %3793 = vmatpush1.bf16.msra.mxu0 %v2405
    %3794 = vmatprep.subr.bf16.mxu0 %v2398
    %3795 = vmatpush1.bf16.msra.mxu0 %v2397
    %3796 = vmatprep.subr.bf16.mxu0 %v2390
    %3797 = vmatpush1.bf16.msra.mxu0 %v2389
    %3798 = vmatprep.subr.bf16.mxu0 %v2382
    %3799 = vmatpush1.bf16.msra.mxu0 %v2381
    %3800 = vmatprep.subr.bf16.mxu0 %v2374
    %3801 = vmatpush1.bf16.msra.mxu0 %v2373
    %3802 = vmatprep.subr.bf16.mxu0 %v2366
    %3803 = vmatpush1.bf16.msra.mxu0 %v2365
    %3804 = vmatprep.subr.bf16.mxu0 %v2486
    %3805 = vmatpush2.bf16.msra.mxu0 %v2485
    %3806 = vmatprep.subr.bf16.mxu0 %v2478
    %3807 = vmatpush2.bf16.msra.mxu0 %v2477
    %3808 = vmatprep.subr.bf16.mxu0 %v2470
    %3809 = vmatpush2.bf16.msra.mxu0 %v2469
    %3810 = vmatprep.subr.bf16.mxu0 %v2462
    %3811 = vmatpush2.bf16.msra.mxu0 %v2461
    %3812 = vmatprep.subr.bf16.mxu0 %v2454
    %3813 = vmatpush2.bf16.msra.mxu0 %v2453
    %3814 = vmatprep.subr.bf16.mxu0 %v2446
    %3815 = vmatpush2.bf16.msra.mxu0 %v2445
    %3816 = vmatprep.subr.bf16.mxu0 %v2438
    %3817 = vmatpush2.bf16.msra.mxu0 %v2437
    %3818 = vmatprep.subr.bf16.mxu0 %v2430
    %3819 = vmatpush2.bf16.msra.mxu0 %v2429
    %3820 = vmatprep.mubr.bf16.mxu0 %v136
    %3821 = vmatmul.mubr.bf16.gmra.mxu0 %v135
    %v3822 = vpop.f32.mrf.mxu0
    %v3823 = vadd.f32 %v3782, %v3822
    %v3824 = vpop.f32.mrf.mxu0
    %v3825 = vadd.f32 %v3784, %v3824
    %v3826 = vpop.f32.mrf.mxu0
    %v3827 = vpop.f32.mrf.mxu0
    %3828 = vdwg.mxu0
    %3829 = vmatprep.subr.bf16.mxu0 %v2550
    %3830 = vmatpush1.bf16.msra.mxu0 %v2549
    %3831 = vmatprep.subr.bf16.mxu0 %v2542
    %3832 = vmatpush1.bf16.msra.mxu0 %v2541
    %3833 = vmatprep.subr.bf16.mxu0 %v2534
    %3834 = vmatpush1.bf16.msra.mxu0 %v2533
    %3835 = vmatprep.subr.bf16.mxu0 %v2526
    %3836 = vmatpush1.bf16.msra.mxu0 %v2525
    %3837 = vmatprep.subr.bf16.mxu0 %v2518
    %3838 = vmatpush1.bf16.msra.mxu0 %v2517
    %3839 = vmatprep.subr.bf16.mxu0 %v2510
    %3840 = vmatpush1.bf16.msra.mxu0 %v2509
    %3841 = vmatprep.subr.bf16.mxu0 %v2502
    %3842 = vmatpush1.bf16.msra.mxu0 %v2501
    %3843 = vmatprep.subr.bf16.mxu0 %v2494
    %3844 = vmatpush1.bf16.msra.mxu0 %v2493
    %3845 = vmatprep.subr.bf16.mxu0 %v2614
    %3846 = vmatpush2.bf16.msra.mxu0 %v2613
    %3847 = vmatprep.subr.bf16.mxu0 %v2606
    %3848 = vmatpush2.bf16.msra.mxu0 %v2605
    %3849 = vmatprep.subr.bf16.mxu0 %v2598
    %3850 = vmatpush2.bf16.msra.mxu0 %v2597
    %3851 = vmatprep.subr.bf16.mxu0 %v2590
    %3852 = vmatpush2.bf16.msra.mxu0 %v2589
    %3853 = vmatprep.subr.bf16.mxu0 %v2582
    %3854 = vmatpush2.bf16.msra.mxu0 %v2581
    %3855 = vmatprep.subr.bf16.mxu0 %v2574
    %3856 = vmatpush2.bf16.msra.mxu0 %v2573
    %3857 = vmatprep.subr.bf16.mxu0 %v2566
    %3858 = vmatpush2.bf16.msra.mxu0 %v2565
    %3859 = vmatprep.subr.bf16.mxu0 %v2558
    %3860 = vmatpush2.bf16.msra.mxu0 %v2557
    %3861 = vmatprep.mubr.bf16.mxu0 %v138
    %3862 = vmatmul.mubr.bf16.gmra.mxu0 %v137
    %v3863 = vpop.f32.mrf.mxu0
    %v3864 = vadd.f32 %v3823, %v3863
    %v3865 = vpop.f32.mrf.mxu0
    %v3866 = vadd.f32 %v3825, %v3865
    %v3867 = vpop.f32.mrf.mxu0
    %v3868 = vpop.f32.mrf.mxu0
    %3869 = vdwg.mxu0
    %3870 = vmatprep.subr.bf16.mxu0 %v2678
    %3871 = vmatpush1.bf16.msra.mxu0 %v2677
    %3872 = vmatprep.subr.bf16.mxu0 %v2670
    %3873 = vmatpush1.bf16.msra.mxu0 %v2669
    %3874 = vmatprep.subr.bf16.mxu0 %v2662
    %3875 = vmatpush1.bf16.msra.mxu0 %v2661
    %3876 = vmatprep.subr.bf16.mxu0 %v2654
    %3877 = vmatpush1.bf16.msra.mxu0 %v2653
    %3878 = vmatprep.subr.bf16.mxu0 %v2646
    %3879 = vmatpush1.bf16.msra.mxu0 %v2645
    %3880 = vmatprep.subr.bf16.mxu0 %v2638
    %3881 = vmatpush1.bf16.msra.mxu0 %v2637
    %3882 = vmatprep.subr.bf16.mxu0 %v2630
    %3883 = vmatpush1.bf16.msra.mxu0 %v2629
    %3884 = vmatprep.subr.bf16.mxu0 %v2622
    %3885 = vmatpush1.bf16.msra.mxu0 %v2621
    %3886 = vmatprep.subr.bf16.mxu0 %v2742
    %3887 = vmatpush2.bf16.msra.mxu0 %v2741
    %3888 = vmatprep.subr.bf16.mxu0 %v2734
    %3889 = vmatpush2.bf16.msra.mxu0 %v2733
    %3890 = vmatprep.subr.bf16.mxu0 %v2726
    %3891 = vmatpush2.bf16.msra.mxu0 %v2725
    %3892 = vmatprep.subr.bf16.mxu0 %v2718
    %3893 = vmatpush2.bf16.msra.mxu0 %v2717
    %3894 = vmatprep.subr.bf16.mxu0 %v2710
    %3895 = vmatpush2.bf16.msra.mxu0 %v2709
    %3896 = vmatprep.subr.bf16.mxu0 %v2702
    %3897 = vmatpush2.bf16.msra.mxu0 %v2701
    %3898 = vmatprep.subr.bf16.mxu0 %v2694
    %3899 = vmatpush2.bf16.msra.mxu0 %v2693
    %3900 = vmatprep.subr.bf16.mxu0 %v2686
    %3901 = vmatpush2.bf16.msra.mxu0 %v2685
    %3902 = vmatprep.mubr.bf16.mxu0 %v140
    %3903 = vmatmul.mubr.bf16.gmra.mxu0 %v139
    %v3904 = vpop.f32.mrf.mxu0
    %v3905 = vadd.f32 %v3864, %v3904
    %v3906 = vpop.f32.mrf.mxu0
    %v3907 = vadd.f32 %v3866, %v3906
    %v3908 = vpop.f32.mrf.mxu0
    %v3909 = vpop.f32.mrf.mxu0
    %3910 = vdwg.mxu0
    %vm3911 = vcmp.ge.f32.partialorder %v3413, 0.0
    %vm3912 = vcmp.ge.f32.partialorder %v3415, 0.0
    %vm3913 = vcmp.ge.f32.partialorder %v3577, 0.0
    %vm3914 = vcmp.ge.f32.partialorder %v3579, 0.0
    %vm3915 = vcmp.ge.f32.partialorder %v3741, 0.0
    %vm3916 = vcmp.ge.f32.partialorder %v3743, 0.0
    %vm3917 = vcmp.ge.f32.partialorder %v3905, 0.0
    %vm3918 = vcmp.ge.f32.partialorder %v3907, 0.0
    %v3919 = vmul.f32 %v3413, 0.2
    %v3920 = vmul.f32 %v3415, 0.2
    %v3921 = vmul.f32 %v3577, 0.2
    %v3922 = vmul.f32 %v3579, 0.2
    %v3923 = vmul.f32 %v3741, 0.2
    %v3924 = vmul.f32 %v3743, 0.2
    %v3925 = vmul.f32 %v3905, 0.2
    %v3926 = vmul.f32 %v3907, 0.2
    %v3927 = vsel %vm3911, %v3413, %v3919
    %v3928 = vsel %vm3912, %v3415, %v3920
    %v3929 = vsel %vm3913, %v3577, %v3921
    %v3930 = vsel %vm3914, %v3579, %v3922
    %v3931 = vsel %vm3915, %v3741, %v3923
    %v3932 = vsel %vm3916, %v3743, %v3924
    %v3933 = vsel %vm3917, %v3905, %v3925
    %v3934 = vsel %vm3918, %v3907, %v3926
    %v3935 = vlaneseq
    %v3936 = vshrl.u32 %v3935, 7
    %v3937 = vstv %s123
    %v3938 = vadd.s32 %v3936, %v3937
    %v3939 = vlaneseq
    %v3940 = vand.u32 %v3939, 127
    %v3941 = vadd.s32 %v3940, 128
    %v3942 = vadd.s32 %v3940, 256
    %v3943 = vadd.s32 %v3940, 384
    %v3944 = vadd.s32 %v3940, 512
    %v3945 = vadd.s32 %v3940, 640
    %v3946 = vadd.s32 %v3940, 768
    %v3947 = vadd.s32 %v3940, 896
    %v3948 = vmul.u32 %v3938, 1792
    %v3949 = vadd.s32 %v3948, %v3940
    %v3950 = vadd.s32 %v3948, %v3941
    %v3951 = vadd.s32 %v3948, %v3942
    %v3952 = vadd.s32 %v3948, %v3943
    %v3953 = vadd.s32 %v3948, %v3944
    %v3954 = vadd.s32 %v3948, %v3945
    %v3955 = vadd.s32 %v3948, %v3946
    %v3956 = vadd.s32 %v3948, %v3947
    %s3957 = smul.u32 %s124, 2654435761
    %v3958 = vstv %s3957
    %v3959 = vadd.s32 %v3949, %v3958
    %v3960 = vadd.s32 %v3950, %v3958
    %v3961 = vadd.s32 %v3951, %v3958
    %v3962 = vadd.s32 %v3952, %v3958
    %v3963 = vadd.s32 %v3953, %v3958
    %v3964 = vadd.s32 %v3954, %v3958
    %v3965 = vadd.s32 %v3955, %v3958
    %v3966 = vadd.s32 %v3956, %v3958
    %v3967 = vshrl.u32 %v3959, 16
    %v3968 = vshrl.u32 %v3960, 16
    %v3969 = vshrl.u32 %v3961, 16
    %v3970 = vshrl.u32 %v3962, 16
    %v3971 = vshrl.u32 %v3963, 16
    %v3972 = vshrl.u32 %v3964, 16
    %v3973 = vshrl.u32 %v3965, 16
    %v3974 = vshrl.u32 %v3966, 16
    %v3975 = vxor.u32 %v3959, %v3967
    %v3976 = vxor.u32 %v3960, %v3968
    %v3977 = vxor.u32 %v3961, %v3969
    %v3978 = vxor.u32 %v3962, %v3970
    %v3979 = vxor.u32 %v3963, %v3971
    %v3980 = vxor.u32 %v3964, %v3972
    %v3981 = vxor.u32 %v3965, %v3973
    %v3982 = vxor.u32 %v3966, %v3974
    %v3983 = vmul.u32 %v3975, 2146121005
    %v3984 = vmul.u32 %v3976, 2146121005
    %v3985 = vmul.u32 %v3977, 2146121005
    %v3986 = vmul.u32 %v3978, 2146121005
    %v3987 = vmul.u32 %v3979, 2146121005
    %v3988 = vmul.u32 %v3980, 2146121005
    %v3989 = vmul.u32 %v3981, 2146121005
    %v3990 = vmul.u32 %v3982, 2146121005
    %v3991 = vshrl.u32 %v3983, 15
    %v3992 = vshrl.u32 %v3984, 15
    %v3993 = vshrl.u32 %v3985, 15
    %v3994 = vshrl.u32 %v3986, 15
    %v3995 = vshrl.u32 %v3987, 15
    %v3996 = vshrl.u32 %v3988, 15
    %v3997 = vshrl.u32 %v3989, 15
    %v3998 = vshrl.u32 %v3990, 15
    %v3999 = vxor.u32 %v3983, %v3991
    %v4000 = vxor.u32 %v3984, %v3992
    %v4001 = vxor.u32 %v3985, %v3993
    %v4002 = vxor.u32 %v3986, %v3994
    %v4003 = vxor.u32 %v3987, %v3995
    %v4004 = vxor.u32 %v3988, %v3996
    %v4005 = vxor.u32 %v3989, %v3997
    %v4006 = vxor.u32 %v3990, %v3998
    %v4007 = vmul.u32 %v3999, 2221713035
    %v4008 = vmul.u32 %v4000, 2221713035
    %v4009 = vmul.u32 %v4001, 2221713035
    %v4010 = vmul.u32 %v4002, 2221713035
    %v4011 = vmul.u32 %v4003, 2221713035
    %v4012 = vmul.u32 %v4004, 2221713035
    %v4013 = vmul.u32 %v4005, 2221713035
    %v4014 = vmul.u32 %v4006, 2221713035
    %v4015 = vshrl.u32 %v4007, 16
    %v4016 = vshrl.u32 %v4008, 16
    %v4017 = vshrl.u32 %v4009, 16
    %v4018 = vshrl.u32 %v4010, 16
    %v4019 = vshrl.u32 %v4011, 16
    %v4020 = vshrl.u32 %v4012, 16
    %v4021 = vshrl.u32 %v4013, 16
    %v4022 = vshrl.u32 %v4014, 16
    %v4023 = vxor.u32 %v4007, %v4015
    %v4024 = vxor.u32 %v4008, %v4016
    %v4025 = vxor.u32 %v4009, %v4017
    %v4026 = vxor.u32 %v4010, %v4018
    %v4027 = vxor.u32 %v4011, %v4019
    %v4028 = vxor.u32 %v4012, %v4020
    %v4029 = vxor.u32 %v4013, %v4021
    %v4030 = vxor.u32 %v4014, %v4022
    %v4031 = vand.u32 %v4023, 2147483647
    %v4032 = vand.u32 %v4024, 2147483647
    %v4033 = vand.u32 %v4025, 2147483647
    %v4034 = vand.u32 %v4026, 2147483647
    %v4035 = vand.u32 %v4027, 2147483647
    %v4036 = vand.u32 %v4028, 2147483647
    %v4037 = vand.u32 %v4029, 2147483647
    %v4038 = vand.u32 %v4030, 2147483647
    %vm4039 = vcmp.ge.s32.totalorder %v4031, 644245094
    %vm4040 = vcmp.ge.s32.totalorder %v4032, 644245094
    %vm4041 = vcmp.ge.s32.totalorder %v4033, 644245094
    %vm4042 = vcmp.ge.s32.totalorder %v4034, 644245094
    %vm4043 = vcmp.ge.s32.totalorder %v4035, 644245094
    %vm4044 = vcmp.ge.s32.totalorder %v4036, 644245094
    %vm4045 = vcmp.ge.s32.totalorder %v4037, 644245094
    %vm4046 = vcmp.ge.s32.totalorder %v4038, 644245094
    %v4047 = vmul.f32 %v3927, 1.4285715
    %v4048 = vmul.f32 %v3928, 1.4285715
    %v4049 = vmul.f32 %v3929, 1.4285715
    %v4050 = vmul.f32 %v3930, 1.4285715
    %v4051 = vmul.f32 %v3931, 1.4285715
    %v4052 = vmul.f32 %v3932, 1.4285715
    %v4053 = vmul.f32 %v3933, 1.4285715
    %v4054 = vmul.f32 %v3934, 1.4285715
    %v4055 = vsel %vm4039, %v4047, 0.0
    %v4056 = vsel %vm4040, %v4048, 0.0
    %v4057 = vsel %vm4041, %v4049, 0.0
    %v4058 = vsel %vm4042, %v4050, 0.0
    %v4059 = vsel %vm4043, %v4051, 0.0
    %v4060 = vsel %vm4044, %v4052, 0.0
    %v4061 = vsel %vm4045, %v4053, 0.0
    %v4062 = vsel %vm4046, %v4054, 0.0
    %v4063 = vpack.c.bf16 %v4055, %v4055
    %v4064 = vpack.c.bf16 %v4056, %v4056
    %v4065 = vpack.c.bf16 %v4057, %v4057
    %v4066 = vpack.c.bf16 %v4058, %v4058
    %v4067 = vpack.c.bf16 %v4059, %v4059
    %v4068 = vpack.c.bf16 %v4060, %v4060
    %v4069 = vpack.c.bf16 %v4061, %v4061
    %v4070 = vpack.c.bf16 %v4062, %v4062
    %v4071 = vld [vmem:[#allocation9] sm:$0xff]
    %v4072 = vld [vmem:[#allocation9 + $0x8] sm:$0xff]
    %v4073 = vld [vmem:[#allocation9 + $0x10] sm:$0xff]
    %v4074 = vld [vmem:[#allocation9 + $0x18] sm:$0xff]
    %v4075 = vld [vmem:[#allocation9 + $0x20] sm:$0xff]
    %v4076 = vld [vmem:[#allocation9 + $0x28] sm:$0xff]
    %v4077 = vld [vmem:[#allocation9 + $0x30] sm:$0xff]
    %v4078 = vld [vmem:[#allocation9 + $0x38] sm:$0xff]
    %v4079 = vld [vmem:[#allocation9 + $0x40] sm:$0xff]
    %v4080 = vld [vmem:[#allocation9 + $0x48] sm:$0xff]
    %v4081 = vld [vmem:[#allocation9 + $0x50] sm:$0xff]
    %v4082 = vld [vmem:[#allocation9 + $0x58] sm:$0xff]
    %v4083 = vld [vmem:[#allocation9 + $0x60] sm:$0xff]
    %v4084 = vld [vmem:[#allocation9 + $0x68] sm:$0xff]
    %v4085 = vld [vmem:[#allocation9 + $0x70] sm:$0xff]
    %v4086 = vld [vmem:[#allocation9 + $0x78] sm:$0xff]
    %v4087 = vld [vmem:[#allocation9 + $0x80] sm:$0xff]
    %v4088 = vld [vmem:[#allocation9 + $0x88] sm:$0xff]
    %v4089 = vld [vmem:[#allocation9 + $0x90] sm:$0xff]
    %v4090 = vld [vmem:[#allocation9 + $0x98] sm:$0xff]
    %v4091 = vld [vmem:[#allocation9 + $0xa0] sm:$0xff]
    %v4092 = vld [vmem:[#allocation9 + $0xa8] sm:$0xff]
    %v4093 = vld [vmem:[#allocation9 + $0xb0] sm:$0xff]
    %v4094 = vld [vmem:[#allocation9 + $0xb8] sm:$0xff]
    %v4095 = vld [vmem:[#allocation9 + $0xc0] sm:$0xff]
    %v4096 = vld [vmem:[#allocation9 + $0xc8] sm:$0xff]
    %v4097 = vld [vmem:[#allocation9 + $0xd0] sm:$0xff]
    %v4098 = vld [vmem:[#allocation9 + $0xd8] sm:$0xff]
    %v4099 = vld [vmem:[#allocation9 + $0xe0] sm:$0xff]
    %v4100 = vld [vmem:[#allocation9 + $0xe8] sm:$0xff]
    %v4101 = vld [vmem:[#allocation9 + $0xf0] sm:$0xff]
    %v4102 = vld [vmem:[#allocation9 + $0xf8] sm:$0xff]
    %v4103 = vld [vmem:[#allocation9 + $0x100] sm:$0xff]
    %v4104 = vld [vmem:[#allocation9 + $0x108] sm:$0xff]
    %v4105 = vld [vmem:[#allocation9 + $0x110] sm:$0xff]
    %v4106 = vld [vmem:[#allocation9 + $0x118] sm:$0xff]
    %v4107 = vld [vmem:[#allocation9 + $0x120] sm:$0xff]
    %v4108 = vld [vmem:[#allocation9 + $0x128] sm:$0xff]
    %v4109 = vld [vmem:[#allocation9 + $0x130] sm:$0xff]
    %v4110 = vld [vmem:[#allocation9 + $0x138] sm:$0xff]
    %v4111 = vld [vmem:[#allocation9 + $0x140] sm:$0xff]
    %v4112 = vld [vmem:[#allocation9 + $0x148] sm:$0xff]
    %v4113 = vld [vmem:[#allocation9 + $0x150] sm:$0xff]
    %v4114 = vld [vmem:[#allocation9 + $0x158] sm:$0xff]
    %v4115 = vld [vmem:[#allocation9 + $0x160] sm:$0xff]
    %v4116 = vld [vmem:[#allocation9 + $0x168] sm:$0xff]
    %v4117 = vld [vmem:[#allocation9 + $0x170] sm:$0xff]
    %v4118 = vld [vmem:[#allocation9 + $0x178] sm:$0xff]
    %v4119 = vld [vmem:[#allocation9 + $0x180] sm:$0xff]
    %v4120 = vld [vmem:[#allocation9 + $0x188] sm:$0xff]
    %v4121 = vld [vmem:[#allocation9 + $0x190] sm:$0xff]
    %v4122 = vld [vmem:[#allocation9 + $0x198] sm:$0xff]
    %v4123 = vld [vmem:[#allocation9 + $0x1a0] sm:$0xff]
    %v4124 = vld [vmem:[#allocation9 + $0x1a8] sm:$0xff]
    %v4125 = vld [vmem:[#allocation9 + $0x1b0] sm:$0xff]
    %v4126 = vld [vmem:[#allocation9 + $0x1b8] sm:$0xff]
    %v4127 = vld [vmem:[#allocation9 + $0x1c0] sm:$0xff]
    %v4128 = vld [vmem:[#allocation9 + $0x1c8] sm:$0xff]
    %v4129 = vld [vmem:[#allocation9 + $0x1d0] sm:$0xff]
    %v4130 = vld [vmem:[#allocation9 + $0x1d8] sm:$0xff]
    %v4131 = vld [vmem:[#allocation9 + $0x1e0] sm:$0xff]
    %v4132 = vld [vmem:[#allocation9 + $0x1e8] sm:$0xff]
    %v4133 = vld [vmem:[#allocation9 + $0x1f0] sm:$0xff]
    %v4134 = vld [vmem:[#allocation9 + $0x1f8] sm:$0xff]
    %v4135 = vld [vmem:[#allocation9 + $0x200] sm:$0xff]
    %v4136 = vld [vmem:[#allocation9 + $0x208] sm:$0xff]
    %v4137 = vld [vmem:[#allocation9 + $0x210] sm:$0xff]
    %v4138 = vld [vmem:[#allocation9 + $0x218] sm:$0xff]
    %v4139 = vld [vmem:[#allocation9 + $0x220] sm:$0xff]
    %v4140 = vld [vmem:[#allocation9 + $0x228] sm:$0xff]
    %v4141 = vld [vmem:[#allocation9 + $0x230] sm:$0xff]
    %v4142 = vld [vmem:[#allocation9 + $0x238] sm:$0xff]
    %v4143 = vld [vmem:[#allocation9 + $0x240] sm:$0xff]
    %v4144 = vld [vmem:[#allocation9 + $0x248] sm:$0xff]
    %v4145 = vld [vmem:[#allocation9 + $0x250] sm:$0xff]
    %v4146 = vld [vmem:[#allocation9 + $0x258] sm:$0xff]
    %v4147 = vld [vmem:[#allocation9 + $0x260] sm:$0xff]
    %v4148 = vld [vmem:[#allocation9 + $0x268] sm:$0xff]
    %v4149 = vld [vmem:[#allocation9 + $0x270] sm:$0xff]
    %v4150 = vld [vmem:[#allocation9 + $0x278] sm:$0xff]
    %v4151 = vld [vmem:[#allocation9 + $0x280] sm:$0xff]
    %v4152 = vld [vmem:[#allocation9 + $0x288] sm:$0xff]
    %v4153 = vld [vmem:[#allocation9 + $0x290] sm:$0xff]
    %v4154 = vld [vmem:[#allocation9 + $0x298] sm:$0xff]
    %v4155 = vld [vmem:[#allocation9 + $0x2a0] sm:$0xff]
    %v4156 = vld [vmem:[#allocation9 + $0x2a8] sm:$0xff]
    %v4157 = vld [vmem:[#allocation9 + $0x2b0] sm:$0xff]
    %v4158 = vld [vmem:[#allocation9 + $0x2b8] sm:$0xff]
    %v4159 = vld [vmem:[#allocation9 + $0x2c0] sm:$0xff]
    %v4160 = vld [vmem:[#allocation9 + $0x2c8] sm:$0xff]
    %v4161 = vld [vmem:[#allocation9 + $0x2d0] sm:$0xff]
    %v4162 = vld [vmem:[#allocation9 + $0x2d8] sm:$0xff]
    %v4163 = vld [vmem:[#allocation9 + $0x2e0] sm:$0xff]
    %v4164 = vld [vmem:[#allocation9 + $0x2e8] sm:$0xff]
    %v4165 = vld [vmem:[#allocation9 + $0x2f0] sm:$0xff]
    %v4166 = vld [vmem:[#allocation9 + $0x2f8] sm:$0xff]
    %v4167 = vld [vmem:[#allocation9 + $0x300] sm:$0xff]
    %v4168 = vld [vmem:[#allocation9 + $0x308] sm:$0xff]
    %v4169 = vld [vmem:[#allocation9 + $0x310] sm:$0xff]
    %v4170 = vld [vmem:[#allocation9 + $0x318] sm:$0xff]
    %v4171 = vld [vmem:[#allocation9 + $0x320] sm:$0xff]
    %v4172 = vld [vmem:[#allocation9 + $0x328] sm:$0xff]
    %v4173 = vld [vmem:[#allocation9 + $0x330] sm:$0xff]
    %v4174 = vld [vmem:[#allocation9 + $0x338] sm:$0xff]
    %v4175 = vld [vmem:[#allocation9 + $0x340] sm:$0xff]
    %v4176 = vld [vmem:[#allocation9 + $0x348] sm:$0xff]
    %v4177 = vld [vmem:[#allocation9 + $0x350] sm:$0xff]
    %v4178 = vld [vmem:[#allocation9 + $0x358] sm:$0xff]
    %v4179 = vld [vmem:[#allocation9 + $0x360] sm:$0xff]
    %v4180 = vld [vmem:[#allocation9 + $0x368] sm:$0xff]
    %v4181 = vld [vmem:[#allocation9 + $0x370] sm:$0xff]
    %v4182 = vld [vmem:[#allocation9 + $0x378] sm:$0xff]
    %v4183 = vld [vmem:[#allocation9 + $0x380] sm:$0xff]
    %v4184 = vld [vmem:[#allocation9 + $0x388] sm:$0xff]
    %v4185 = vld [vmem:[#allocation9 + $0x390] sm:$0xff]
    %v4186 = vld [vmem:[#allocation9 + $0x398] sm:$0xff]
    %v4187 = vld [vmem:[#allocation9 + $0x3a0] sm:$0xff]
    %v4188 = vld [vmem:[#allocation9 + $0x3a8] sm:$0xff]
    %v4189 = vld [vmem:[#allocation9 + $0x3b0] sm:$0xff]
    %v4190 = vld [vmem:[#allocation9 + $0x3b8] sm:$0xff]
    %v4191 = vld [vmem:[#allocation9 + $0x3c0] sm:$0xff]
    %v4192 = vld [vmem:[#allocation9 + $0x3c8] sm:$0xff]
    %v4193 = vld [vmem:[#allocation9 + $0x3d0] sm:$0xff]
    %v4194 = vld [vmem:[#allocation9 + $0x3d8] sm:$0xff]
    %v4195 = vld [vmem:[#allocation9 + $0x3e0] sm:$0xff]
    %v4196 = vld [vmem:[#allocation9 + $0x3e8] sm:$0xff]
    %v4197 = vld [vmem:[#allocation9 + $0x3f0] sm:$0xff]
    %v4198 = vld [vmem:[#allocation9 + $0x3f8] sm:$0xff]
    %v4199 = vld [vmem:[#allocation9 + $0x400] sm:$0xff]
    %v4200 = vld [vmem:[#allocation9 + $0x408] sm:$0xff]
    %v4201 = vld [vmem:[#allocation9 + $0x410] sm:$0xff]
    %v4202 = vld [vmem:[#allocation9 + $0x418] sm:$0xff]
    %v4203 = vld [vmem:[#allocation9 + $0x420] sm:$0xff]
    %v4204 = vld [vmem:[#allocation9 + $0x428] sm:$0xff]
    %v4205 = vld [vmem:[#allocation9 + $0x430] sm:$0xff]
    %v4206 = vld [vmem:[#allocation9 + $0x438] sm:$0xff]
    %v4207 = vld [vmem:[#allocation9 + $0x440] sm:$0xff]
    %v4208 = vld [vmem:[#allocation9 + $0x448] sm:$0xff]
    %v4209 = vld [vmem:[#allocation9 + $0x450] sm:$0xff]
    %v4210 = vld [vmem:[#allocation9 + $0x458] sm:$0xff]
    %v4211 = vld [vmem:[#allocation9 + $0x460] sm:$0xff]
    %v4212 = vld [vmem:[#allocation9 + $0x468] sm:$0xff]
    %v4213 = vld [vmem:[#allocation9 + $0x470] sm:$0xff]
    %v4214 = vld [vmem:[#allocation9 + $0x478] sm:$0xff]
    %v4215 = vld [vmem:[#allocation9 + $0x480] sm:$0xff]
    %v4216 = vld [vmem:[#allocation9 + $0x488] sm:$0xff]
    %v4217 = vld [vmem:[#allocation9 + $0x490] sm:$0xff]
    %v4218 = vld [vmem:[#allocation9 + $0x498] sm:$0xff]
    %v4219 = vld [vmem:[#allocation9 + $0x4a0] sm:$0xff]
    %v4220 = vld [vmem:[#allocation9 + $0x4a8] sm:$0xff]
    %v4221 = vld [vmem:[#allocation9 + $0x4b0] sm:$0xff]
    %v4222 = vld [vmem:[#allocation9 + $0x4b8] sm:$0xff]
    %v4223 = vld [vmem:[#allocation9 + $0x4c0] sm:$0xff]
    %v4224 = vld [vmem:[#allocation9 + $0x4c8] sm:$0xff]
    %v4225 = vld [vmem:[#allocation9 + $0x4d0] sm:$0xff]
    %v4226 = vld [vmem:[#allocation9 + $0x4d8] sm:$0xff]
    %v4227 = vld [vmem:[#allocation9 + $0x4e0] sm:$0xff]
    %v4228 = vld [vmem:[#allocation9 + $0x4e8] sm:$0xff]
    %v4229 = vld [vmem:[#allocation9 + $0x4f0] sm:$0xff]
    %v4230 = vld [vmem:[#allocation9 + $0x4f8] sm:$0xff]
    %v4231 = vld [vmem:[#allocation9 + $0x500] sm:$0xff]
    %v4232 = vld [vmem:[#allocation9 + $0x508] sm:$0xff]
    %v4233 = vld [vmem:[#allocation9 + $0x510] sm:$0xff]
    %v4234 = vld [vmem:[#allocation9 + $0x518] sm:$0xff]
    %v4235 = vld [vmem:[#allocation9 + $0x520] sm:$0xff]
    %v4236 = vld [vmem:[#allocation9 + $0x528] sm:$0xff]
    %v4237 = vld [vmem:[#allocation9 + $0x530] sm:$0xff]
    %v4238 = vld [vmem:[#allocation9 + $0x538] sm:$0xff]
    %v4239 = vld [vmem:[#allocation9 + $0x540] sm:$0xff]
    %v4240 = vld [vmem:[#allocation9 + $0x548] sm:$0xff]
    %v4241 = vld [vmem:[#allocation9 + $0x550] sm:$0xff]
    %v4242 = vld [vmem:[#allocation9 + $0x558] sm:$0xff]
    %v4243 = vld [vmem:[#allocation9 + $0x560] sm:$0xff]
    %v4244 = vld [vmem:[#allocation9 + $0x568] sm:$0xff]
    %v4245 = vld [vmem:[#allocation9 + $0x570] sm:$0xff]
    %v4246 = vld [vmem:[#allocation9 + $0x578] sm:$0xff]
    %v4247 = vld [vmem:[#allocation9 + $0x580] sm:$0xff]
    %v4248 = vld [vmem:[#allocation9 + $0x588] sm:$0xff]
    %v4249 = vld [vmem:[#allocation9 + $0x590] sm:$0xff]
    %v4250 = vld [vmem:[#allocation9 + $0x598] sm:$0xff]
    %v4251 = vld [vmem:[#allocation9 + $0x5a0] sm:$0xff]
    %v4252 = vld [vmem:[#allocation9 + $0x5a8] sm:$0xff]
    %v4253 = vld [vmem:[#allocation9 + $0x5b0] sm:$0xff]
    %v4254 = vld [vmem:[#allocation9 + $0x5b8] sm:$0xff]
    %v4255 = vld [vmem:[#allocation9 + $0x5c0] sm:$0xff]
    %v4256 = vld [vmem:[#allocation9 + $0x5c8] sm:$0xff]
    %v4257 = vld [vmem:[#allocation9 + $0x5d0] sm:$0xff]
    %v4258 = vld [vmem:[#allocation9 + $0x5d8] sm:$0xff]
    %v4259 = vld [vmem:[#allocation9 + $0x5e0] sm:$0xff]
    %v4260 = vld [vmem:[#allocation9 + $0x5e8] sm:$0xff]
    %v4261 = vld [vmem:[#allocation9 + $0x5f0] sm:$0xff]
    %v4262 = vld [vmem:[#allocation9 + $0x5f8] sm:$0xff]
    %v4263 = vld [vmem:[#allocation9 + $0x600] sm:$0xff]
    %v4264 = vld [vmem:[#allocation9 + $0x608] sm:$0xff]
    %v4265 = vld [vmem:[#allocation9 + $0x610] sm:$0xff]
    %v4266 = vld [vmem:[#allocation9 + $0x618] sm:$0xff]
    %v4267 = vld [vmem:[#allocation9 + $0x620] sm:$0xff]
    %v4268 = vld [vmem:[#allocation9 + $0x628] sm:$0xff]
    %v4269 = vld [vmem:[#allocation9 + $0x630] sm:$0xff]
    %v4270 = vld [vmem:[#allocation9 + $0x638] sm:$0xff]
    %v4271 = vld [vmem:[#allocation9 + $0x640] sm:$0xff]
    %v4272 = vld [vmem:[#allocation9 + $0x648] sm:$0xff]
    %v4273 = vld [vmem:[#allocation9 + $0x650] sm:$0xff]
    %v4274 = vld [vmem:[#allocation9 + $0x658] sm:$0xff]
    %v4275 = vld [vmem:[#allocation9 + $0x660] sm:$0xff]
    %v4276 = vld [vmem:[#allocation9 + $0x668] sm:$0xff]
    %v4277 = vld [vmem:[#allocation9 + $0x670] sm:$0xff]
    %v4278 = vld [vmem:[#allocation9 + $0x678] sm:$0xff]
    %v4279 = vld [vmem:[#allocation9 + $0x680] sm:$0xff]
    %v4280 = vld [vmem:[#allocation9 + $0x688] sm:$0xff]
    %v4281 = vld [vmem:[#allocation9 + $0x690] sm:$0xff]
    %v4282 = vld [vmem:[#allocation9 + $0x698] sm:$0xff]
    %v4283 = vld [vmem:[#allocation9 + $0x6a0] sm:$0xff]
    %v4284 = vld [vmem:[#allocation9 + $0x6a8] sm:$0xff]
    %v4285 = vld [vmem:[#allocation9 + $0x6b0] sm:$0xff]
    %v4286 = vld [vmem:[#allocation9 + $0x6b8] sm:$0xff]
    %v4287 = vld [vmem:[#allocation9 + $0x6c0] sm:$0xff]
    %v4288 = vld [vmem:[#allocation9 + $0x6c8] sm:$0xff]
    %v4289 = vld [vmem:[#allocation9 + $0x6d0] sm:$0xff]
    %v4290 = vld [vmem:[#allocation9 + $0x6d8] sm:$0xff]
    %v4291 = vld [vmem:[#allocation9 + $0x6e0] sm:$0xff]
    %v4292 = vld [vmem:[#allocation9 + $0x6e8] sm:$0xff]
    %v4293 = vld [vmem:[#allocation9 + $0x6f0] sm:$0xff]
    %v4294 = vld [vmem:[#allocation9 + $0x6f8] sm:$0xff]
    %v4295 = vld [vmem:[#allocation9 + $0x700] sm:$0xff]
    %v4296 = vld [vmem:[#allocation9 + $0x708] sm:$0xff]
    %v4297 = vld [vmem:[#allocation9 + $0x710] sm:$0xff]
    %v4298 = vld [vmem:[#allocation9 + $0x718] sm:$0xff]
    %v4299 = vld [vmem:[#allocation9 + $0x720] sm:$0xff]
    %v4300 = vld [vmem:[#allocation9 + $0x728] sm:$0xff]
    %v4301 = vld [vmem:[#allocation9 + $0x730] sm:$0xff]
    %v4302 = vld [vmem:[#allocation9 + $0x738] sm:$0xff]
    %v4303 = vld [vmem:[#allocation9 + $0x740] sm:$0xff]
    %v4304 = vld [vmem:[#allocation9 + $0x748] sm:$0xff]
    %v4305 = vld [vmem:[#allocation9 + $0x750] sm:$0xff]
    %v4306 = vld [vmem:[#allocation9 + $0x758] sm:$0xff]
    %v4307 = vld [vmem:[#allocation9 + $0x760] sm:$0xff]
    %v4308 = vld [vmem:[#allocation9 + $0x768] sm:$0xff]
    %v4309 = vld [vmem:[#allocation9 + $0x770] sm:$0xff]
    %v4310 = vld [vmem:[#allocation9 + $0x778] sm:$0xff]
    %v4311 = vld [vmem:[#allocation9 + $0x780] sm:$0xff]
    %v4312 = vld [vmem:[#allocation9 + $0x788] sm:$0xff]
    %v4313 = vld [vmem:[#allocation9 + $0x790] sm:$0xff]
    %v4314 = vld [vmem:[#allocation9 + $0x798] sm:$0xff]
    %v4315 = vld [vmem:[#allocation9 + $0x7a0] sm:$0xff]
    %v4316 = vld [vmem:[#allocation9 + $0x7a8] sm:$0xff]
    %v4317 = vld [vmem:[#allocation9 + $0x7b0] sm:$0xff]
    %v4318 = vld [vmem:[#allocation9 + $0x7b8] sm:$0xff]
    %v4319 = vld [vmem:[#allocation9 + $0x7c0] sm:$0xff]
    %v4320 = vld [vmem:[#allocation9 + $0x7c8] sm:$0xff]
    %v4321 = vld [vmem:[#allocation9 + $0x7d0] sm:$0xff]
    %v4322 = vld [vmem:[#allocation9 + $0x7d8] sm:$0xff]
    %v4323 = vld [vmem:[#allocation9 + $0x7e0] sm:$0xff]
    %v4324 = vld [vmem:[#allocation9 + $0x7e8] sm:$0xff]
    %v4325 = vld [vmem:[#allocation9 + $0x7f0] sm:$0xff]
    %v4326 = vld [vmem:[#allocation9 + $0x7f8] sm:$0xff]
    %v4327 = vld [vmem:[#allocation10] sm:$0xf]
    %v4329 = vlaneseq
    %v4330 = vshrl.u32 %v4329, 7
    %v4331 = vsub.s32 0, %v4330
    %v4332 = vrot.slane %v4327, %v4331
    %v4333 = vlaneseq
    %v4334 = vshrl.u32 %v4333, 7
    %v4335 = vsub.s32 1, %v4334
    %v4336 = vrot.slane %v4327, %v4335
    %v4337 = vlaneseq
    %v4338 = vshrl.u32 %v4337, 7
    %v4339 = vsub.s32 2, %v4338
    %v4340 = vrot.slane %v4327, %v4339
    %v4341 = vlaneseq
    %v4342 = vshrl.u32 %v4341, 7
    %v4343 = vsub.s32 3, %v4342
    %v4344 = vrot.slane %v4327, %v4343
    %v4605 = vunpack.c.l.b16 %v4071
    %v4606 = vunpack.c.h.b16 %v4071
    %v4607 = vunpack.c.l.b16 %v4072
    %v4608 = vunpack.c.h.b16 %v4072
    %v4609 = vunpack.c.l.b16 %v4073
    %v4610 = vunpack.c.h.b16 %v4073
    %v4611 = vunpack.c.l.b16 %v4074
    %v4612 = vunpack.c.h.b16 %v4074
    %v4613 = vunpack.c.l.b16 %v4075
    %v4614 = vunpack.c.h.b16 %v4075
    %v4615 = vunpack.c.l.b16 %v4076
    %v4616 = vunpack.c.h.b16 %v4076
    %v4617 = vunpack.c.l.b16 %v4077
    %v4618 = vunpack.c.h.b16 %v4077
    %v4619 = vunpack.c.l.b16 %v4078
    %v4620 = vunpack.c.h.b16 %v4078
    %v4621 = vunpack.c.l.b16 %v4079
    %v4622 = vunpack.c.h.b16 %v4079
    %v4623 = vunpack.c.l.b16 %v4080
    %v4624 = vunpack.c.h.b16 %v4080
    %v4625 = vunpack.c.l.b16 %v4081
    %v4626 = vunpack.c.h.b16 %v4081
    %v4627 = vunpack.c.l.b16 %v4082
    %v4628 = vunpack.c.h.b16 %v4082
    %v4629 = vunpack.c.l.b16 %v4083
    %v4630 = vunpack.c.h.b16 %v4083
    %v4631 = vunpack.c.l.b16 %v4084
    %v4632 = vunpack.c.h.b16 %v4084
    %v4633 = vunpack.c.l.b16 %v4085
    %v4634 = vunpack.c.h.b16 %v4085
    %v4635 = vunpack.c.l.b16 %v4086
    %v4636 = vunpack.c.h.b16 %v4086
    %v4637 = vunpack.c.l.b16 %v4087
    %v4638 = vunpack.c.h.b16 %v4087
    %v4639 = vunpack.c.l.b16 %v4088
    %v4640 = vunpack.c.h.b16 %v4088
    %v4641 = vunpack.c.l.b16 %v4089
    %v4642 = vunpack.c.h.b16 %v4089
    %v4643 = vunpack.c.l.b16 %v4090
    %v4644 = vunpack.c.h.b16 %v4090
    %v4645 = vunpack.c.l.b16 %v4091
    %v4646 = vunpack.c.h.b16 %v4091
    %v4647 = vunpack.c.l.b16 %v4092
    %v4648 = vunpack.c.h.b16 %v4092
    %v4649 = vunpack.c.l.b16 %v4093
    %v4650 = vunpack.c.h.b16 %v4093
    %v4651 = vunpack.c.l.b16 %v4094
    %v4652 = vunpack.c.h.b16 %v4094
    %v4653 = vunpack.c.l.b16 %v4095
    %v4654 = vunpack.c.h.b16 %v4095
    %v4655 = vunpack.c.l.b16 %v4096
    %v4656 = vunpack.c.h.b16 %v4096
    %v4657 = vunpack.c.l.b16 %v4097
    %v4658 = vunpack.c.h.b16 %v4097
    %v4659 = vunpack.c.l.b16 %v4098
    %v4660 = vunpack.c.h.b16 %v4098
    %v4661 = vunpack.c.l.b16 %v4099
    %v4662 = vunpack.c.h.b16 %v4099
    %v4663 = vunpack.c.l.b16 %v4100
    %v4664 = vunpack.c.h.b16 %v4100
    %v4665 = vunpack.c.l.b16 %v4101
    %v4666 = vunpack.c.h.b16 %v4101
    %v4667 = vunpack.c.l.b16 %v4102
    %v4668 = vunpack.c.h.b16 %v4102
    %v4669 = vunpack.c.l.b16 %v4103
    %v4670 = vunpack.c.h.b16 %v4103
    %v4671 = vunpack.c.l.b16 %v4104
    %v4672 = vunpack.c.h.b16 %v4104
    %v4673 = vunpack.c.l.b16 %v4105
    %v4674 = vunpack.c.h.b16 %v4105
    %v4675 = vunpack.c.l.b16 %v4106
    %v4676 = vunpack.c.h.b16 %v4106
    %v4677 = vunpack.c.l.b16 %v4107
    %v4678 = vunpack.c.h.b16 %v4107
    %v4679 = vunpack.c.l.b16 %v4108
    %v4680 = vunpack.c.h.b16 %v4108
    %v4681 = vunpack.c.l.b16 %v4109
    %v4682 = vunpack.c.h.b16 %v4109
    %v4683 = vunpack.c.l.b16 %v4110
    %v4684 = vunpack.c.h.b16 %v4110
    %v4685 = vunpack.c.l.b16 %v4111
    %v4686 = vunpack.c.h.b16 %v4111
    %v4687 = vunpack.c.l.b16 %v4112
    %v4688 = vunpack.c.h.b16 %v4112
    %v4689 = vunpack.c.l.b16 %v4113
    %v4690 = vunpack.c.h.b16 %v4113
    %v4691 = vunpack.c.l.b16 %v4114
    %v4692 = vunpack.c.h.b16 %v4114
    %v4693 = vunpack.c.l.b16 %v4115
    %v4694 = vunpack.c.h.b16 %v4115
    %v4695 = vunpack.c.l.b16 %v4116
    %v4696 = vunpack.c.h.b16 %v4116
    %v4697 = vunpack.c.l.b16 %v4117
    %v4698 = vunpack.c.h.b16 %v4117
    %v4699 = vunpack.c.l.b16 %v4118
    %v4700 = vunpack.c.h.b16 %v4118
    %v4701 = vunpack.c.l.b16 %v4119
    %v4702 = vunpack.c.h.b16 %v4119
    %v4703 = vunpack.c.l.b16 %v4120
    %v4704 = vunpack.c.h.b16 %v4120
    %v4705 = vunpack.c.l.b16 %v4121
    %v4706 = vunpack.c.h.b16 %v4121
    %v4707 = vunpack.c.l.b16 %v4122
    %v4708 = vunpack.c.h.b16 %v4122
    %v4709 = vunpack.c.l.b16 %v4123
    %v4710 = vunpack.c.h.b16 %v4123
    %v4711 = vunpack.c.l.b16 %v4124
    %v4712 = vunpack.c.h.b16 %v4124
    %v4713 = vunpack.c.l.b16 %v4125
    %v4714 = vunpack.c.h.b16 %v4125
    %v4715 = vunpack.c.l.b16 %v4126
    %v4716 = vunpack.c.h.b16 %v4126
    %v4717 = vunpack.c.l.b16 %v4127
    %v4718 = vunpack.c.h.b16 %v4127
    %v4719 = vunpack.c.l.b16 %v4128
    %v4720 = vunpack.c.h.b16 %v4128
    %v4721 = vunpack.c.l.b16 %v4129
    %v4722 = vunpack.c.h.b16 %v4129
    %v4723 = vunpack.c.l.b16 %v4130
    %v4724 = vunpack.c.h.b16 %v4130
    %v4725 = vunpack.c.l.b16 %v4131
    %v4726 = vunpack.c.h.b16 %v4131
    %v4727 = vunpack.c.l.b16 %v4132
    %v4728 = vunpack.c.h.b16 %v4132
    %v4729 = vunpack.c.l.b16 %v4133
    %v4730 = vunpack.c.h.b16 %v4133
    %v4731 = vunpack.c.l.b16 %v4134
    %v4732 = vunpack.c.h.b16 %v4134
    %v4733 = vunpack.c.l.b16 %v4135
    %v4734 = vunpack.c.h.b16 %v4135
    %v4735 = vunpack.c.l.b16 %v4136
    %v4736 = vunpack.c.h.b16 %v4136
    %v4737 = vunpack.c.l.b16 %v4137
    %v4738 = vunpack.c.h.b16 %v4137
    %v4739 = vunpack.c.l.b16 %v4138
    %v4740 = vunpack.c.h.b16 %v4138
    %v4741 = vunpack.c.l.b16 %v4139
    %v4742 = vunpack.c.h.b16 %v4139
    %v4743 = vunpack.c.l.b16 %v4140
    %v4744 = vunpack.c.h.b16 %v4140
    %v4745 = vunpack.c.l.b16 %v4141
    %v4746 = vunpack.c.h.b16 %v4141
    %v4747 = vunpack.c.l.b16 %v4142
    %v4748 = vunpack.c.h.b16 %v4142
    %v4749 = vunpack.c.l.b16 %v4143
    %v4750 = vunpack.c.h.b16 %v4143
    %v4751 = vunpack.c.l.b16 %v4144
    %v4752 = vunpack.c.h.b16 %v4144
    %v4753 = vunpack.c.l.b16 %v4145
    %v4754 = vunpack.c.h.b16 %v4145
    %v4755 = vunpack.c.l.b16 %v4146
    %v4756 = vunpack.c.h.b16 %v4146
    %v4757 = vunpack.c.l.b16 %v4147
    %v4758 = vunpack.c.h.b16 %v4147
    %v4759 = vunpack.c.l.b16 %v4148
    %v4760 = vunpack.c.h.b16 %v4148
    %v4761 = vunpack.c.l.b16 %v4149
    %v4762 = vunpack.c.h.b16 %v4149
    %v4763 = vunpack.c.l.b16 %v4150
    %v4764 = vunpack.c.h.b16 %v4150
    %v4765 = vunpack.c.l.b16 %v4151
    %v4766 = vunpack.c.h.b16 %v4151
    %v4767 = vunpack.c.l.b16 %v4152
    %v4768 = vunpack.c.h.b16 %v4152
    %v4769 = vunpack.c.l.b16 %v4153
    %v4770 = vunpack.c.h.b16 %v4153
    %v4771 = vunpack.c.l.b16 %v4154
    %v4772 = vunpack.c.h.b16 %v4154
    %v4773 = vunpack.c.l.b16 %v4155
    %v4774 = vunpack.c.h.b16 %v4155
    %v4775 = vunpack.c.l.b16 %v4156
    %v4776 = vunpack.c.h.b16 %v4156
    %v4777 = vunpack.c.l.b16 %v4157
    %v4778 = vunpack.c.h.b16 %v4157
    %v4779 = vunpack.c.l.b16 %v4158
    %v4780 = vunpack.c.h.b16 %v4158
    %v4781 = vunpack.c.l.b16 %v4159
    %v4782 = vunpack.c.h.b16 %v4159
    %v4783 = vunpack.c.l.b16 %v4160
    %v4784 = vunpack.c.h.b16 %v4160
    %v4785 = vunpack.c.l.b16 %v4161
    %v4786 = vunpack.c.h.b16 %v4161
    %v4787 = vunpack.c.l.b16 %v4162
    %v4788 = vunpack.c.h.b16 %v4162
    %v4789 = vunpack.c.l.b16 %v4163
    %v4790 = vunpack.c.h.b16 %v4163
    %v4791 = vunpack.c.l.b16 %v4164
    %v4792 = vunpack.c.h.b16 %v4164
    %v4793 = vunpack.c.l.b16 %v4165
    %v4794 = vunpack.c.h.b16 %v4165
    %v4795 = vunpack.c.l.b16 %v4166
    %v4796 = vunpack.c.h.b16 %v4166
    %v4797 = vunpack.c.l.b16 %v4167
    %v4798 = vunpack.c.h.b16 %v4167
    %v4799 = vunpack.c.l.b16 %v4168
    %v4800 = vunpack.c.h.b16 %v4168
    %v4801 = vunpack.c.l.b16 %v4169
    %v4802 = vunpack.c.h.b16 %v4169
    %v4803 = vunpack.c.l.b16 %v4170
    %v4804 = vunpack.c.h.b16 %v4170
    %v4805 = vunpack.c.l.b16 %v4171
    %v4806 = vunpack.c.h.b16 %v4171
    %v4807 = vunpack.c.l.b16 %v4172
    %v4808 = vunpack.c.h.b16 %v4172
    %v4809 = vunpack.c.l.b16 %v4173
    %v4810 = vunpack.c.h.b16 %v4173
    %v4811 = vunpack.c.l.b16 %v4174
    %v4812 = vunpack.c.h.b16 %v4174
    %v4813 = vunpack.c.l.b16 %v4175
    %v4814 = vunpack.c.h.b16 %v4175
    %v4815 = vunpack.c.l.b16 %v4176
    %v4816 = vunpack.c.h.b16 %v4176
    %v4817 = vunpack.c.l.b16 %v4177
    %v4818 = vunpack.c.h.b16 %v4177
    %v4819 = vunpack.c.l.b16 %v4178
    %v4820 = vunpack.c.h.b16 %v4178
    %v4821 = vunpack.c.l.b16 %v4179
    %v4822 = vunpack.c.h.b16 %v4179
    %v4823 = vunpack.c.l.b16 %v4180
    %v4824 = vunpack.c.h.b16 %v4180
    %v4825 = vunpack.c.l.b16 %v4181
    %v4826 = vunpack.c.h.b16 %v4181
    %v4827 = vunpack.c.l.b16 %v4182
    %v4828 = vunpack.c.h.b16 %v4182
    %v4829 = vunpack.c.l.b16 %v4183
    %v4830 = vunpack.c.h.b16 %v4183
    %v4831 = vunpack.c.l.b16 %v4184
    %v4832 = vunpack.c.h.b16 %v4184
    %v4833 = vunpack.c.l.b16 %v4185
    %v4834 = vunpack.c.h.b16 %v4185
    %v4835 = vunpack.c.l.b16 %v4186
    %v4836 = vunpack.c.h.b16 %v4186
    %v4837 = vunpack.c.l.b16 %v4187
    %v4838 = vunpack.c.h.b16 %v4187
    %v4839 = vunpack.c.l.b16 %v4188
    %v4840 = vunpack.c.h.b16 %v4188
    %v4841 = vunpack.c.l.b16 %v4189
    %v4842 = vunpack.c.h.b16 %v4189
    %v4843 = vunpack.c.l.b16 %v4190
    %v4844 = vunpack.c.h.b16 %v4190
    %v4845 = vunpack.c.l.b16 %v4191
    %v4846 = vunpack.c.h.b16 %v4191
    %v4847 = vunpack.c.l.b16 %v4192
    %v4848 = vunpack.c.h.b16 %v4192
    %v4849 = vunpack.c.l.b16 %v4193
    %v4850 = vunpack.c.h.b16 %v4193
    %v4851 = vunpack.c.l.b16 %v4194
    %v4852 = vunpack.c.h.b16 %v4194
    %v4853 = vunpack.c.l.b16 %v4195
    %v4854 = vunpack.c.h.b16 %v4195
    %v4855 = vunpack.c.l.b16 %v4196
    %v4856 = vunpack.c.h.b16 %v4196
    %v4857 = vunpack.c.l.b16 %v4197
    %v4858 = vunpack.c.h.b16 %v4197
    %v4859 = vunpack.c.l.b16 %v4198
    %v4860 = vunpack.c.h.b16 %v4198
    %v4861 = vunpack.c.l.b16 %v4199
    %v4862 = vunpack.c.h.b16 %v4199
    %v4863 = vunpack.c.l.b16 %v4200
    %v4864 = vunpack.c.h.b16 %v4200
    %v4865 = vunpack.c.l.b16 %v4201
    %v4866 = vunpack.c.h.b16 %v4201
    %v4867 = vunpack.c.l.b16 %v4202
    %v4868 = vunpack.c.h.b16 %v4202
    %v4869 = vunpack.c.l.b16 %v4203
    %v4870 = vunpack.c.h.b16 %v4203
    %v4871 = vunpack.c.l.b16 %v4204
    %v4872 = vunpack.c.h.b16 %v4204
    %v4873 = vunpack.c.l.b16 %v4205
    %v4874 = vunpack.c.h.b16 %v4205
    %v4875 = vunpack.c.l.b16 %v4206
    %v4876 = vunpack.c.h.b16 %v4206
    %v4877 = vunpack.c.l.b16 %v4207
    %v4878 = vunpack.c.h.b16 %v4207
    %v4879 = vunpack.c.l.b16 %v4208
    %v4880 = vunpack.c.h.b16 %v4208
    %v4881 = vunpack.c.l.b16 %v4209
    %v4882 = vunpack.c.h.b16 %v4209
    %v4883 = vunpack.c.l.b16 %v4210
    %v4884 = vunpack.c.h.b16 %v4210
    %v4885 = vunpack.c.l.b16 %v4211
    %v4886 = vunpack.c.h.b16 %v4211
    %v4887 = vunpack.c.l.b16 %v4212
    %v4888 = vunpack.c.h.b16 %v4212
    %v4889 = vunpack.c.l.b16 %v4213
    %v4890 = vunpack.c.h.b16 %v4213
    %v4891 = vunpack.c.l.b16 %v4214
    %v4892 = vunpack.c.h.b16 %v4214
    %v4893 = vunpack.c.l.b16 %v4215
    %v4894 = vunpack.c.h.b16 %v4215
    %v4895 = vunpack.c.l.b16 %v4216
    %v4896 = vunpack.c.h.b16 %v4216
    %v4897 = vunpack.c.l.b16 %v4217
    %v4898 = vunpack.c.h.b16 %v4217
    %v4899 = vunpack.c.l.b16 %v4218
    %v4900 = vunpack.c.h.b16 %v4218
    %v4901 = vunpack.c.l.b16 %v4219
    %v4902 = vunpack.c.h.b16 %v4219
    %v4903 = vunpack.c.l.b16 %v4220
    %v4904 = vunpack.c.h.b16 %v4220
    %v4905 = vunpack.c.l.b16 %v4221
    %v4906 = vunpack.c.h.b16 %v4221
    %v4907 = vunpack.c.l.b16 %v4222
    %v4908 = vunpack.c.h.b16 %v4222
    %v4909 = vunpack.c.l.b16 %v4223
    %v4910 = vunpack.c.h.b16 %v4223
    %v4911 = vunpack.c.l.b16 %v4224
    %v4912 = vunpack.c.h.b16 %v4224
    %v4913 = vunpack.c.l.b16 %v4225
    %v4914 = vunpack.c.h.b16 %v4225
    %v4915 = vunpack.c.l.b16 %v4226
    %v4916 = vunpack.c.h.b16 %v4226
    %v4917 = vunpack.c.l.b16 %v4227
    %v4918 = vunpack.c.h.b16 %v4227
    %v4919 = vunpack.c.l.b16 %v4228
    %v4920 = vunpack.c.h.b16 %v4228
    %v4921 = vunpack.c.l.b16 %v4229
    %v4922 = vunpack.c.h.b16 %v4229
    %v4923 = vunpack.c.l.b16 %v4230
    %v4924 = vunpack.c.h.b16 %v4230
    %v4925 = vunpack.c.l.b16 %v4231
    %v4926 = vunpack.c.h.b16 %v4231
    %v4927 = vunpack.c.l.b16 %v4232
    %v4928 = vunpack.c.h.b16 %v4232
    %v4929 = vunpack.c.l.b16 %v4233
    %v4930 = vunpack.c.h.b16 %v4233
    %v4931 = vunpack.c.l.b16 %v4234
    %v4932 = vunpack.c.h.b16 %v4234
    %v4933 = vunpack.c.l.b16 %v4235
    %v4934 = vunpack.c.h.b16 %v4235
    %v4935 = vunpack.c.l.b16 %v4236
    %v4936 = vunpack.c.h.b16 %v4236
    %v4937 = vunpack.c.l.b16 %v4237
    %v4938 = vunpack.c.h.b16 %v4237
    %v4939 = vunpack.c.l.b16 %v4238
    %v4940 = vunpack.c.h.b16 %v4238
    %v4941 = vunpack.c.l.b16 %v4239
    %v4942 = vunpack.c.h.b16 %v4239
    %v4943 = vunpack.c.l.b16 %v4240
    %v4944 = vunpack.c.h.b16 %v4240
    %v4945 = vunpack.c.l.b16 %v4241
    %v4946 = vunpack.c.h.b16 %v4241
    %v4947 = vunpack.c.l.b16 %v4242
    %v4948 = vunpack.c.h.b16 %v4242
    %v4949 = vunpack.c.l.b16 %v4243
    %v4950 = vunpack.c.h.b16 %v4243
    %v4951 = vunpack.c.l.b16 %v4244
    %v4952 = vunpack.c.h.b16 %v4244
    %v4953 = vunpack.c.l.b16 %v4245
    %v4954 = vunpack.c.h.b16 %v4245
    %v4955 = vunpack.c.l.b16 %v4246
    %v4956 = vunpack.c.h.b16 %v4246
    %v4957 = vunpack.c.l.b16 %v4247
    %v4958 = vunpack.c.h.b16 %v4247
    %v4959 = vunpack.c.l.b16 %v4248
    %v4960 = vunpack.c.h.b16 %v4248
    %v4961 = vunpack.c.l.b16 %v4249
    %v4962 = vunpack.c.h.b16 %v4249
    %v4963 = vunpack.c.l.b16 %v4250
    %v4964 = vunpack.c.h.b16 %v4250
    %v4965 = vunpack.c.l.b16 %v4251
    %v4966 = vunpack.c.h.b16 %v4251
    %v4967 = vunpack.c.l.b16 %v4252
    %v4968 = vunpack.c.h.b16 %v4252
    %v4969 = vunpack.c.l.b16 %v4253
    %v4970 = vunpack.c.h.b16 %v4253
    %v4971 = vunpack.c.l.b16 %v4254
    %v4972 = vunpack.c.h.b16 %v4254
    %v4973 = vunpack.c.l.b16 %v4255
    %v4974 = vunpack.c.h.b16 %v4255
    %v4975 = vunpack.c.l.b16 %v4256
    %v4976 = vunpack.c.h.b16 %v4256
    %v4977 = vunpack.c.l.b16 %v4257
    %v4978 = vunpack.c.h.b16 %v4257
    %v4979 = vunpack.c.l.b16 %v4258
    %v4980 = vunpack.c.h.b16 %v4258
    %v4981 = vunpack.c.l.b16 %v4259
    %v4982 = vunpack.c.h.b16 %v4259
    %v4983 = vunpack.c.l.b16 %v4260
    %v4984 = vunpack.c.h.b16 %v4260
    %v4985 = vunpack.c.l.b16 %v4261
    %v4986 = vunpack.c.h.b16 %v4261
    %v4987 = vunpack.c.l.b16 %v4262
    %v4988 = vunpack.c.h.b16 %v4262
    %v4989 = vunpack.c.l.b16 %v4263
    %v4990 = vunpack.c.h.b16 %v4263
    %v4991 = vunpack.c.l.b16 %v4264
    %v4992 = vunpack.c.h.b16 %v4264
    %v4993 = vunpack.c.l.b16 %v4265
    %v4994 = vunpack.c.h.b16 %v4265
    %v4995 = vunpack.c.l.b16 %v4266
    %v4996 = vunpack.c.h.b16 %v4266
    %v4997 = vunpack.c.l.b16 %v4267
    %v4998 = vunpack.c.h.b16 %v4267
    %v4999 = vunpack.c.l.b16 %v4268
    %v5000 = vunpack.c.h.b16 %v4268
    %v5001 = vunpack.c.l.b16 %v4269
    %v5002 = vunpack.c.h.b16 %v4269
    %v5003 = vunpack.c.l.b16 %v4270
    %v5004 = vunpack.c.h.b16 %v4270
    %v5005 = vunpack.c.l.b16 %v4271
    %v5006 = vunpack.c.h.b16 %v4271
    %v5007 = vunpack.c.l.b16 %v4272
    %v5008 = vunpack.c.h.b16 %v4272
    %v5009 = vunpack.c.l.b16 %v4273
    %v5010 = vunpack.c.h.b16 %v4273
    %v5011 = vunpack.c.l.b16 %v4274
    %v5012 = vunpack.c.h.b16 %v4274
    %v5013 = vunpack.c.l.b16 %v4275
    %v5014 = vunpack.c.h.b16 %v4275
    %v5015 = vunpack.c.l.b16 %v4276
    %v5016 = vunpack.c.h.b16 %v4276
    %v5017 = vunpack.c.l.b16 %v4277
    %v5018 = vunpack.c.h.b16 %v4277
    %v5019 = vunpack.c.l.b16 %v4278
    %v5020 = vunpack.c.h.b16 %v4278
    %v5021 = vunpack.c.l.b16 %v4279
    %v5022 = vunpack.c.h.b16 %v4279
    %v5023 = vunpack.c.l.b16 %v4280
    %v5024 = vunpack.c.h.b16 %v4280
    %v5025 = vunpack.c.l.b16 %v4281
    %v5026 = vunpack.c.h.b16 %v4281
    %v5027 = vunpack.c.l.b16 %v4282
    %v5028 = vunpack.c.h.b16 %v4282
    %v5029 = vunpack.c.l.b16 %v4283
    %v5030 = vunpack.c.h.b16 %v4283
    %v5031 = vunpack.c.l.b16 %v4284
    %v5032 = vunpack.c.h.b16 %v4284
    %v5033 = vunpack.c.l.b16 %v4285
    %v5034 = vunpack.c.h.b16 %v4285
    %v5035 = vunpack.c.l.b16 %v4286
    %v5036 = vunpack.c.h.b16 %v4286
    %v5037 = vunpack.c.l.b16 %v4287
    %v5038 = vunpack.c.h.b16 %v4287
    %v5039 = vunpack.c.l.b16 %v4288
    %v5040 = vunpack.c.h.b16 %v4288
    %v5041 = vunpack.c.l.b16 %v4289
    %v5042 = vunpack.c.h.b16 %v4289
    %v5043 = vunpack.c.l.b16 %v4290
    %v5044 = vunpack.c.h.b16 %v4290
    %v5045 = vunpack.c.l.b16 %v4291
    %v5046 = vunpack.c.h.b16 %v4291
    %v5047 = vunpack.c.l.b16 %v4292
    %v5048 = vunpack.c.h.b16 %v4292
    %v5049 = vunpack.c.l.b16 %v4293
    %v5050 = vunpack.c.h.b16 %v4293
    %v5051 = vunpack.c.l.b16 %v4294
    %v5052 = vunpack.c.h.b16 %v4294
    %v5053 = vunpack.c.l.b16 %v4295
    %v5054 = vunpack.c.h.b16 %v4295
    %v5055 = vunpack.c.l.b16 %v4296
    %v5056 = vunpack.c.h.b16 %v4296
    %v5057 = vunpack.c.l.b16 %v4297
    %v5058 = vunpack.c.h.b16 %v4297
    %v5059 = vunpack.c.l.b16 %v4298
    %v5060 = vunpack.c.h.b16 %v4298
    %v5061 = vunpack.c.l.b16 %v4299
    %v5062 = vunpack.c.h.b16 %v4299
    %v5063 = vunpack.c.l.b16 %v4300
    %v5064 = vunpack.c.h.b16 %v4300
    %v5065 = vunpack.c.l.b16 %v4301
    %v5066 = vunpack.c.h.b16 %v4301
    %v5067 = vunpack.c.l.b16 %v4302
    %v5068 = vunpack.c.h.b16 %v4302
    %v5069 = vunpack.c.l.b16 %v4303
    %v5070 = vunpack.c.h.b16 %v4303
    %v5071 = vunpack.c.l.b16 %v4304
    %v5072 = vunpack.c.h.b16 %v4304
    %v5073 = vunpack.c.l.b16 %v4305
    %v5074 = vunpack.c.h.b16 %v4305
    %v5075 = vunpack.c.l.b16 %v4306
    %v5076 = vunpack.c.h.b16 %v4306
    %v5077 = vunpack.c.l.b16 %v4307
    %v5078 = vunpack.c.h.b16 %v4307
    %v5079 = vunpack.c.l.b16 %v4308
    %v5080 = vunpack.c.h.b16 %v4308
    %v5081 = vunpack.c.l.b16 %v4309
    %v5082 = vunpack.c.h.b16 %v4309
    %v5083 = vunpack.c.l.b16 %v4310
    %v5084 = vunpack.c.h.b16 %v4310
    %v5085 = vunpack.c.l.b16 %v4311
    %v5086 = vunpack.c.h.b16 %v4311
    %v5087 = vunpack.c.l.b16 %v4312
    %v5088 = vunpack.c.h.b16 %v4312
    %v5089 = vunpack.c.l.b16 %v4313
    %v5090 = vunpack.c.h.b16 %v4313
    %v5091 = vunpack.c.l.b16 %v4314
    %v5092 = vunpack.c.h.b16 %v4314
    %v5093 = vunpack.c.l.b16 %v4315
    %v5094 = vunpack.c.h.b16 %v4315
    %v5095 = vunpack.c.l.b16 %v4316
    %v5096 = vunpack.c.h.b16 %v4316
    %v5097 = vunpack.c.l.b16 %v4317
    %v5098 = vunpack.c.h.b16 %v4317
    %v5099 = vunpack.c.l.b16 %v4318
    %v5100 = vunpack.c.h.b16 %v4318
    %v5101 = vunpack.c.l.b16 %v4319
    %v5102 = vunpack.c.h.b16 %v4319
    %v5103 = vunpack.c.l.b16 %v4320
    %v5104 = vunpack.c.h.b16 %v4320
    %v5105 = vunpack.c.l.b16 %v4321
    %v5106 = vunpack.c.h.b16 %v4321
    %v5107 = vunpack.c.l.b16 %v4322
    %v5108 = vunpack.c.h.b16 %v4322
    %v5109 = vunpack.c.l.b16 %v4323
    %v5110 = vunpack.c.h.b16 %v4323
    %v5111 = vunpack.c.l.b16 %v4324
    %v5112 = vunpack.c.h.b16 %v4324
    %v5113 = vunpack.c.l.b16 %v4325
    %v5114 = vunpack.c.h.b16 %v4325
    %v5115 = vunpack.c.l.b16 %v4326
    %v5116 = vunpack.c.h.b16 %v4326
    %v5117 = vpack.c.b16 %v4609, %v4605
    %v5118 = vpack.c.b16 %v4610, %v4606
    %v5119 = vpack.c.b16 %v4611, %v4607
    %v5120 = vpack.c.b16 %v4612, %v4608
    %v5121 = vpack.c.b16 %v4617, %v4613
    %v5122 = vpack.c.b16 %v4618, %v4614
    %v5123 = vpack.c.b16 %v4619, %v4615
    %v5124 = vpack.c.b16 %v4620, %v4616
    %v5125 = vpack.c.b16 %v4625, %v4621
    %v5126 = vpack.c.b16 %v4626, %v4622
    %v5127 = vpack.c.b16 %v4627, %v4623
    %v5128 = vpack.c.b16 %v4628, %v4624
    %v5129 = vpack.c.b16 %v4633, %v4629
    %v5130 = vpack.c.b16 %v4634, %v4630
    %v5131 = vpack.c.b16 %v4635, %v4631
    %v5132 = vpack.c.b16 %v4636, %v4632
    %v5133 = vpack.c.b16 %v4641, %v4637
    %v5134 = vpack.c.b16 %v4642, %v4638
    %v5135 = vpack.c.b16 %v4643, %v4639
    %v5136 = vpack.c.b16 %v4644, %v4640
    %v5137 = vpack.c.b16 %v4649, %v4645
    %v5138 = vpack.c.b16 %v4650, %v4646
    %v5139 = vpack.c.b16 %v4651, %v4647
    %v5140 = vpack.c.b16 %v4652, %v4648
    %v5141 = vpack.c.b16 %v4657, %v4653
    %v5142 = vpack.c.b16 %v4658, %v4654
    %v5143 = vpack.c.b16 %v4659, %v4655
    %v5144 = vpack.c.b16 %v4660, %v4656
    %v5145 = vpack.c.b16 %v4665, %v4661
    %v5146 = vpack.c.b16 %v4666, %v4662
    %v5147 = vpack.c.b16 %v4667, %v4663
    %v5148 = vpack.c.b16 %v4668, %v4664
    %v5149 = vpack.c.b16 %v4673, %v4669
    %v5150 = vpack.c.b16 %v4674, %v4670
    %v5151 = vpack.c.b16 %v4675, %v4671
    %v5152 = vpack.c.b16 %v4676, %v4672
    %v5153 = vpack.c.b16 %v4681, %v4677
    %v5154 = vpack.c.b16 %v4682, %v4678
    %v5155 = vpack.c.b16 %v4683, %v4679
    %v5156 = vpack.c.b16 %v4684, %v4680
    %v5157 = vpack.c.b16 %v4689, %v4685
    %v5158 = vpack.c.b16 %v4690, %v4686
    %v5159 = vpack.c.b16 %v4691, %v4687
    %v5160 = vpack.c.b16 %v4692, %v4688
    %v5161 = vpack.c.b16 %v4697, %v4693
    %v5162 = vpack.c.b16 %v4698, %v4694
    %v5163 = vpack.c.b16 %v4699, %v4695
    %v5164 = vpack.c.b16 %v4700, %v4696
    %v5165 = vpack.c.b16 %v4705, %v4701
    %v5166 = vpack.c.b16 %v4706, %v4702
    %v5167 = vpack.c.b16 %v4707, %v4703
    %v5168 = vpack.c.b16 %v4708, %v4704
    %v5169 = vpack.c.b16 %v4713, %v4709
    %v5170 = vpack.c.b16 %v4714, %v4710
    %v5171 = vpack.c.b16 %v4715, %v4711
    %v5172 = vpack.c.b16 %v4716, %v4712
    %v5173 = vpack.c.b16 %v4721, %v4717
    %v5174 = vpack.c.b16 %v4722, %v4718
    %v5175 = vpack.c.b16 %v4723, %v4719
    %v5176 = vpack.c.b16 %v4724, %v4720
    %v5177 = vpack.c.b16 %v4729, %v4725
    %v5178 = vpack.c.b16 %v4730, %v4726
    %v5179 = vpack.c.b16 %v4731, %v4727
    %v5180 = vpack.c.b16 %v4732, %v4728
    %v5181 = vpack.c.b16 %v4737, %v4733
    %v5182 = vpack.c.b16 %v4738, %v4734
    %v5183 = vpack.c.b16 %v4739, %v4735
    %v5184 = vpack.c.b16 %v4740, %v4736
    %v5185 = vpack.c.b16 %v4745, %v4741
    %v5186 = vpack.c.b16 %v4746, %v4742
    %v5187 = vpack.c.b16 %v4747, %v4743
    %v5188 = vpack.c.b16 %v4748, %v4744
    %v5189 = vpack.c.b16 %v4753, %v4749
    %v5190 = vpack.c.b16 %v4754, %v4750
    %v5191 = vpack.c.b16 %v4755, %v4751
    %v5192 = vpack.c.b16 %v4756, %v4752
    %v5193 = vpack.c.b16 %v4761, %v4757
    %v5194 = vpack.c.b16 %v4762, %v4758
    %v5195 = vpack.c.b16 %v4763, %v4759
    %v5196 = vpack.c.b16 %v4764, %v4760
    %v5197 = vpack.c.b16 %v4769, %v4765
    %v5198 = vpack.c.b16 %v4770, %v4766
    %v5199 = vpack.c.b16 %v4771, %v4767
    %v5200 = vpack.c.b16 %v4772, %v4768
    %v5201 = vpack.c.b16 %v4777, %v4773
    %v5202 = vpack.c.b16 %v4778, %v4774
    %v5203 = vpack.c.b16 %v4779, %v4775
    %v5204 = vpack.c.b16 %v4780, %v4776
    %v5205 = vpack.c.b16 %v4785, %v4781
    %v5206 = vpack.c.b16 %v4786, %v4782
    %v5207 = vpack.c.b16 %v4787, %v4783
    %v5208 = vpack.c.b16 %v4788, %v4784
    %v5209 = vpack.c.b16 %v4793, %v4789
    %v5210 = vpack.c.b16 %v4794, %v4790
    %v5211 = vpack.c.b16 %v4795, %v4791
    %v5212 = vpack.c.b16 %v4796, %v4792
    %v5213 = vpack.c.b16 %v4801, %v4797
    %v5214 = vpack.c.b16 %v4802, %v4798
    %v5215 = vpack.c.b16 %v4803, %v4799
    %v5216 = vpack.c.b16 %v4804, %v4800
    %v5217 = vpack.c.b16 %v4809, %v4805
    %v5218 = vpack.c.b16 %v4810, %v4806
    %v5219 = vpack.c.b16 %v4811, %v4807
    %v5220 = vpack.c.b16 %v4812, %v4808
    %v5221 = vpack.c.b16 %v4817, %v4813
    %v5222 = vpack.c.b16 %v4818, %v4814
    %v5223 = vpack.c.b16 %v4819, %v4815
    %v5224 = vpack.c.b16 %v4820, %v4816
    %v5225 = vpack.c.b16 %v4825, %v4821
    %v5226 = vpack.c.b16 %v4826, %v4822
    %v5227 = vpack.c.b16 %v4827, %v4823
    %v5228 = vpack.c.b16 %v4828, %v4824
    %v5229 = vpack.c.b16 %v4833, %v4829
    %v5230 = vpack.c.b16 %v4834, %v4830
    %v5231 = vpack.c.b16 %v4835, %v4831
    %v5232 = vpack.c.b16 %v4836, %v4832
    %v5233 = vpack.c.b16 %v4841, %v4837
    %v5234 = vpack.c.b16 %v4842, %v4838
    %v5235 = vpack.c.b16 %v4843, %v4839
    %v5236 = vpack.c.b16 %v4844, %v4840
    %v5237 = vpack.c.b16 %v4849, %v4845
    %v5238 = vpack.c.b16 %v4850, %v4846
    %v5239 = vpack.c.b16 %v4851, %v4847
    %v5240 = vpack.c.b16 %v4852, %v4848
    %v5241 = vpack.c.b16 %v4857, %v4853
    %v5242 = vpack.c.b16 %v4858, %v4854
    %v5243 = vpack.c.b16 %v4859, %v4855
    %v5244 = vpack.c.b16 %v4860, %v4856
    %v5245 = vpack.c.b16 %v4865, %v4861
    %v5246 = vpack.c.b16 %v4866, %v4862
    %v5247 = vpack.c.b16 %v4867, %v4863
    %v5248 = vpack.c.b16 %v4868, %v4864
    %v5249 = vpack.c.b16 %v4873, %v4869
    %v5250 = vpack.c.b16 %v4874, %v4870
    %v5251 = vpack.c.b16 %v4875, %v4871
    %v5252 = vpack.c.b16 %v4876, %v4872
    %v5253 = vpack.c.b16 %v4881, %v4877
    %v5254 = vpack.c.b16 %v4882, %v4878
    %v5255 = vpack.c.b16 %v4883, %v4879
    %v5256 = vpack.c.b16 %v4884, %v4880
    %v5257 = vpack.c.b16 %v4889, %v4885
    %v5258 = vpack.c.b16 %v4890, %v4886
    %v5259 = vpack.c.b16 %v4891, %v4887
    %v5260 = vpack.c.b16 %v4892, %v4888
    %v5261 = vpack.c.b16 %v4897, %v4893
    %v5262 = vpack.c.b16 %v4898, %v4894
    %v5263 = vpack.c.b16 %v4899, %v4895
    %v5264 = vpack.c.b16 %v4900, %v4896
    %v5265 = vpack.c.b16 %v4905, %v4901
    %v5266 = vpack.c.b16 %v4906, %v4902
    %v5267 = vpack.c.b16 %v4907, %v4903
    %v5268 = vpack.c.b16 %v4908, %v4904
    %v5269 = vpack.c.b16 %v4913, %v4909
    %v5270 = vpack.c.b16 %v4914, %v4910
    %v5271 = vpack.c.b16 %v4915, %v4911
    %v5272 = vpack.c.b16 %v4916, %v4912
    %v5273 = vpack.c.b16 %v4921, %v4917
    %v5274 = vpack.c.b16 %v4922, %v4918
    %v5275 = vpack.c.b16 %v4923, %v4919
    %v5276 = vpack.c.b16 %v4924, %v4920
    %v5277 = vpack.c.b16 %v4929, %v4925
    %v5278 = vpack.c.b16 %v4930, %v4926
    %v5279 = vpack.c.b16 %v4931, %v4927
    %v5280 = vpack.c.b16 %v4932, %v4928
    %v5281 = vpack.c.b16 %v4937, %v4933
    %v5282 = vpack.c.b16 %v4938, %v4934
    %v5283 = vpack.c.b16 %v4939, %v4935
    %v5284 = vpack.c.b16 %v4940, %v4936
    %v5285 = vpack.c.b16 %v4945, %v4941
    %v5286 = vpack.c.b16 %v4946, %v4942
    %v5287 = vpack.c.b16 %v4947, %v4943
    %v5288 = vpack.c.b16 %v4948, %v4944
    %v5289 = vpack.c.b16 %v4953, %v4949
    %v5290 = vpack.c.b16 %v4954, %v4950
    %v5291 = vpack.c.b16 %v4955, %v4951
    %v5292 = vpack.c.b16 %v4956, %v4952
    %v5293 = vpack.c.b16 %v4961, %v4957
    %v5294 = vpack.c.b16 %v4962, %v4958
    %v5295 = vpack.c.b16 %v4963, %v4959
    %v5296 = vpack.c.b16 %v4964, %v4960
    %v5297 = vpack.c.b16 %v4969, %v4965
    %v5298 = vpack.c.b16 %v4970, %v4966
    %v5299 = vpack.c.b16 %v4971, %v4967
    %v5300 = vpack.c.b16 %v4972, %v4968
    %v5301 = vpack.c.b16 %v4977, %v4973
    %v5302 = vpack.c.b16 %v4978, %v4974
    %v5303 = vpack.c.b16 %v4979, %v4975
    %v5304 = vpack.c.b16 %v4980, %v4976
    %v5305 = vpack.c.b16 %v4985, %v4981
    %v5306 = vpack.c.b16 %v4986, %v4982
    %v5307 = vpack.c.b16 %v4987, %v4983
    %v5308 = vpack.c.b16 %v4988, %v4984
    %v5309 = vpack.c.b16 %v4993, %v4989
    %v5310 = vpack.c.b16 %v4994, %v4990
    %v5311 = vpack.c.b16 %v4995, %v4991
    %v5312 = vpack.c.b16 %v4996, %v4992
    %v5313 = vpack.c.b16 %v5001, %v4997
    %v5314 = vpack.c.b16 %v5002, %v4998
    %v5315 = vpack.c.b16 %v5003, %v4999
    %v5316 = vpack.c.b16 %v5004, %v5000
    %v5317 = vpack.c.b16 %v5009, %v5005
    %v5318 = vpack.c.b16 %v5010, %v5006
    %v5319 = vpack.c.b16 %v5011, %v5007
    %v5320 = vpack.c.b16 %v5012, %v5008
    %v5321 = vpack.c.b16 %v5017, %v5013
    %v5322 = vpack.c.b16 %v5018, %v5014
    %v5323 = vpack.c.b16 %v5019, %v5015
    %v5324 = vpack.c.b16 %v5020, %v5016
    %v5325 = vpack.c.b16 %v5025, %v5021
    %v5326 = vpack.c.b16 %v5026, %v5022
    %v5327 = vpack.c.b16 %v5027, %v5023
    %v5328 = vpack.c.b16 %v5028, %v5024
    %v5329 = vpack.c.b16 %v5033, %v5029
    %v5330 = vpack.c.b16 %v5034, %v5030
    %v5331 = vpack.c.b16 %v5035, %v5031
    %v5332 = vpack.c.b16 %v5036, %v5032
    %v5333 = vpack.c.b16 %v5041, %v5037
    %v5334 = vpack.c.b16 %v5042, %v5038
    %v5335 = vpack.c.b16 %v5043, %v5039
    %v5336 = vpack.c.b16 %v5044, %v5040
    %v5337 = vpack.c.b16 %v5049, %v5045
    %v5338 = vpack.c.b16 %v5050, %v5046
    %v5339 = vpack.c.b16 %v5051, %v5047
    %v5340 = vpack.c.b16 %v5052, %v5048
    %v5341 = vpack.c.b16 %v5057, %v5053
    %v5342 = vpack.c.b16 %v5058, %v5054
    %v5343 = vpack.c.b16 %v5059, %v5055
    %v5344 = vpack.c.b16 %v5060, %v5056
    %v5345 = vpack.c.b16 %v5065, %v5061
    %v5346 = vpack.c.b16 %v5066, %v5062
    %v5347 = vpack.c.b16 %v5067, %v5063
    %v5348 = vpack.c.b16 %v5068, %v5064
    %v5349 = vpack.c.b16 %v5073, %v5069
    %v5350 = vpack.c.b16 %v5074, %v5070
    %v5351 = vpack.c.b16 %v5075, %v5071
    %v5352 = vpack.c.b16 %v5076, %v5072
    %v5353 = vpack.c.b16 %v5081, %v5077
    %v5354 = vpack.c.b16 %v5082, %v5078
    %v5355 = vpack.c.b16 %v5083, %v5079
    %v5356 = vpack.c.b16 %v5084, %v5080
    %v5357 = vpack.c.b16 %v5089, %v5085
    %v5358 = vpack.c.b16 %v5090, %v5086
    %v5359 = vpack.c.b16 %v5091, %v5087
    %v5360 = vpack.c.b16 %v5092, %v5088
    %v5361 = vpack.c.b16 %v5097, %v5093
    %v5362 = vpack.c.b16 %v5098, %v5094
    %v5363 = vpack.c.b16 %v5099, %v5095
    %v5364 = vpack.c.b16 %v5100, %v5096
    %v5365 = vpack.c.b16 %v5105, %v5101
    %v5366 = vpack.c.b16 %v5106, %v5102
    %v5367 = vpack.c.b16 %v5107, %v5103
    %v5368 = vpack.c.b16 %v5108, %v5104
    %v5369 = vpack.c.b16 %v5113, %v5109
    %v5370 = vpack.c.b16 %v5114, %v5110
    %v5371 = vpack.c.b16 %v5115, %v5111
    %v5372 = vpack.c.b16 %v5116, %v5112
    %5629 = vmatprep.subr.bf16.mxu0 %v5146
    %5630 = vmatpush1.bf16.msra.mxu0 %v5145
    %5631 = vmatprep.subr.bf16.mxu0 %v5142
    %5632 = vmatpush1.bf16.msra.mxu0 %v5141
    %5633 = vmatprep.subr.bf16.mxu0 %v5138
    %5634 = vmatpush1.bf16.msra.mxu0 %v5137
    %5635 = vmatprep.subr.bf16.mxu0 %v5134
    %5636 = vmatpush1.bf16.msra.mxu0 %v5133
    %5637 = vmatprep.subr.bf16.mxu0 %v5130
    %5638 = vmatpush1.bf16.msra.mxu0 %v5129
    %5639 = vmatprep.subr.bf16.mxu0 %v5126
    %5640 = vmatpush1.bf16.msra.mxu0 %v5125
    %5641 = vmatprep.subr.bf16.mxu0 %v5122
    %5642 = vmatpush1.bf16.msra.mxu0 %v5121
    %5643 = vmatprep.subr.bf16.mxu0 %v5118
    %5644 = vmatpush1.bf16.msra.mxu0 %v5117
    %5645 = vmatprep.subr.bf16.mxu0 %v5178
    %5646 = vmatpush2.bf16.msra.mxu0 %v5177
    %5647 = vmatprep.subr.bf16.mxu0 %v5174
    %5648 = vmatpush2.bf16.msra.mxu0 %v5173
    %5649 = vmatprep.subr.bf16.mxu0 %v5170
    %5650 = vmatpush2.bf16.msra.mxu0 %v5169
    %5651 = vmatprep.subr.bf16.mxu0 %v5166
    %5652 = vmatpush2.bf16.msra.mxu0 %v5165
    %5653 = vmatprep.subr.bf16.mxu0 %v5162
    %5654 = vmatpush2.bf16.msra.mxu0 %v5161
    %5655 = vmatprep.subr.bf16.mxu0 %v5158
    %5656 = vmatpush2.bf16.msra.mxu0 %v5157
    %5657 = vmatprep.subr.bf16.mxu0 %v5154
    %5658 = vmatpush2.bf16.msra.mxu0 %v5153
    %5659 = vmatprep.subr.bf16.mxu0 %v5150
    %5660 = vmatpush2.bf16.msra.mxu0 %v5149
    %5661 = vmatprep.mubr.bf16.mxu0 %v4064
    %5662 = vmatmul.mubr.bf16.gmra.mxu0 %v4063
    %v5663 = vpop.f32.mrf.mxu0
    %v5664 = vadd.f32 %v4332, %v5663
    %v5665 = vpop.f32.mrf.mxu0
    %v5666 = vadd.f32 %v4336, %v5665
    %v5667 = vpop.f32.mrf.mxu0
    %v5668 = vpop.f32.mrf.mxu0
    %5669 = vdwg.mxu0
    %5670 = vmatprep.subr.bf16.mxu0 %v5210
    %5671 = vmatpush1.bf16.msra.mxu0 %v5209
    %5672 = vmatprep.subr.bf16.mxu0 %v5206
    %5673 = vmatpush1.bf16.msra.mxu0 %v5205
    %5674 = vmatprep.subr.bf16.mxu0 %v5202
    %5675 = vmatpush1.bf16.msra.mxu0 %v5201
    %5676 = vmatprep.subr.bf16.mxu0 %v5198
    %5677 = vmatpush1.bf16.msra.mxu0 %v5197
    %5678 = vmatprep.subr.bf16.mxu0 %v5194
    %5679 = vmatpush1.bf16.msra.mxu0 %v5193
    %5680 = vmatprep.subr.bf16.mxu0 %v5190
    %5681 = vmatpush1.bf16.msra.mxu0 %v5189
    %5682 = vmatprep.subr.bf16.mxu0 %v5186
    %5683 = vmatpush1.bf16.msra.mxu0 %v5185
    %5684 = vmatprep.subr.bf16.mxu0 %v5182
    %5685 = vmatpush1.bf16.msra.mxu0 %v5181
    %5686 = vmatprep.subr.bf16.mxu0 %v5242
    %5687 = vmatpush2.bf16.msra.mxu0 %v5241
    %5688 = vmatprep.subr.bf16.mxu0 %v5238
    %5689 = vmatpush2.bf16.msra.mxu0 %v5237
    %5690 = vmatprep.subr.bf16.mxu0 %v5234
    %5691 = vmatpush2.bf16.msra.mxu0 %v5233
    %5692 = vmatprep.subr.bf16.mxu0 %v5230
    %5693 = vmatpush2.bf16.msra.mxu0 %v5229
    %5694 = vmatprep.subr.bf16.mxu0 %v5226
    %5695 = vmatpush2.bf16.msra.mxu0 %v5225
    %5696 = vmatprep.subr.bf16.mxu0 %v5222
    %5697 = vmatpush2.bf16.msra.mxu0 %v5221
    %5698 = vmatprep.subr.bf16.mxu0 %v5218
    %5699 = vmatpush2.bf16.msra.mxu0 %v5217
    %5700 = vmatprep.subr.bf16.mxu0 %v5214
    %5701 = vmatpush2.bf16.msra.mxu0 %v5213
    %5702 = vmatprep.mubr.bf16.mxu0 %v4066
    %5703 = vmatmul.mubr.bf16.gmra.mxu0 %v4065
    %v5704 = vpop.f32.mrf.mxu0
    %v5705 = vadd.f32 %v5664, %v5704
    %v5706 = vpop.f32.mrf.mxu0
    %v5707 = vadd.f32 %v5666, %v5706
    %v5708 = vpop.f32.mrf.mxu0
    %v5709 = vpop.f32.mrf.mxu0
    %5710 = vdwg.mxu0
    %5711 = vmatprep.subr.bf16.mxu0 %v5274
    %5712 = vmatpush1.bf16.msra.mxu0 %v5273
    %5713 = vmatprep.subr.bf16.mxu0 %v5270
    %5714 = vmatpush1.bf16.msra.mxu0 %v5269
    %5715 = vmatprep.subr.bf16.mxu0 %v5266
    %5716 = vmatpush1.bf16.msra.mxu0 %v5265
    %5717 = vmatprep.subr.bf16.mxu0 %v5262
    %5718 = vmatpush1.bf16.msra.mxu0 %v5261
    %5719 = vmatprep.subr.bf16.mxu0 %v5258
    %5720 = vmatpush1.bf16.msra.mxu0 %v5257
    %5721 = vmatprep.subr.bf16.mxu0 %v5254
    %5722 = vmatpush1.bf16.msra.mxu0 %v5253
    %5723 = vmatprep.subr.bf16.mxu0 %v5250
    %5724 = vmatpush1.bf16.msra.mxu0 %v5249
    %5725 = vmatprep.subr.bf16.mxu0 %v5246
    %5726 = vmatpush1.bf16.msra.mxu0 %v5245
    %5727 = vmatprep.subr.bf16.mxu0 %v5306
    %5728 = vmatpush2.bf16.msra.mxu0 %v5305
    %5729 = vmatprep.subr.bf16.mxu0 %v5302
    %5730 = vmatpush2.bf16.msra.mxu0 %v5301
    %5731 = vmatprep.subr.bf16.mxu0 %v5298
    %5732 = vmatpush2.bf16.msra.mxu0 %v5297
    %5733 = vmatprep.subr.bf16.mxu0 %v5294
    %5734 = vmatpush2.bf16.msra.mxu0 %v5293
    %5735 = vmatprep.subr.bf16.mxu0 %v5290
    %5736 = vmatpush2.bf16.msra.mxu0 %v5289
    %5737 = vmatprep.subr.bf16.mxu0 %v5286
    %5738 = vmatpush2.bf16.msra.mxu0 %v5285
    %5739 = vmatprep.subr.bf16.mxu0 %v5282
    %5740 = vmatpush2.bf16.msra.mxu0 %v5281
    %5741 = vmatprep.subr.bf16.mxu0 %v5278
    %5742 = vmatpush2.bf16.msra.mxu0 %v5277
    %5743 = vmatprep.mubr.bf16.mxu0 %v4068
    %5744 = vmatmul.mubr.bf16.gmra.mxu0 %v4067
    %v5745 = vpop.f32.mrf.mxu0
    %v5746 = vadd.f32 %v5705, %v5745
    %v5747 = vpop.f32.mrf.mxu0
    %v5748 = vadd.f32 %v5707, %v5747
    %v5749 = vpop.f32.mrf.mxu0
    %v5750 = vpop.f32.mrf.mxu0
    %5751 = vdwg.mxu0
    %5752 = vmatprep.subr.bf16.mxu0 %v5338
    %5753 = vmatpush1.bf16.msra.mxu0 %v5337
    %5754 = vmatprep.subr.bf16.mxu0 %v5334
    %5755 = vmatpush1.bf16.msra.mxu0 %v5333
    %5756 = vmatprep.subr.bf16.mxu0 %v5330
    %5757 = vmatpush1.bf16.msra.mxu0 %v5329
    %5758 = vmatprep.subr.bf16.mxu0 %v5326
    %5759 = vmatpush1.bf16.msra.mxu0 %v5325
    %5760 = vmatprep.subr.bf16.mxu0 %v5322
    %5761 = vmatpush1.bf16.msra.mxu0 %v5321
    %5762 = vmatprep.subr.bf16.mxu0 %v5318
    %5763 = vmatpush1.bf16.msra.mxu0 %v5317
    %5764 = vmatprep.subr.bf16.mxu0 %v5314
    %5765 = vmatpush1.bf16.msra.mxu0 %v5313
    %5766 = vmatprep.subr.bf16.mxu0 %v5310
    %5767 = vmatpush1.bf16.msra.mxu0 %v5309
    %5768 = vmatprep.subr.bf16.mxu0 %v5370
    %5769 = vmatpush2.bf16.msra.mxu0 %v5369
    %5770 = vmatprep.subr.bf16.mxu0 %v5366
    %5771 = vmatpush2.bf16.msra.mxu0 %v5365
    %5772 = vmatprep.subr.bf16.mxu0 %v5362
    %5773 = vmatpush2.bf16.msra.mxu0 %v5361
    %5774 = vmatprep.subr.bf16.mxu0 %v5358
    %5775 = vmatpush2.bf16.msra.mxu0 %v5357
    %5776 = vmatprep.subr.bf16.mxu0 %v5354
    %5777 = vmatpush2.bf16.msra.mxu0 %v5353
    %5778 = vmatprep.subr.bf16.mxu0 %v5350
    %5779 = vmatpush2.bf16.msra.mxu0 %v5349
    %5780 = vmatprep.subr.bf16.mxu0 %v5346
    %5781 = vmatpush2.bf16.msra.mxu0 %v5345
    %5782 = vmatprep.subr.bf16.mxu0 %v5342
    %5783 = vmatpush2.bf16.msra.mxu0 %v5341
    %5784 = vmatprep.mubr.bf16.mxu0 %v4070
    %5785 = vmatmul.mubr.bf16.gmra.mxu0 %v4069
    %v5786 = vpop.f32.mrf.mxu0
    %v5787 = vadd.f32 %v5746, %v5786
    %v5788 = vpop.f32.mrf.mxu0
    %v5789 = vadd.f32 %v5748, %v5788
    %v5790 = vpop.f32.mrf.mxu0
    %v5791 = vpop.f32.mrf.mxu0
    %5792 = vdwg.mxu0
    %5793 = vmatprep.subr.bf16.mxu0 %v5148
    %5794 = vmatpush1.bf16.msra.mxu0 %v5147
    %5795 = vmatprep.subr.bf16.mxu0 %v5144
    %5796 = vmatpush1.bf16.msra.mxu0 %v5143
    %5797 = vmatprep.subr.bf16.mxu0 %v5140
    %5798 = vmatpush1.bf16.msra.mxu0 %v5139
    %5799 = vmatprep.subr.bf16.mxu0 %v5136
    %5800 = vmatpush1.bf16.msra.mxu0 %v5135
    %5801 = vmatprep.subr.bf16.mxu0 %v5132
    %5802 = vmatpush1.bf16.msra.mxu0 %v5131
    %5803 = vmatprep.subr.bf16.mxu0 %v5128
    %5804 = vmatpush1.bf16.msra.mxu0 %v5127
    %5805 = vmatprep.subr.bf16.mxu0 %v5124
    %5806 = vmatpush1.bf16.msra.mxu0 %v5123
    %5807 = vmatprep.subr.bf16.mxu0 %v5120
    %5808 = vmatpush1.bf16.msra.mxu0 %v5119
    %5809 = vmatprep.subr.bf16.mxu0 %v5180
    %5810 = vmatpush2.bf16.msra.mxu0 %v5179
    %5811 = vmatprep.subr.bf16.mxu0 %v5176
    %5812 = vmatpush2.bf16.msra.mxu0 %v5175
    %5813 = vmatprep.subr.bf16.mxu0 %v5172
    %5814 = vmatpush2.bf16.msra.mxu0 %v5171
    %5815 = vmatprep.subr.bf16.mxu0 %v5168
    %5816 = vmatpush2.bf16.msra.mxu0 %v5167
    %5817 = vmatprep.subr.bf16.mxu0 %v5164
    %5818 = vmatpush2.bf16.msra.mxu0 %v5163
    %5819 = vmatprep.subr.bf16.mxu0 %v5160
    %5820 = vmatpush2.bf16.msra.mxu0 %v5159
    %5821 = vmatprep.subr.bf16.mxu0 %v5156
    %5822 = vmatpush2.bf16.msra.mxu0 %v5155
    %5823 = vmatprep.subr.bf16.mxu0 %v5152
    %5824 = vmatpush2.bf16.msra.mxu0 %v5151
    %5825 = vmatprep.mubr.bf16.mxu0 %v4064
    %5826 = vmatmul.mubr.bf16.gmra.mxu0 %v4063
    %v5827 = vpop.f32.mrf.mxu0
    %v5828 = vadd.f32 %v4340, %v5827
    %v5829 = vpop.f32.mrf.mxu0
    %v5830 = vadd.f32 %v4344, %v5829
    %v5831 = vpop.f32.mrf.mxu0
    %v5832 = vpop.f32.mrf.mxu0
    %5833 = vdwg.mxu0
    %5834 = vmatprep.subr.bf16.mxu0 %v5212
    %5835 = vmatpush1.bf16.msra.mxu0 %v5211
    %5836 = vmatprep.subr.bf16.mxu0 %v5208
    %5837 = vmatpush1.bf16.msra.mxu0 %v5207
    %5838 = vmatprep.subr.bf16.mxu0 %v5204
    %5839 = vmatpush1.bf16.msra.mxu0 %v5203
    %5840 = vmatprep.subr.bf16.mxu0 %v5200
    %5841 = vmatpush1.bf16.msra.mxu0 %v5199
    %5842 = vmatprep.subr.bf16.mxu0 %v5196
    %5843 = vmatpush1.bf16.msra.mxu0 %v5195
    %5844 = vmatprep.subr.bf16.mxu0 %v5192
    %5845 = vmatpush1.bf16.msra.mxu0 %v5191
    %5846 = vmatprep.subr.bf16.mxu0 %v5188
    %5847 = vmatpush1.bf16.msra.mxu0 %v5187
    %5848 = vmatprep.subr.bf16.mxu0 %v5184
    %5849 = vmatpush1.bf16.msra.mxu0 %v5183
    %5850 = vmatprep.subr.bf16.mxu0 %v5244
    %5851 = vmatpush2.bf16.msra.mxu0 %v5243
    %5852 = vmatprep.subr.bf16.mxu0 %v5240
    %5853 = vmatpush2.bf16.msra.mxu0 %v5239
    %5854 = vmatprep.subr.bf16.mxu0 %v5236
    %5855 = vmatpush2.bf16.msra.mxu0 %v5235
    %5856 = vmatprep.subr.bf16.mxu0 %v5232
    %5857 = vmatpush2.bf16.msra.mxu0 %v5231
    %5858 = vmatprep.subr.bf16.mxu0 %v5228
    %5859 = vmatpush2.bf16.msra.mxu0 %v5227
    %5860 = vmatprep.subr.bf16.mxu0 %v5224
    %5861 = vmatpush2.bf16.msra.mxu0 %v5223
    %5862 = vmatprep.subr.bf16.mxu0 %v5220
    %5863 = vmatpush2.bf16.msra.mxu0 %v5219
    %5864 = vmatprep.subr.bf16.mxu0 %v5216
    %5865 = vmatpush2.bf16.msra.mxu0 %v5215
    %5866 = vmatprep.mubr.bf16.mxu0 %v4066
    %5867 = vmatmul.mubr.bf16.gmra.mxu0 %v4065
    %v5868 = vpop.f32.mrf.mxu0
    %v5869 = vadd.f32 %v5828, %v5868
    %v5870 = vpop.f32.mrf.mxu0
    %v5871 = vadd.f32 %v5830, %v5870
    %v5872 = vpop.f32.mrf.mxu0
    %v5873 = vpop.f32.mrf.mxu0
    %5874 = vdwg.mxu0
    %5875 = vmatprep.subr.bf16.mxu0 %v5276
    %5876 = vmatpush1.bf16.msra.mxu0 %v5275
    %5877 = vmatprep.subr.bf16.mxu0 %v5272
    %5878 = vmatpush1.bf16.msra.mxu0 %v5271
    %5879 = vmatprep.subr.bf16.mxu0 %v5268
    %5880 = vmatpush1.bf16.msra.mxu0 %v5267
    %5881 = vmatprep.subr.bf16.mxu0 %v5264
    %5882 = vmatpush1.bf16.msra.mxu0 %v5263
    %5883 = vmatprep.subr.bf16.mxu0 %v5260
    %5884 = vmatpush1.bf16.msra.mxu0 %v5259
    %5885 = vmatprep.subr.bf16.mxu0 %v5256
    %5886 = vmatpush1.bf16.msra.mxu0 %v5255
    %5887 = vmatprep.subr.bf16.mxu0 %v5252
    %5888 = vmatpush1.bf16.msra.mxu0 %v5251
    %5889 = vmatprep.subr.bf16.mxu0 %v5248
    %5890 = vmatpush1.bf16.msra.mxu0 %v5247
    %5891 = vmatprep.subr.bf16.mxu0 %v5308
    %5892 = vmatpush2.bf16.msra.mxu0 %v5307
    %5893 = vmatprep.subr.bf16.mxu0 %v5304
    %5894 = vmatpush2.bf16.msra.mxu0 %v5303
    %5895 = vmatprep.subr.bf16.mxu0 %v5300
    %5896 = vmatpush2.bf16.msra.mxu0 %v5299
    %5897 = vmatprep.subr.bf16.mxu0 %v5296
    %5898 = vmatpush2.bf16.msra.mxu0 %v5295
    %5899 = vmatprep.subr.bf16.mxu0 %v5292
    %5900 = vmatpush2.bf16.msra.mxu0 %v5291
    %5901 = vmatprep.subr.bf16.mxu0 %v5288
    %5902 = vmatpush2.bf16.msra.mxu0 %v5287
    %5903 = vmatprep.subr.bf16.mxu0 %v5284
    %5904 = vmatpush2.bf16.msra.mxu0 %v5283
    %5905 = vmatprep.subr.bf16.mxu0 %v5280
    %5906 = vmatpush2.bf16.msra.mxu0 %v5279
    %5907 = vmatprep.mubr.bf16.mxu0 %v4068
    %5908 = vmatmul.mubr.bf16.gmra.mxu0 %v4067
    %v5909 = vpop.f32.mrf.mxu0
    %v5910 = vadd.f32 %v5869, %v5909
    %v5911 = vpop.f32.mrf.mxu0
    %v5912 = vadd.f32 %v5871, %v5911
    %v5913 = vpop.f32.mrf.mxu0
    %v5914 = vpop.f32.mrf.mxu0
    %5915 = vdwg.mxu0
    %5916 = vmatprep.subr.bf16.mxu0 %v5340
    %5917 = vmatpush1.bf16.msra.mxu0 %v5339
    %5918 = vmatprep.subr.bf16.mxu0 %v5336
    %5919 = vmatpush1.bf16.msra.mxu0 %v5335
    %5920 = vmatprep.subr.bf16.mxu0 %v5332
    %5921 = vmatpush1.bf16.msra.mxu0 %v5331
    %5922 = vmatprep.subr.bf16.mxu0 %v5328
    %5923 = vmatpush1.bf16.msra.mxu0 %v5327
    %5924 = vmatprep.subr.bf16.mxu0 %v5324
    %5925 = vmatpush1.bf16.msra.mxu0 %v5323
    %5926 = vmatprep.subr.bf16.mxu0 %v5320
    %5927 = vmatpush1.bf16.msra.mxu0 %v5319
    %5928 = vmatprep.subr.bf16.mxu0 %v5316
    %5929 = vmatpush1.bf16.msra.mxu0 %v5315
    %5930 = vmatprep.subr.bf16.mxu0 %v5312
    %5931 = vmatpush1.bf16.msra.mxu0 %v5311
    %5932 = vmatprep.subr.bf16.mxu0 %v5372
    %5933 = vmatpush2.bf16.msra.mxu0 %v5371
    %5934 = vmatprep.subr.bf16.mxu0 %v5368
    %5935 = vmatpush2.bf16.msra.mxu0 %v5367
    %5936 = vmatprep.subr.bf16.mxu0 %v5364
    %5937 = vmatpush2.bf16.msra.mxu0 %v5363
    %5938 = vmatprep.subr.bf16.mxu0 %v5360
    %5939 = vmatpush2.bf16.msra.mxu0 %v5359
    %5940 = vmatprep.subr.bf16.mxu0 %v5356
    %5941 = vmatpush2.bf16.msra.mxu0 %v5355
    %5942 = vmatprep.subr.bf16.mxu0 %v5352
    %5943 = vmatpush2.bf16.msra.mxu0 %v5351
    %5944 = vmatprep.subr.bf16.mxu0 %v5348
    %5945 = vmatpush2.bf16.msra.mxu0 %v5347
    %5946 = vmatprep.subr.bf16.mxu0 %v5344
    %5947 = vmatpush2.bf16.msra.mxu0 %v5343
    %5948 = vmatprep.mubr.bf16.mxu0 %v4070
    %5949 = vmatmul.mubr.bf16.gmra.mxu0 %v4069
    %v5950 = vpop.f32.mrf.mxu0
    %v5951 = vadd.f32 %v5910, %v5950
    %v5952 = vpop.f32.mrf.mxu0
    %v5953 = vadd.f32 %v5912, %v5952
    %v5954 = vpop.f32.mrf.mxu0
    %v5955 = vpop.f32.mrf.mxu0
    %5956 = vdwg.mxu0
    %vm5957 = vcmp.ge.f32.partialorder %v5787, 0.0
    %vm5958 = vcmp.ge.f32.partialorder %v5789, 0.0
    %vm5959 = vcmp.ge.f32.partialorder %v5951, 0.0
    %vm5960 = vcmp.ge.f32.partialorder %v5953, 0.0
    %v5961 = vmul.f32 %v5787, 0.2
    %v5962 = vmul.f32 %v5789, 0.2
    %v5963 = vmul.f32 %v5951, 0.2
    %v5964 = vmul.f32 %v5953, 0.2
    %v5965 = vsel %vm5957, %v5787, %v5961
    %v5966 = vsel %vm5958, %v5789, %v5962
    %v5967 = vsel %vm5959, %v5951, %v5963
    %v5968 = vsel %vm5960, %v5953, %v5964
    %v5969 = vadd.s32 %v3940, 1024
    %v5970 = vadd.s32 %v3941, 1024
    %v5971 = vadd.s32 %v3942, 1024
    %v5972 = vadd.s32 %v3943, 1024
    %v5973 = vadd.s32 %v3948, %v5969
    %v5974 = vadd.s32 %v3948, %v5970
    %v5975 = vadd.s32 %v3948, %v5971
    %v5976 = vadd.s32 %v3948, %v5972
    %v5977 = vadd.s32 %v5973, %v3958
    %v5978 = vadd.s32 %v5974, %v3958
    %v5979 = vadd.s32 %v5975, %v3958
    %v5980 = vadd.s32 %v5976, %v3958
    %v5981 = vshrl.u32 %v5977, 16
    %v5982 = vshrl.u32 %v5978, 16
    %v5983 = vshrl.u32 %v5979, 16
    %v5984 = vshrl.u32 %v5980, 16
    %v5985 = vxor.u32 %v5977, %v5981
    %v5986 = vxor.u32 %v5978, %v5982
    %v5987 = vxor.u32 %v5979, %v5983
    %v5988 = vxor.u32 %v5980, %v5984
    %v5989 = vmul.u32 %v5985, 2146121005
    %v5990 = vmul.u32 %v5986, 2146121005
    %v5991 = vmul.u32 %v5987, 2146121005
    %v5992 = vmul.u32 %v5988, 2146121005
    %v5993 = vshrl.u32 %v5989, 15
    %v5994 = vshrl.u32 %v5990, 15
    %v5995 = vshrl.u32 %v5991, 15
    %v5996 = vshrl.u32 %v5992, 15
    %v5997 = vxor.u32 %v5989, %v5993
    %v5998 = vxor.u32 %v5990, %v5994
    %v5999 = vxor.u32 %v5991, %v5995
    %v6000 = vxor.u32 %v5992, %v5996
    %v6001 = vmul.u32 %v5997, 2221713035
    %v6002 = vmul.u32 %v5998, 2221713035
    %v6003 = vmul.u32 %v5999, 2221713035
    %v6004 = vmul.u32 %v6000, 2221713035
    %v6005 = vshrl.u32 %v6001, 16
    %v6006 = vshrl.u32 %v6002, 16
    %v6007 = vshrl.u32 %v6003, 16
    %v6008 = vshrl.u32 %v6004, 16
    %v6009 = vxor.u32 %v6001, %v6005
    %v6010 = vxor.u32 %v6002, %v6006
    %v6011 = vxor.u32 %v6003, %v6007
    %v6012 = vxor.u32 %v6004, %v6008
    %v6013 = vand.u32 %v6009, 2147483647
    %v6014 = vand.u32 %v6010, 2147483647
    %v6015 = vand.u32 %v6011, 2147483647
    %v6016 = vand.u32 %v6012, 2147483647
    %vm6017 = vcmp.ge.s32.totalorder %v6013, 644245094
    %vm6018 = vcmp.ge.s32.totalorder %v6014, 644245094
    %vm6019 = vcmp.ge.s32.totalorder %v6015, 644245094
    %vm6020 = vcmp.ge.s32.totalorder %v6016, 644245094
    %v6021 = vmul.f32 %v5965, 1.4285715
    %v6022 = vmul.f32 %v5966, 1.4285715
    %v6023 = vmul.f32 %v5967, 1.4285715
    %v6024 = vmul.f32 %v5968, 1.4285715
    %v6025 = vsel %vm6017, %v6021, 0.0
    %v6026 = vsel %vm6018, %v6022, 0.0
    %v6027 = vsel %vm6019, %v6023, 0.0
    %v6028 = vsel %vm6020, %v6024, 0.0
    %v6029 = vpack.c.bf16 %v6025, %v6025
    %v6030 = vpack.c.bf16 %v6026, %v6026
    %v6031 = vpack.c.bf16 %v6027, %v6027
    %v6032 = vpack.c.bf16 %v6028, %v6028
    %v6033 = vld [vmem:[#allocation12] sm:$0xff]
    %v6034 = vld [vmem:[#allocation12 + $0x8] sm:$0xff]
    %v6035 = vld [vmem:[#allocation12 + $0x10] sm:$0xff]
    %v6036 = vld [vmem:[#allocation12 + $0x18] sm:$0xff]
    %v6037 = vld [vmem:[#allocation12 + $0x20] sm:$0xff]
    %v6038 = vld [vmem:[#allocation12 + $0x28] sm:$0xff]
    %v6039 = vld [vmem:[#allocation12 + $0x30] sm:$0xff]
    %v6040 = vld [vmem:[#allocation12 + $0x38] sm:$0xff]
    %v6041 = vld [vmem:[#allocation12 + $0x40] sm:$0xff]
    %v6042 = vld [vmem:[#allocation12 + $0x48] sm:$0xff]
    %v6043 = vld [vmem:[#allocation12 + $0x50] sm:$0xff]
    %v6044 = vld [vmem:[#allocation12 + $0x58] sm:$0xff]
    %v6045 = vld [vmem:[#allocation12 + $0x60] sm:$0xff]
    %v6046 = vld [vmem:[#allocation12 + $0x68] sm:$0xff]
    %v6047 = vld [vmem:[#allocation12 + $0x70] sm:$0xff]
    %v6048 = vld [vmem:[#allocation12 + $0x78] sm:$0xff]
    %v6049 = vld [vmem:[#allocation12 + $0x80] sm:$0xff]
    %v6050 = vld [vmem:[#allocation12 + $0x88] sm:$0xff]
    %v6051 = vld [vmem:[#allocation12 + $0x90] sm:$0xff]
    %v6052 = vld [vmem:[#allocation12 + $0x98] sm:$0xff]
    %v6053 = vld [vmem:[#allocation12 + $0xa0] sm:$0xff]
    %v6054 = vld [vmem:[#allocation12 + $0xa8] sm:$0xff]
    %v6055 = vld [vmem:[#allocation12 + $0xb0] sm:$0xff]
    %v6056 = vld [vmem:[#allocation12 + $0xb8] sm:$0xff]
    %v6057 = vld [vmem:[#allocation12 + $0xc0] sm:$0xff]
    %v6058 = vld [vmem:[#allocation12 + $0xc8] sm:$0xff]
    %v6059 = vld [vmem:[#allocation12 + $0xd0] sm:$0xff]
    %v6060 = vld [vmem:[#allocation12 + $0xd8] sm:$0xff]
    %v6061 = vld [vmem:[#allocation12 + $0xe0] sm:$0xff]
    %v6062 = vld [vmem:[#allocation12 + $0xe8] sm:$0xff]
    %v6063 = vld [vmem:[#allocation12 + $0xf0] sm:$0xff]
    %v6064 = vld [vmem:[#allocation12 + $0xf8] sm:$0xff]
    %v6065 = vld [vmem:[#allocation12 + $0x100] sm:$0xff]
    %v6066 = vld [vmem:[#allocation12 + $0x108] sm:$0xff]
    %v6067 = vld [vmem:[#allocation12 + $0x110] sm:$0xff]
    %v6068 = vld [vmem:[#allocation12 + $0x118] sm:$0xff]
    %v6069 = vld [vmem:[#allocation12 + $0x120] sm:$0xff]
    %v6070 = vld [vmem:[#allocation12 + $0x128] sm:$0xff]
    %v6071 = vld [vmem:[#allocation12 + $0x130] sm:$0xff]
    %v6072 = vld [vmem:[#allocation12 + $0x138] sm:$0xff]
    %v6073 = vld [vmem:[#allocation12 + $0x140] sm:$0xff]
    %v6074 = vld [vmem:[#allocation12 + $0x148] sm:$0xff]
    %v6075 = vld [vmem:[#allocation12 + $0x150] sm:$0xff]
    %v6076 = vld [vmem:[#allocation12 + $0x158] sm:$0xff]
    %v6077 = vld [vmem:[#allocation12 + $0x160] sm:$0xff]
    %v6078 = vld [vmem:[#allocation12 + $0x168] sm:$0xff]
    %v6079 = vld [vmem:[#allocation12 + $0x170] sm:$0xff]
    %v6080 = vld [vmem:[#allocation12 + $0x178] sm:$0xff]
    %v6081 = vld [vmem:[#allocation12 + $0x180] sm:$0xff]
    %v6082 = vld [vmem:[#allocation12 + $0x188] sm:$0xff]
    %v6083 = vld [vmem:[#allocation12 + $0x190] sm:$0xff]
    %v6084 = vld [vmem:[#allocation12 + $0x198] sm:$0xff]
    %v6085 = vld [vmem:[#allocation12 + $0x1a0] sm:$0xff]
    %v6086 = vld [vmem:[#allocation12 + $0x1a8] sm:$0xff]
    %v6087 = vld [vmem:[#allocation12 + $0x1b0] sm:$0xff]
    %v6088 = vld [vmem:[#allocation12 + $0x1b8] sm:$0xff]
    %v6089 = vld [vmem:[#allocation12 + $0x1c0] sm:$0xff]
    %v6090 = vld [vmem:[#allocation12 + $0x1c8] sm:$0xff]
    %v6091 = vld [vmem:[#allocation12 + $0x1d0] sm:$0xff]
    %v6092 = vld [vmem:[#allocation12 + $0x1d8] sm:$0xff]
    %v6093 = vld [vmem:[#allocation12 + $0x1e0] sm:$0xff]
    %v6094 = vld [vmem:[#allocation12 + $0x1e8] sm:$0xff]
    %v6095 = vld [vmem:[#allocation12 + $0x1f0] sm:$0xff]
    %v6096 = vld [vmem:[#allocation12 + $0x1f8] sm:$0xff]
    %v6097 = vld [vmem:[#allocation13] sm:$0x3]
    %v6099 = vlaneseq
    %v6100 = vshrl.u32 %v6099, 7
    %v6101 = vsub.s32 0, %v6100
    %v6102 = vrot.slane %v6097, %v6101
    %v6103 = vlaneseq
    %v6104 = vshrl.u32 %v6103, 7
    %v6105 = vsub.s32 1, %v6104
    %v6106 = vrot.slane %v6097, %v6105
    %v6173 = vunpack.c.l.b16 %v6033
    %v6174 = vunpack.c.h.b16 %v6033
    %v6175 = vunpack.c.l.b16 %v6034
    %v6176 = vunpack.c.h.b16 %v6034
    %v6177 = vunpack.c.l.b16 %v6035
    %v6178 = vunpack.c.h.b16 %v6035
    %v6179 = vunpack.c.l.b16 %v6036
    %v6180 = vunpack.c.h.b16 %v6036
    %v6181 = vunpack.c.l.b16 %v6037
    %v6182 = vunpack.c.h.b16 %v6037
    %v6183 = vunpack.c.l.b16 %v6038
    %v6184 = vunpack.c.h.b16 %v6038
    %v6185 = vunpack.c.l.b16 %v6039
    %v6186 = vunpack.c.h.b16 %v6039
    %v6187 = vunpack.c.l.b16 %v6040
    %v6188 = vunpack.c.h.b16 %v6040
    %v6189 = vunpack.c.l.b16 %v6041
    %v6190 = vunpack.c.h.b16 %v6041
    %v6191 = vunpack.c.l.b16 %v6042
    %v6192 = vunpack.c.h.b16 %v6042
    %v6193 = vunpack.c.l.b16 %v6043
    %v6194 = vunpack.c.h.b16 %v6043
    %v6195 = vunpack.c.l.b16 %v6044
    %v6196 = vunpack.c.h.b16 %v6044
    %v6197 = vunpack.c.l.b16 %v6045
    %v6198 = vunpack.c.h.b16 %v6045
    %v6199 = vunpack.c.l.b16 %v6046
    %v6200 = vunpack.c.h.b16 %v6046
    %v6201 = vunpack.c.l.b16 %v6047
    %v6202 = vunpack.c.h.b16 %v6047
    %v6203 = vunpack.c.l.b16 %v6048
    %v6204 = vunpack.c.h.b16 %v6048
    %v6205 = vunpack.c.l.b16 %v6049
    %v6206 = vunpack.c.h.b16 %v6049
    %v6207 = vunpack.c.l.b16 %v6050
    %v6208 = vunpack.c.h.b16 %v6050
    %v6209 = vunpack.c.l.b16 %v6051
    %v6210 = vunpack.c.h.b16 %v6051
    %v6211 = vunpack.c.l.b16 %v6052
    %v6212 = vunpack.c.h.b16 %v6052
    %v6213 = vunpack.c.l.b16 %v6053
    %v6214 = vunpack.c.h.b16 %v6053
    %v6215 = vunpack.c.l.b16 %v6054
    %v6216 = vunpack.c.h.b16 %v6054
    %v6217 = vunpack.c.l.b16 %v6055
    %v6218 = vunpack.c.h.b16 %v6055
    %v6219 = vunpack.c.l.b16 %v6056
    %v6220 = vunpack.c.h.b16 %v6056
    %v6221 = vunpack.c.l.b16 %v6057
    %v6222 = vunpack.c.h.b16 %v6057
    %v6223 = vunpack.c.l.b16 %v6058
    %v6224 = vunpack.c.h.b16 %v6058
    %v6225 = vunpack.c.l.b16 %v6059
    %v6226 = vunpack.c.h.b16 %v6059
    %v6227 = vunpack.c.l.b16 %v6060
    %v6228 = vunpack.c.h.b16 %v6060
    %v6229 = vunpack.c.l.b16 %v6061
    %v6230 = vunpack.c.h.b16 %v6061
    %v6231 = vunpack.c.l.b16 %v6062
    %v6232 = vunpack.c.h.b16 %v6062
    %v6233 = vunpack.c.l.b16 %v6063
    %v6234 = vunpack.c.h.b16 %v6063
    %v6235 = vunpack.c.l.b16 %v6064
    %v6236 = vunpack.c.h.b16 %v6064
    %v6237 = vunpack.c.l.b16 %v6065
    %v6238 = vunpack.c.h.b16 %v6065
    %v6239 = vunpack.c.l.b16 %v6066
    %v6240 = vunpack.c.h.b16 %v6066
    %v6241 = vunpack.c.l.b16 %v6067
    %v6242 = vunpack.c.h.b16 %v6067
    %v6243 = vunpack.c.l.b16 %v6068
    %v6244 = vunpack.c.h.b16 %v6068
    %v6245 = vunpack.c.l.b16 %v6069
    %v6246 = vunpack.c.h.b16 %v6069
    %v6247 = vunpack.c.l.b16 %v6070
    %v6248 = vunpack.c.h.b16 %v6070
    %v6249 = vunpack.c.l.b16 %v6071
    %v6250 = vunpack.c.h.b16 %v6071
    %v6251 = vunpack.c.l.b16 %v6072
    %v6252 = vunpack.c.h.b16 %v6072
    %v6253 = vunpack.c.l.b16 %v6073
    %v6254 = vunpack.c.h.b16 %v6073
    %v6255 = vunpack.c.l.b16 %v6074
    %v6256 = vunpack.c.h.b16 %v6074
    %v6257 = vunpack.c.l.b16 %v6075
    %v6258 = vunpack.c.h.b16 %v6075
    %v6259 = vunpack.c.l.b16 %v6076
    %v6260 = vunpack.c.h.b16 %v6076
    %v6261 = vunpack.c.l.b16 %v6077
    %v6262 = vunpack.c.h.b16 %v6077
    %v6263 = vunpack.c.l.b16 %v6078
    %v6264 = vunpack.c.h.b16 %v6078
    %v6265 = vunpack.c.l.b16 %v6079
    %v6266 = vunpack.c.h.b16 %v6079
    %v6267 = vunpack.c.l.b16 %v6080
    %v6268 = vunpack.c.h.b16 %v6080
    %v6269 = vunpack.c.l.b16 %v6081
    %v6270 = vunpack.c.h.b16 %v6081
    %v6271 = vunpack.c.l.b16 %v6082
    %v6272 = vunpack.c.h.b16 %v6082
    %v6273 = vunpack.c.l.b16 %v6083
    %v6274 = vunpack.c.h.b16 %v6083
    %v6275 = vunpack.c.l.b16 %v6084
    %v6276 = vunpack.c.h.b16 %v6084
    %v6277 = vunpack.c.l.b16 %v6085
    %v6278 = vunpack.c.h.b16 %v6085
    %v6279 = vunpack.c.l.b16 %v6086
    %v6280 = vunpack.c.h.b16 %v6086
    %v6281 = vunpack.c.l.b16 %v6087
    %v6282 = vunpack.c.h.b16 %v6087
    %v6283 = vunpack.c.l.b16 %v6088
    %v6284 = vunpack.c.h.b16 %v6088
    %v6285 = vunpack.c.l.b16 %v6089
    %v6286 = vunpack.c.h.b16 %v6089
    %v6287 = vunpack.c.l.b16 %v6090
    %v6288 = vunpack.c.h.b16 %v6090
    %v6289 = vunpack.c.l.b16 %v6091
    %v6290 = vunpack.c.h.b16 %v6091
    %v6291 = vunpack.c.l.b16 %v6092
    %v6292 = vunpack.c.h.b16 %v6092
    %v6293 = vunpack.c.l.b16 %v6093
    %v6294 = vunpack.c.h.b16 %v6093
    %v6295 = vunpack.c.l.b16 %v6094
    %v6296 = vunpack.c.h.b16 %v6094
    %v6297 = vunpack.c.l.b16 %v6095
    %v6298 = vunpack.c.h.b16 %v6095
    %v6299 = vunpack.c.l.b16 %v6096
    %v6300 = vunpack.c.h.b16 %v6096
    %v6301 = vpack.c.b16 %v6175, %v6173
    %v6302 = vpack.c.b16 %v6176, %v6174
    %v6303 = vpack.c.b16 %v6179, %v6177
    %v6304 = vpack.c.b16 %v6180, %v6178
    %v6305 = vpack.c.b16 %v6183, %v6181
    %v6306 = vpack.c.b16 %v6184, %v6182
    %v6307 = vpack.c.b16 %v6187, %v6185
    %v6308 = vpack.c.b16 %v6188, %v6186
    %v6309 = vpack.c.b16 %v6191, %v6189
    %v6310 = vpack.c.b16 %v6192, %v6190
    %v6311 = vpack.c.b16 %v6195, %v6193
    %v6312 = vpack.c.b16 %v6196, %v6194
    %v6313 = vpack.c.b16 %v6199, %v6197
    %v6314 = vpack.c.b16 %v6200, %v6198
    %v6315 = vpack.c.b16 %v6203, %v6201
    %v6316 = vpack.c.b16 %v6204, %v6202
    %v6317 = vpack.c.b16 %v6207, %v6205
    %v6318 = vpack.c.b16 %v6208, %v6206
    %v6319 = vpack.c.b16 %v6211, %v6209
    %v6320 = vpack.c.b16 %v6212, %v6210
    %v6321 = vpack.c.b16 %v6215, %v6213
    %v6322 = vpack.c.b16 %v6216, %v6214
    %v6323 = vpack.c.b16 %v6219, %v6217
    %v6324 = vpack.c.b16 %v6220, %v6218
    %v6325 = vpack.c.b16 %v6223, %v6221
    %v6326 = vpack.c.b16 %v6224, %v6222
    %v6327 = vpack.c.b16 %v6227, %v6225
    %v6328 = vpack.c.b16 %v6228, %v6226
    %v6329 = vpack.c.b16 %v6231, %v6229
    %v6330 = vpack.c.b16 %v6232, %v6230
    %v6331 = vpack.c.b16 %v6235, %v6233
    %v6332 = vpack.c.b16 %v6236, %v6234
    %v6333 = vpack.c.b16 %v6239, %v6237
    %v6334 = vpack.c.b16 %v6240, %v6238
    %v6335 = vpack.c.b16 %v6243, %v6241
    %v6336 = vpack.c.b16 %v6244, %v6242
    %v6337 = vpack.c.b16 %v6247, %v6245
    %v6338 = vpack.c.b16 %v6248, %v6246
    %v6339 = vpack.c.b16 %v6251, %v6249
    %v6340 = vpack.c.b16 %v6252, %v6250
    %v6341 = vpack.c.b16 %v6255, %v6253
    %v6342 = vpack.c.b16 %v6256, %v6254
    %v6343 = vpack.c.b16 %v6259, %v6257
    %v6344 = vpack.c.b16 %v6260, %v6258
    %v6345 = vpack.c.b16 %v6263, %v6261
    %v6346 = vpack.c.b16 %v6264, %v6262
    %v6347 = vpack.c.b16 %v6267, %v6265
    %v6348 = vpack.c.b16 %v6268, %v6266
    %v6349 = vpack.c.b16 %v6271, %v6269
    %v6350 = vpack.c.b16 %v6272, %v6270
    %v6351 = vpack.c.b16 %v6275, %v6273
    %v6352 = vpack.c.b16 %v6276, %v6274
    %v6353 = vpack.c.b16 %v6279, %v6277
    %v6354 = vpack.c.b16 %v6280, %v6278
    %v6355 = vpack.c.b16 %v6283, %v6281
    %v6356 = vpack.c.b16 %v6284, %v6282
    %v6357 = vpack.c.b16 %v6287, %v6285
    %v6358 = vpack.c.b16 %v6288, %v6286
    %v6359 = vpack.c.b16 %v6291, %v6289
    %v6360 = vpack.c.b16 %v6292, %v6290
    %v6361 = vpack.c.b16 %v6295, %v6293
    %v6362 = vpack.c.b16 %v6296, %v6294
    %v6363 = vpack.c.b16 %v6299, %v6297
    %v6364 = vpack.c.b16 %v6300, %v6298
    %6429 = vmatprep.subr.bf16.mxu0 %v6316
    %6430 = vmatpush1.bf16.msra.mxu0 %v6315
    %6431 = vmatprep.subr.bf16.mxu0 %v6314
    %6432 = vmatpush1.bf16.msra.mxu0 %v6313
    %6433 = vmatprep.subr.bf16.mxu0 %v6312
    %6434 = vmatpush1.bf16.msra.mxu0 %v6311
    %6435 = vmatprep.subr.bf16.mxu0 %v6310
    %6436 = vmatpush1.bf16.msra.mxu0 %v6309
    %6437 = vmatprep.subr.bf16.mxu0 %v6308
    %6438 = vmatpush1.bf16.msra.mxu0 %v6307
    %6439 = vmatprep.subr.bf16.mxu0 %v6306
    %6440 = vmatpush1.bf16.msra.mxu0 %v6305
    %6441 = vmatprep.subr.bf16.mxu0 %v6304
    %6442 = vmatpush1.bf16.msra.mxu0 %v6303
    %6443 = vmatprep.subr.bf16.mxu0 %v6302
    %6444 = vmatpush1.bf16.msra.mxu0 %v6301
    %6445 = vmatprep.subr.bf16.mxu0 %v6332
    %6446 = vmatpush2.bf16.msra.mxu0 %v6331
    %6447 = vmatprep.subr.bf16.mxu0 %v6330
    %6448 = vmatpush2.bf16.msra.mxu0 %v6329
    %6449 = vmatprep.subr.bf16.mxu0 %v6328
    %6450 = vmatpush2.bf16.msra.mxu0 %v6327
    %6451 = vmatprep.subr.bf16.mxu0 %v6326
    %6452 = vmatpush2.bf16.msra.mxu0 %v6325
    %6453 = vmatprep.subr.bf16.mxu0 %v6324
    %6454 = vmatpush2.bf16.msra.mxu0 %v6323
    %6455 = vmatprep.subr.bf16.mxu0 %v6322
    %6456 = vmatpush2.bf16.msra.mxu0 %v6321
    %6457 = vmatprep.subr.bf16.mxu0 %v6320
    %6458 = vmatpush2.bf16.msra.mxu0 %v6319
    %6459 = vmatprep.subr.bf16.mxu0 %v6318
    %6460 = vmatpush2.bf16.msra.mxu0 %v6317
    %6461 = vmatprep.mubr.bf16.mxu0 %v6030
    %6462 = vmatmul.mubr.bf16.gmra.mxu0 %v6029
    %v6463 = vpop.f32.mrf.mxu0
    %v6464 = vadd.f32 %v6102, %v6463
    %v6465 = vpop.f32.mrf.mxu0
    %v6466 = vadd.f32 %v6106, %v6465
    %v6467 = vpop.f32.mrf.mxu0
    %v6468 = vpop.f32.mrf.mxu0
    %6469 = vdwg.mxu0
    %6470 = vmatprep.subr.bf16.mxu0 %v6348
    %6471 = vmatpush1.bf16.msra.mxu0 %v6347
    %6472 = vmatprep.subr.bf16.mxu0 %v6346
    %6473 = vmatpush1.bf16.msra.mxu0 %v6345
    %6474 = vmatprep.subr.bf16.mxu0 %v6344
    %6475 = vmatpush1.bf16.msra.mxu0 %v6343
    %6476 = vmatprep.subr.bf16.mxu0 %v6342
    %6477 = vmatpush1.bf16.msra.mxu0 %v6341
    %6478 = vmatprep.subr.bf16.mxu0 %v6340
    %6479 = vmatpush1.bf16.msra.mxu0 %v6339
    %6480 = vmatprep.subr.bf16.mxu0 %v6338
    %6481 = vmatpush1.bf16.msra.mxu0 %v6337
    %6482 = vmatprep.subr.bf16.mxu0 %v6336
    %6483 = vmatpush1.bf16.msra.mxu0 %v6335
    %6484 = vmatprep.subr.bf16.mxu0 %v6334
    %6485 = vmatpush1.bf16.msra.mxu0 %v6333
    %6486 = vmatprep.subr.bf16.mxu0 %v6364
    %6487 = vmatpush2.bf16.msra.mxu0 %v6363
    %6488 = vmatprep.subr.bf16.mxu0 %v6362
    %6489 = vmatpush2.bf16.msra.mxu0 %v6361
    %6490 = vmatprep.subr.bf16.mxu0 %v6360
    %6491 = vmatpush2.bf16.msra.mxu0 %v6359
    %6492 = vmatprep.subr.bf16.mxu0 %v6358
    %6493 = vmatpush2.bf16.msra.mxu0 %v6357
    %6494 = vmatprep.subr.bf16.mxu0 %v6356
    %6495 = vmatpush2.bf16.msra.mxu0 %v6355
    %6496 = vmatprep.subr.bf16.mxu0 %v6354
    %6497 = vmatpush2.bf16.msra.mxu0 %v6353
    %6498 = vmatprep.subr.bf16.mxu0 %v6352
    %6499 = vmatpush2.bf16.msra.mxu0 %v6351
    %6500 = vmatprep.subr.bf16.mxu0 %v6350
    %6501 = vmatpush2.bf16.msra.mxu0 %v6349
    %6502 = vmatprep.mubr.bf16.mxu0 %v6032
    %6503 = vmatmul.mubr.bf16.gmra.mxu0 %v6031
    %v6504 = vpop.f32.mrf.mxu0
    %v6505 = vadd.f32 %v6464, %v6504
    %v6506 = vpop.f32.mrf.mxu0
    %v6507 = vadd.f32 %v6466, %v6506
    %v6508 = vpop.f32.mrf.mxu0
    %v6509 = vpop.f32.mrf.mxu0
    %6510 = vdwg.mxu0
    %vm6511 = vcmp.ge.f32.partialorder %v6505, 0.0
    %vm6512 = vcmp.ge.f32.partialorder %v6507, 0.0
    %v6513 = vmul.f32 %v6505, 0.2
    %v6514 = vmul.f32 %v6507, 0.2
    %v6515 = vsel %vm6511, %v6505, %v6513
    %v6516 = vsel %vm6512, %v6507, %v6514
    %v6517 = vadd.s32 %v3940, 1536
    %v6518 = vadd.s32 %v3941, 1536
    %v6519 = vadd.s32 %v3948, %v6517
    %v6520 = vadd.s32 %v3948, %v6518
    %v6521 = vadd.s32 %v6519, %v3958
    %v6522 = vadd.s32 %v6520, %v3958
    %v6523 = vshrl.u32 %v6521, 16
    %v6524 = vshrl.u32 %v6522, 16
    %v6525 = vxor.u32 %v6521, %v6523
    %v6526 = vxor.u32 %v6522, %v6524
    %v6527 = vmul.u32 %v6525, 2146121005
    %v6528 = vmul.u32 %v6526, 2146121005
    %v6529 = vshrl.u32 %v6527, 15
    %v6530 = vshrl.u32 %v6528, 15
    %v6531 = vxor.u32 %v6527, %v6529
    %v6532 = vxor.u32 %v6528, %v6530
    %v6533 = vmul.u32 %v6531, 2221713035
    %v6534 = vmul.u32 %v6532, 2221713035
    %v6535 = vshrl.u32 %v6533, 16
    %v6536 = vshrl.u32 %v6534, 16
    %v6537 = vxor.u32 %v6533, %v6535
    %v6538 = vxor.u32 %v6534, %v6536
    %v6539 = vand.u32 %v6537, 2147483647
    %v6540 = vand.u32 %v6538, 2147483647
    %vm6541 = vcmp.ge.s32.totalorder %v6539, 644245094
    %vm6542 = vcmp.ge.s32.totalorder %v6540, 644245094
    %v6543 = vmul.f32 %v6515, 1.4285715
    %v6544 = vmul.f32 %v6516, 1.4285715
    %v6545 = vsel %vm6541, %v6543, 0.0
    %v6546 = vsel %vm6542, %v6544, 0.0
    %v6547 = vld [vmem:[#allocation15] sm:$0x3]
    %v6549 = vlaneseq
    %v6550 = vshrl.u32 %v6549, 7
    %v6551 = vsub.s32 0, %v6550
    %v6552 = vrot.slane %v6547, %v6551
    %v6553 = vlaneseq
    %v6554 = vshrl.u32 %v6553, 7
    %v6555 = vsub.s32 1, %v6554
    %v6556 = vrot.slane %v6547, %v6555
    %v6559 = vmul.f32 %v6545, %v6552
    %v6560 = vmul.f32 %v6546, %v6556
    %v6561 = vadd.f32 %v6559, %v6560
    %6562 = vadd.xlane.f32.xlu0 %v6561
    %v6563 = vpop.xlane.xlu0 %6562
    %v6564 = vld [vmem:[#allocation4] sm:$0x1]
    %v6566 = vlaneseq
    %v6567 = vshrl.u32 %v6566, 7
    %v6568 = vsub.s32 0, %v6567
    %v6569 = vrot.slane %v6564, %v6568
    %v6571 = vadd.f32 %v6563, %v6569
    %vm6572 = vcmask 7168
    %6573 = vst.msk [vmem:[%s10] sm:$0xff] %vm6572, %v6571
    // Predicated region
    $region66: #{discriminator_mnist_forward.1} parent=1 // pred_check
      _
    $region67: #{discriminator_mnist_forward.1} parent=1 // pred_check_branch
      %6575 = sbr.rel (0) target = $region69
    $region68: #{discriminator_mnist_forward.1} parent=1 // pred_region
      _
    $region69: #{discriminator_mnist_forward.1} parent=1 // pred_fallthru
      _
    // Predicated region
    $region70: #{discriminator_mnist_forward.1} parent=1 // pred_check
      _
    $region71: #{discriminator_mnist_forward.1} parent=1 // pred_check_branch
      %6577 = sbr.rel (0) target = $region73
    $region72: #{discriminator_mnist_forward.1} parent=1 // pred_region
      _
    $region73: #{discriminator_mnist_forward.1} parent=1 // pred_fallthru
      _
    %6578 = vsyncpa [#allocation6], 1
    %6579 = vsyncpa [#allocation8], 1
    %6580 = vsyncpa [#allocation11], 1
    %6581 = vsyncpa [#allocation14], 1

</llo_original>
